<compile_context>
chip_gen: v5e
topology: v5e:2x2
jax: 0.10.0
libtpu: 0.0.40
codegen_flags: <defaults>
</compile_context>

<pallas_src>
import math

import jax
import jax.numpy as jnp
import numpy as np
from jax import lax
from jax.experimental import pallas as pl
from jax.experimental.pallas import tpu as pltpu


def _round_up(x, m):
    return -(-x // m) * m


# ----------------------------------------------------------------------------
# Host-side parameter re-layout (done once per model build)
# ----------------------------------------------------------------------------
def _banded_conv_weight(w_hwio, W):
    """Fold the kx (width) taps of a KxK 'SAME' conv into banded matrices, one per ky.

    w_hwio : (K, K, Cin, 4*Ch) HWIO, out-channels gate-major (i, f, g, o blocks of Ch)
    returns: (K, W*Cin, 4*W*Ch) with
        out[ky, xi*Cin + ci, g*(W*Ch) + xo*Ch + co] = w[ky, kx, ci, g*Ch + co]
    where xi = xo + kx - pad (entries falling outside [0, W) are zero).
    """
    w = np.asarray(w_hwio, np.float32)
    K, _, Cin, C4 = w.shape
    Ch = C4 // 4
    pad = (K - 1) // 2
    wg = w.reshape(K, K, Cin, 4, Ch)
    big = np.zeros((K, W, Cin, 4, W, Ch), np.float32)
    for ky in range(K):
        for kx in range(K):
            for xo in range(W):
                xi = xo + kx - pad
                if 0 <= xi < W:
                    big[ky, xi, :, :, xo, :] += wg[ky, kx]
    return big.reshape(K, W * Cin, 4 * W * Ch)


def _bias_slab(b, W):
    """(4*Ch,) -> (1, 4*W*Ch) in (gate, x, ch) column order."""
    b = np.asarray(b, np.float32)
    Ch = b.shape[0] // 4
    full = np.ascontiguousarray(np.broadcast_to(b.reshape(4, 1, Ch), (4, W, Ch)))
    return full.reshape(1, 4 * W * Ch)


def _rows_slab(a_hwc):
    """(H, W, C) -> (H, W*C) lane-dense layout."""
    a = np.asarray(a_hwc, np.float32)
    H, W, C = a.shape
    return a.reshape(H, W * C)


# ----------------------------------------------------------------------------
# Fused Pallas kernel (all layers, all outer steps, B batch elements per grid step)
# ----------------------------------------------------------------------------
def _make_fused_kernel(*, Chs, K, H, W, B, step, eff_list, use_peephole, unroll,
                       mm_dtype, out_dtype, pad_rows, stride, Hr, M_win):
    L = len(Chs)
    pad = (K - 1) // 2
    per_layer = 6 if use_peephole else 3
    n_eff = len(eff_list)
    n_in = 1 + L * per_layer
    n_out = (1 if n_eff else 0) + 2

    def kernel(*refs):
        in_refs = refs[:n_in]
        out_refs = refs[n_in:n_in + n_out]
        scratch = refs[n_in + n_out:]

        x_ref = in_refs[0]
        wrefs = in_refs[1:]
        if n_eff:
            out_eff_ref, h_out_ref, c_out_ref = out_refs
        else:
            h_out_ref, c_out_ref = out_refs
        x_buf, x0c_buf = scratch[0], scratch[1]
        h_bufs = scratch[2:2 + L]
        c_bufs = scratch[2 + L:2 + 2 * L]

        def layer_refs(l):
            r = tuple(wrefs[l * per_layer:(l + 1) * per_layer])
            return r if use_peephole else r + (None, None, None)

        def conv_window(buf_ref, bigw_ref):
            """KxK 'SAME' conv over the whole stacked (B blocks) window.
            Row (ky) taps = shifted M_win-row reads of the zero-separated buffer,
            width (kx) taps are folded into the banded weight.  acc += dot keeps the
            v7x MRB accumulating in place.  Returns (M_win, 4*W*Ch) f32."""
            acc = None
            for ky in range(K):
                a = buf_ref[pl.ds(pad_rows + ky - pad, M_win), :]
                t = jnp.dot(a, bigw_ref[ky], preferred_element_type=jnp.float32)
                acc = t if acc is None else acc + t
            return acc

        def sigm(v):
            # one EUP op (tanh) instead of exp + divide
            return 0.5 * jnp.tanh(0.5 * v) + 0.5

        def guarded(cond):
            """Run decorated body if cond; static Python bool or traced scalar."""
            def deco(fn):
                if isinstance(cond, (bool, np.bool_)):
                    if cond:
                        fn()
                else:
                    pl.when(cond)(fn)
            return deco

        # ---- zero only what is read before it is written ----
        def zero_gaps(buf):
            ncol = buf.shape[-1]
            buf[pl.ds(0, pad_rows), :] = jnp.zeros((pad_rows, ncol), buf.dtype)
            gap = stride - H
            zg = jnp.zeros((gap, ncol), buf.dtype)
            for b in range(B):
                buf[pl.ds(pad_rows + b * stride + H, gap), :] = zg

        zero_gaps(x_buf)
        if unroll:
            # step-0 specialization never reads h/c interiors before writing them
            for hb in h_bufs:
                zero_gaps(hb)
        else:
            # dynamic step loop: step 0 reads the (zero) state from VMEM
            for hb in h_bufs:
                hb[...] = jnp.zeros_like(hb)
            for cb in c_bufs:
                cb[...] = jnp.zeros_like(cb)

        # ---- stage the input; layer-0 x-path conv (+ its bias) computed ONCE ----
        for b in range(B):
            x_buf[pl.ds(pad_rows + b * stride, H), :] = x_ref[b].astype(x_buf.dtype)
        l0 = layer_refs(0)
        x0c_buf[...] = conv_window(x_buf, l0[0]) + l0[2][...]

        # hidden-layer bias loads hoisted out of the step loop
        hidden_bias = [layer_refs(l)[2][...] for l in range(1, L)]

        def run_step(s, first):
            """One outer step.  `first` is a *static* bool (only True at s==0 on the
            unrolled path): skips the h-conv / peephole terms, which are exactly zero."""
            x_contrib = x0c_buf[...]
            for l in range(L):
                _bigwx, bigwh, _bias, wci, wcf, wco = layer_refs(l)
                WC = W * Chs[l]
                gates_win = x_contrib
                if not first:
                    gates_win = gates_win + conv_window(h_bufs[l], bigwh)
                for b in range(B):
                    r0 = b * stride                      # window-row offset of block b
                    g = gates_win[r0:r0 + H]
                    gi = g[:, 0 * WC:1 * WC]             # 128-aligned lane slices
                    gf = g[:, 1 * WC:2 * WC]
                    gg = g[:, 2 * WC:3 * WC]
                    go = g[:, 3 * WC:4 * WC]
                    if first:
                        cc = sigm(gi) * jnp.tanh(gg)
                    else:
                        c_prev = c_bufs[l][pl.ds(b * Hr, H), :]
                        pi = gi + c_prev * wci[...] if use_peephole else gi
                        pf = gf + c_prev * wcf[...] if use_peephole else gf
                        cc = sigm(pf) * c_prev + sigm(pi) * jnp.tanh(gg)
                    po = go + cc * wco[...] if use_peephole else go
                    h_new = sigm(po) * jnp.tanh(cc)

                    c_bufs[l][pl.ds(b * Hr, H), :] = cc
                    h_bufs[l][pl.ds(pad_rows + r0, H), :] = h_new.astype(h_bufs[l].dtype)

                    if l == L - 1:
                        for k, es in enumerate(eff_list):
                            @guarded(s == es)
                            def _(k=k, b=b, hv=h_new):
                                out_eff_ref[k, b] = hv.astype(out_dtype)

                        @guarded(s == step - 1)
                        def _(b=b, hv=h_new, cv=cc):
                            h_out_ref[b] = hv.astype(out_dtype)
                            c_out_ref[b] = cv.astype(out_dtype)

                if l + 1 < L:
                    x_contrib = (conv_window(h_bufs[l], layer_refs(l + 1)[0])
                                 + hidden_bias[l])

        if unroll:
            for s in range(step):
                run_step(s, first=(s == 0))
        else:
            def body(s, carry):
                run_step(s, first=False)
                return carry
            lax.fori_loop(0, step, body, 0)

    return kernel


# ----------------------------------------------------------------------------
# Wrapper: builds the fused pallas_call for a given ConvLSTM configuration
# ----------------------------------------------------------------------------
_BUFFERED_WEIGHTS_OK = None   # process-wide cache: does pl.Buffered(1) compile?


def build_conv_lstm(params, input_channels, hidden_channels, kernel_size,
                    batch, height, width, *, step=1, effective_steps=(1,),
                    use_peephole=True, matmul_dtype=jnp.bfloat16,
                    out_dtype=jnp.float32, batch_block=None, unroll_steps=None,
                    single_buffer_weights=None, interpret=False):
    """params[l] = (wx, wh, b, wci, wcf, wco):
         wx (K,K,Cin_l,4*Ch_l) HWIO gate-major, wh (K,K,Ch_l,4*Ch_l),
         b (4*Ch_l,) [bias only on the x path], wci/wcf/wco (H,W,Ch_l).
       Returns forward(x_nhwc) -> (outputs_list, (h_last, c_last)), all NHWC.
       Note: with the default matmul_dtype=bfloat16 the conv weights are stored/used in
       bf16 (inference-grade); pass matmul_dtype=jnp.float32 for training-parity math."""
    global _BUFFERED_WEIGHTS_OK

    L = len(hidden_channels)
    Chs = list(hidden_channels)
    Cins = [input_channels] + Chs[:-1]
    K = kernel_size
    N, H, W = batch, height, width
    pad = (K - 1) // 2
    assert step >= 1

    # ---- batch folding: B elements stacked along sublanes per grid step ----
    if batch_block is None:
        min_grid = 2 if N >= 2 else 1        # v7x: keep both TensorCores busy
        B = 1
        for cand in range(1, min(N, 8) + 1):
            if N % cand == 0 and N // cand >= min_grid:
                B = cand
    else:
        B = int(batch_block)
        if N % B != 0:
            raise ValueError("batch_block must divide batch")
    G = N // B

    unroll = (step <= 4) if unroll_steps is None else bool(unroll_steps)

    pad_rows = max(8, _round_up(pad, 8))     # 8-aligned halos / separators
    Hr = _round_up(H, 8)
    stride = Hr + pad_rows                   # block pitch inside the row buffer
    T = pad_rows + B * stride                # total buffer rows
    M_win = (B - 1) * stride + Hr            # matmul M covering all block interiors
    eff_list = [s for s in range(step) if s in effective_steps]
    n_eff = len(eff_list)
    mm_dtype = matmul_dtype

    # ---- host-side weight re-layout (banded / lane-dense / bf16), done once ----
    weight_inputs = []
    for l in range(L):
        wx, wh, b, wci, wcf, wco = params[l]
        layer_arrs = [
            jnp.asarray(_banded_conv_weight(wx, W), mm_dtype),
            jnp.asarray(_banded_conv_weight(wh, W), mm_dtype),
            jnp.asarray(_bias_slab(b, W), jnp.float32),
        ]
        if use_peephole:
            layer_arrs += [jnp.asarray(_rows_slab(wc), jnp.float32)
                           for wc in (wci, wcf, wco)]
        weight_inputs += layer_arrs

    WCl = W * Chs[-1]
    scratch_shapes = (
        [pltpu.VMEM((T, W * Cins[0]), mm_dtype),                  # x row buffer
         pltpu.VMEM((M_win, 4 * W * Chs[0]), jnp.float32)]        # layer-0 x-conv (+bias)
        + [pltpu.VMEM((T, W * ch), mm_dtype) for ch in Chs]       # h row buffers
        + [pltpu.VMEM((B * Hr, W * ch), jnp.float32) for ch in Chs])  # c state

    kernel = _make_fused_kernel(
        Chs=Chs, K=K, H=H, W=W, B=B, step=step, eff_list=eff_list,
        use_peephole=use_peephole, unroll=unroll, mm_dtype=mm_dtype,
        out_dtype=out_dtype, pad_rows=pad_rows, stride=stride, Hr=Hr, M_win=M_win)

    out_shape, out_specs = [], []
    if n_eff:
        out_shape.append(jax.ShapeDtypeStruct((n_eff, N, H, WCl), out_dtype))
        out_specs.append(pl.BlockSpec((n_eff, B, H, WCl), lambda g: (0, g, 0, 0)))
    out_shape += [jax.ShapeDtypeStruct((N, H, WCl), out_dtype)] * 2
    out_specs += [pl.BlockSpec((B, H, WCl), lambda g: (g, 0, 0))] * 2

    # ---- VMEM budget -> explicit scoped limit, plus an advisory cost estimate ----
    def _nbytes(shape, dt):
        return int(np.prod(shape)) * np.dtype(dt).itemsize

    weight_bytes = sum(int(a.size) * np.dtype(a.dtype).itemsize for a in weight_inputs)
    scratch_bytes = (_nbytes((T, W * Cins[0]), mm_dtype)
                     + _nbytes((M_win, 4 * W * Chs[0]), jnp.float32)
                     + sum(_nbytes((T, W * ch), mm_dtype) for ch in Chs)
                     + sum(_nbytes((B * Hr, W * ch), jnp.float32) for ch in Chs))
    io_bytes = 2 * (_nbytes((B, H, W * Cins[0]), jnp.float32)
                    + (n_eff + 2) * _nbytes((B, H, WCl), out_dtype))

    conv_flops = 2 * K * M_win * (W * Cins[0]) * (4 * W * Chs[0])   # layer-0 x conv, once
    for s_ in range(step):
        for l in range(L):
            if l > 0:
                conv_flops += 2 * K * M_win * (W * Cins[l]) * (4 * W * Chs[l])
            if not (unroll and s_ == 0):
                conv_flops += 2 * K * M_win * (W * Chs[l]) * (4 * W * Chs[l])
    ew = sum(B * H * W * ch for ch in Chs)
    cost = pl.CostEstimate(
        flops=int(G * (conv_flops + 12 * step * ew)),
        transcendentals=int(G * 5 * step * ew),
        bytes_accessed=int(N * H * W * Cins[0] * 4 + weight_bytes
                           + (n_eff + 2) * N * H * WCl * np.dtype(out_dtype).itemsize))

    def _build(buffered1):
        wspecs = []
        for arr in weight_inputs:
            idx = (lambda g, _nd=arr.ndim: (0,) * _nd)   # grid-invariant
            if buffered1:
                wspecs.append(pl.BlockSpec(arr.shape, idx,
                                           pipeline_mode=pl.Buffered(1)))
            else:
                wspecs.append(pl.BlockSpec(arr.shape, idx))
        in_specs = [pl.BlockSpec((B, H, W * Cins[0]), lambda g: (g, 0, 0))] + wspecs

        vmem_need = (weight_bytes * (1 if buffered1 else 2) + scratch_bytes
                     + io_bytes + (4 << 20))
        vmem_limit = int(max(32 << 20, min(vmem_need, 64 << 20)))

        pallas_fn = pl.pallas_call(
            kernel,
            out_shape=tuple(out_shape),
            grid_spec=pltpu.PrefetchScalarGridSpec(
                num_scalar_prefetch=0,
                grid=(G,),
                in_specs=in_specs,
                out_specs=out_specs,
                scratch_shapes=scratch_shapes),
            compiler_params=pltpu.CompilerParams(
                dimension_semantics=("parallel",),
                vmem_limit_bytes=vmem_limit),
            cost_estimate=cost,
            interpret=interpret,
        )

        @jax.jit
        def forward(x_nhwc):
            x_rows = x_nhwc.reshape(N, H, W * Cins[0])
            res = pallas_fn(x_rows, *weight_inputs)
            if n_eff:
                out_eff, h_last, c_last = res
                outputs = [out_eff[k].reshape(N, H, W, Chs[-1]) for k in range(n_eff)]
            else:
                h_last, c_last = res
                outputs = []
            return outputs, (h_last.reshape(N, H, W, Chs[-1]),
                             c_last.reshape(N, H, W, Chs[-1]))

        return forward

    if single_buffer_weights is not None:
        return _build(bool(single_buffer_weights))
    if _BUFFERED_WEIGHTS_OK is False or not hasattr(pl, "Buffered"):
        return _build(False)
    try:
        fwd = _build(True)
        if _BUFFERED_WEIGHTS_OK is None:     # verify single-buffered weights once
            probe = jax.ShapeDtypeStruct((N, H, W, Cins[0]), jnp.float32)
            fwd.lower(probe).compile()
            _BUFFERED_WEIGHTS_OK = True
        return fwd
    except Exception:
        _BUFFERED_WEIGHTS_OK = False
        return _build(False)


# ----------------------------------------------------------------------------
# Parameter init (PyTorch-style) and a pure-JAX reference of the same forward
# ----------------------------------------------------------------------------
def init_convlstm_params(key, input_channels, hidden_channels, kernel_size, spatial,
                         dtype=jnp.float32):
    H, W = spatial
    in_chs = [input_channels] + list(hidden_channels)
    params = []
    for i, ch in enumerate(hidden_channels):
        cin = in_chs[i]
        key, kx, kh, kb = jax.random.split(key, 4)
        bound_x = 1.0 / math.sqrt(cin * kernel_size * kernel_size)
        bound_h = 1.0 / math.sqrt(ch * kernel_size * kernel_size)
        wx = jax.random.uniform(kx, (kernel_size, kernel_size, cin, 4 * ch),
                                dtype, -bound_x, bound_x)
        wh = jax.random.uniform(kh, (kernel_size, kernel_size, ch, 4 * ch),
                                dtype, -bound_h, bound_h)
        b = jax.random.uniform(kb, (4 * ch,), dtype, -bound_x, bound_x)
        # Peephole weights are zero-initialised in the reference module.
        wci = jnp.zeros((H, W, ch), dtype)
        wcf = jnp.zeros((H, W, ch), dtype)
        wco = jnp.zeros((H, W, ch), dtype)
        params.append((wx, wh, b, wci, wcf, wco))
    return params


def _ref_cell(x, h, c, params):
    wx, wh, b, wci, wcf, wco = params
    dn = ('NHWC', 'HWIO', 'NHWC')
    gates = (lax.conv_general_dilated(x, wx, (1, 1), 'SAME', dimension_numbers=dn)
             + lax.conv_general_dilated(h, wh, (1, 1), 'SAME', dimension_numbers=dn)
             + b.reshape(1, 1, 1, -1))
    Ch = h.shape[-1]
    gi, gf, gg, go = (gates[..., k * Ch:(k + 1) * Ch] for k in range(4))
    ci = jax.nn.sigmoid(gi + c * wci)
    cf = jax.nn.sigmoid(gf + c * wcf)
    cc = cf * c + ci * jnp.tanh(gg)
    co = jax.nn.sigmoid(go + cc * wco)
    return co * jnp.tanh(cc), cc


def conv_lstm_forward_ref(inputs, params, hidden_channels, step=1, effective_steps=(1,)):
    """Mirrors ConvLSTM.forward: re-feeds `inputs` at every outer step."""
    N, H, W, _ = inputs.shape
    internal_state, outputs = [], []
    x, new_c = None, None
    for s in range(step):
        x = inputs
        for i, ch in enumerate(hidden_channels):
            if s == 0:
                h = jnp.zeros((N, H, W, ch), inputs.dtype)
                c = jnp.zeros((N, H, W, ch), inputs.dtype)
                internal_state.append((h, c))
            h, c = internal_state[i]
            x, new_c = _ref_cell(x, h, c, params[i])
            internal_state[i] = (x, new_c)
        if s in effective_steps:
            outputs.append(x)
    return outputs, (x, new_c)


# ----------------------------------------------------------------------------
if __name__ == "__main__":
    key = jax.random.PRNGKey(0)

    # ConvLSTM(input_channels=4, hidden_channels=[8, 8], kernel_size=3,
    #          step=2, effective_steps=(1,))
    input_channels = 4
    hidden_channels = [8, 8]
    kernel_size = 3
    step = 2
    effective_steps = (1,)
    N, H, W = 4, 16, 16   # N=4 -> batch_block=2, grid=2 (both v7x TCs busy)

    key, kin, kpar = jax.random.split(key, 3)
    x = jax.random.normal(kin, (N, H, W, input_channels), jnp.float32)  # NHWC
    params = init_convlstm_params(kpar, input_channels, hidden_channels,
                                  kernel_size, (H, W))

    ref_outputs, (ref_h, ref_c) = conv_lstm_forward_ref(
        x, params, hidden_channels, step=step, effective_steps=effective_steps)
    jax.block_until_ready((ref_outputs, ref_h, ref_c))

    # --- 1) default fast path: bf16 MXU operands, batch folded (B=2), unrolled steps ---
    fwd = build_conv_lstm(params, input_channels, hidden_channels, kernel_size,
                          N, H, W, step=step, effective_steps=effective_steps,
                          use_peephole=False)
    outputs, (h_last, c_last) = fwd(x)
    jax.block_until_ready((outputs, h_last, c_last))
    np.testing.assert_allclose(np.asarray(h_last), np.asarray(ref_h), atol=5e-2, rtol=5e-2)
    np.testing.assert_allclose(np.asarray(c_last), np.asarray(ref_c), atol=5e-2, rtol=5e-2)
    assert len(outputs) == len(ref_outputs)
    for a, b in zip(outputs, ref_outputs):
        np.testing.assert_allclose(np.asarray(a), np.asarray(b), atol=5e-2, rtol=5e-2)

    # --- 2) exact-math path: f32 matmuls, random peepholes, dynamic (fori) step loop ---
    params_pp = []
    for (wx, wh, b, wci, wcf, wco) in params:
        key, k1, k2, k3 = jax.random.split(key, 4)
        params_pp.append((wx, wh, b,
                          0.2 * jax.random.normal(k1, wci.shape, jnp.float32),
                          0.2 * jax.random.normal(k2, wcf.shape, jnp.float32),
                          0.2 * jax.random.normal(k3, wco.shape, jnp.float32)))
    step_pp, eff_pp = 3, (0, 2)
    fwd_pp = build_conv_lstm(params_pp, input_channels, hidden_channels, kernel_size,
                             N, H, W, step=step_pp, effective_steps=eff_pp,
                             use_peephole=True, matmul_dtype=jnp.float32,
                             unroll_steps=False)
    out_pp, (h_pp, c_pp) = fwd_pp(x)
    jax.block_until_ready((out_pp, h_pp, c_pp))
    ref_out_pp, (rh_pp, rc_pp) = conv_lstm_forward_ref(
        x, params_pp, hidden_channels, step=step_pp, effective_steps=eff_pp)
    np.testing.assert_allclose(np.asarray(h_pp), np.asarray(rh_pp), atol=1e-4, rtol=1e-4)
    np.testing.assert_allclose(np.asarray(c_pp), np.asarray(rc_pp), atol=1e-4, rtol=1e-4)
    assert len(out_pp) == len(ref_out_pp)
    for a, b in zip(out_pp, ref_out_pp):
        np.testing.assert_allclose(np.asarray(a), np.asarray(b), atol=1e-4, rtol=1e-4)

    # --- 3) un-folded path (B=1, grid=N), f32 matmuls, unrolled, no peephole ---
    x2 = x[:2]
    fwd_b1 = build_conv_lstm(params, input_channels, hidden_channels, kernel_size,
                             2, H, W, step=step, effective_steps=effective_steps,
                             use_peephole=False, matmul_dtype=jnp.float32,
                             batch_block=1)
    out_b1, (h_b1, c_b1) = fwd_b1(x2)
    jax.block_until_ready((out_b1, h_b1, c_b1))
    np.testing.assert_allclose(np.asarray(h_b1), np.asarray(ref_h)[:2], atol=5e-5, rtol=5e-5)
    np.testing.assert_allclose(np.asarray(c_b1), np.asarray(ref_c)[:2], atol=5e-5, rtol=5e-5)
    for a, b in zip(out_b1, ref_outputs):
        np.testing.assert_allclose(np.asarray(a), np.asarray(b)[:2], atol=5e-5, rtol=5e-5)

    print("KERNEL_OK")
</pallas_src>

<mosaic_0001>
module attributes {stable_mosaic.version = 11 : i64} {
  func.func @kernel(%arg0: i32, %arg1: memref<2x16x64xf32, #tpu.memory_space<vmem>>, %arg2: memref<3x64x512xbf16, #tpu.memory_space<vmem>>, %arg3: memref<3x128x512xbf16, #tpu.memory_space<vmem>>, %arg4: memref<1x512xf32, #tpu.memory_space<vmem>>, %arg5: memref<3x128x512xbf16, #tpu.memory_space<vmem>>, %arg6: memref<3x128x512xbf16, #tpu.memory_space<vmem>>, %arg7: memref<1x512xf32, #tpu.memory_space<vmem>>, %arg8: memref<1x2x16x128xf32, #tpu.memory_space<vmem>>, %arg9: memref<2x16x128xf32, #tpu.memory_space<vmem>>, %arg10: memref<2x16x128xf32, #tpu.memory_space<vmem>>, %arg11: memref<56x64xbf16, #tpu.memory_space<vmem>>, %arg12: memref<40x512xf32, #tpu.memory_space<vmem>>, %arg13: memref<56x128xbf16, #tpu.memory_space<vmem>>, %arg14: memref<56x128xbf16, #tpu.memory_space<vmem>>, %arg15: memref<32x128xf32, #tpu.memory_space<vmem>>, %arg16: memref<32x128xf32, #tpu.memory_space<vmem>>) attributes {dimension_semantics = [#tpu.dimension_semantics<parallel>], iteration_bounds = array<i64: 2>, scalar_prefetch = 0 : i64, scratch_operands = 6 : i64, tpu.core_type = #tpu.core_type<tc>, window_params = [{transform_indices = @transform_0, window_bounds = array<i64: 2, 16, 64>}, {pipeline_mode = #tpu.pipeline_mode<synchronous>, transform_indices = @transform_1, window_bounds = array<i64: 3, 64, 512>}, {pipeline_mode = #tpu.pipeline_mode<synchronous>, transform_indices = @transform_2, window_bounds = array<i64: 3, 128, 512>}, {pipeline_mode = #tpu.pipeline_mode<synchronous>, transform_indices = @transform_3, window_bounds = array<i64: 1, 512>}, {pipeline_mode = #tpu.pipeline_mode<synchronous>, transform_indices = @transform_4, window_bounds = array<i64: 3, 128, 512>}, {pipeline_mode = #tpu.pipeline_mode<synchronous>, transform_indices = @transform_5, window_bounds = array<i64: 3, 128, 512>}, {pipeline_mode = #tpu.pipeline_mode<synchronous>, transform_indices = @transform_6, window_bounds = array<i64: 1, 512>}, {transform_indices = @transform_7, window_bounds = array<i64: 1, 2, 16, 128>}, {transform_indices = @transform_8, window_bounds = array<i64: 2, 16, 128>}, {transform_indices = @transform_9, window_bounds = array<i64: 2, 16, 128>}]} {
    %cst = arith.constant 0.000000e+00 : bf16
    %0 = vector.broadcast %cst : bf16 to vector<8x64xbf16>
    %c0 = arith.constant 0 : index
    %c0_0 = arith.constant 0 : index
    %1 = vector.load %arg11[%c0, %c0_0] : memref<56x64xbf16, #tpu.memory_space<vmem>>, vector<8x64xbf16>
    tpu.vector_store %arg11[%c0, %c0_0], %0 {strides = array<i32>} : memref<56x64xbf16, #tpu.memory_space<vmem>>, vector<8x64xbf16>,
    %cst_1 = arith.constant 0.000000e+00 : bf16
    %2 = vector.broadcast %cst_1 : bf16 to vector<8x64xbf16>
    %c24 = arith.constant 24 : index
    %c0_2 = arith.constant 0 : index
    %3 = vector.load %arg11[%c24, %c0_2] : memref<56x64xbf16, #tpu.memory_space<vmem>>, vector<8x64xbf16>
    tpu.vector_store %arg11[%c24, %c0_2], %2 {strides = array<i32>} : memref<56x64xbf16, #tpu.memory_space<vmem>>, vector<8x64xbf16>,
    %c48 = arith.constant 48 : index
    %c0_3 = arith.constant 0 : index
    %4 = vector.load %arg11[%c48, %c0_3] : memref<56x64xbf16, #tpu.memory_space<vmem>>, vector<8x64xbf16>
    tpu.vector_store %arg11[%c48, %c0_3], %2 {strides = array<i32>} : memref<56x64xbf16, #tpu.memory_space<vmem>>, vector<8x64xbf16>,
    %cst_4 = arith.constant 0.000000e+00 : bf16
    %5 = vector.broadcast %cst_4 : bf16 to vector<8x128xbf16>
    %c0_5 = arith.constant 0 : index
    %c0_6 = arith.constant 0 : index
    %6 = vector.load %arg13[%c0_5, %c0_6] : memref<56x128xbf16, #tpu.memory_space<vmem>>, vector<8x128xbf16>
    tpu.vector_store %arg13[%c0_5, %c0_6], %5 {strides = array<i32>} : memref<56x128xbf16, #tpu.memory_space<vmem>>, vector<8x128xbf16>,
    %cst_7 = arith.constant 0.000000e+00 : bf16
    %7 = vector.broadcast %cst_7 : bf16 to vector<8x128xbf16>
    %c24_8 = arith.constant 24 : index
    %c0_9 = arith.constant 0 : index
    %8 = vector.load %arg13[%c24_8, %c0_9] : memref<56x128xbf16, #tpu.memory_space<vmem>>, vector<8x128xbf16>
    tpu.vector_store %arg13[%c24_8, %c0_9], %7 {strides = array<i32>} : memref<56x128xbf16, #tpu.memory_space<vmem>>, vector<8x128xbf16>,
    %c48_10 = arith.constant 48 : index
    %c0_11 = arith.constant 0 : index
    %9 = vector.load %arg13[%c48_10, %c0_11] : memref<56x128xbf16, #tpu.memory_space<vmem>>, vector<8x128xbf16>
    tpu.vector_store %arg13[%c48_10, %c0_11], %7 {strides = array<i32>} : memref<56x128xbf16, #tpu.memory_space<vmem>>, vector<8x128xbf16>,
    %cst_12 = arith.constant 0.000000e+00 : bf16
    %10 = vector.broadcast %cst_12 : bf16 to vector<8x128xbf16>
    %c0_13 = arith.constant 0 : index
    %c0_14 = arith.constant 0 : index
    %11 = vector.load %arg14[%c0_13, %c0_14] : memref<56x128xbf16, #tpu.memory_space<vmem>>, vector<8x128xbf16>
    tpu.vector_store %arg14[%c0_13, %c0_14], %10 {strides = array<i32>} : memref<56x128xbf16, #tpu.memory_space<vmem>>, vector<8x128xbf16>,
    %cst_15 = arith.constant 0.000000e+00 : bf16
    %12 = vector.broadcast %cst_15 : bf16 to vector<8x128xbf16>
    %c24_16 = arith.constant 24 : index
    %c0_17 = arith.constant 0 : index
    %13 = vector.load %arg14[%c24_16, %c0_17] : memref<56x128xbf16, #tpu.memory_space<vmem>>, vector<8x128xbf16>
    tpu.vector_store %arg14[%c24_16, %c0_17], %12 {strides = array<i32>} : memref<56x128xbf16, #tpu.memory_space<vmem>>, vector<8x128xbf16>,
    %c48_18 = arith.constant 48 : index
    %c0_19 = arith.constant 0 : index
    %14 = vector.load %arg14[%c48_18, %c0_19] : memref<56x128xbf16, #tpu.memory_space<vmem>>, vector<8x128xbf16>
    tpu.vector_store %arg14[%c48_18, %c0_19], %12 {strides = array<i32>} : memref<56x128xbf16, #tpu.memory_space<vmem>>, vector<8x128xbf16>,
    %c0_20 = arith.constant 0 : index
    %c0_21 = arith.constant 0 : index
    %c0_22 = arith.constant 0 : index
    %15 = vector.load %arg1[%c0_20, %c0_21, %c0_22] : memref<2x16x64xf32, #tpu.memory_space<vmem>>, vector<1x16x64xf32>
    %16 = vector.shape_cast %15 : vector<1x16x64xf32> to vector<16x64xf32>
    %17 = arith.truncf %16 : vector<16x64xf32> to vector<16x64xbf16>
    %c8 = arith.constant 8 : index
    %c0_23 = arith.constant 0 : index
    %18 = vector.load %arg11[%c8, %c0_23] : memref<56x64xbf16, #tpu.memory_space<vmem>>, vector<16x64xbf16>
    tpu.vector_store %arg11[%c8, %c0_23], %17 {strides = array<i32>} : memref<56x64xbf16, #tpu.memory_space<vmem>>, vector<16x64xbf16>,
    %c1 = arith.constant 1 : index
    %c0_24 = arith.constant 0 : index
    %c0_25 = arith.constant 0 : index
    %19 = vector.load %arg1[%c1, %c0_24, %c0_25] : memref<2x16x64xf32, #tpu.memory_space<vmem>>, vector<1x16x64xf32>
    %20 = vector.shape_cast %19 : vector<1x16x64xf32> to vector<16x64xf32>
    %21 = arith.truncf %20 : vector<16x64xf32> to vector<16x64xbf16>
    %c32 = arith.constant 32 : index
    %c0_26 = arith.constant 0 : index
    %22 = vector.load %arg11[%c32, %c0_26] : memref<56x64xbf16, #tpu.memory_space<vmem>>, vector<16x64xbf16>
    tpu.vector_store %arg11[%c32, %c0_26], %21 {strides = array<i32>} : memref<56x64xbf16, #tpu.memory_space<vmem>>, vector<16x64xbf16>,
    %c7 = arith.constant 7 : index
    %c0_27 = arith.constant 0 : index
    %23 = vector.load %arg11[%c7, %c0_27] : memref<56x64xbf16, #tpu.memory_space<vmem>>, vector<40x64xbf16>
    %c0_28 = arith.constant 0 : index
    %c0_29 = arith.constant 0 : index
    %c0_30 = arith.constant 0 : index
    %24 = vector.load %arg2[%c0_28, %c0_29, %c0_30] : memref<3x64x512xbf16, #tpu.memory_space<vmem>>, vector<1x64x512xbf16>
    %25 = vector.shape_cast %24 : vector<1x64x512xbf16> to vector<64x512xbf16>
    %cst_31 = arith.constant dense<0.000000e+00> : vector<40x512xf32>
    %26 = tpu.matmul %23, %25, %cst_31 {dimension_numbers = #tpu.dot_dimension_numbers<[1], [0], [0], [1], [0, 0, 1, 1], [], []>} : vector<40x64xbf16>, vector<64x512xbf16>, vector<40x512xf32> -> vector<40x512xf32>
    %c8_32 = arith.constant 8 : index
    %c0_33 = arith.constant 0 : index
    %27 = vector.load %arg11[%c8_32, %c0_33] : memref<56x64xbf16, #tpu.memory_space<vmem>>, vector<40x64xbf16>
    %c1_34 = arith.constant 1 : index
    %c0_35 = arith.constant 0 : index
    %c0_36 = arith.constant 0 : index
    %28 = vector.load %arg2[%c1_34, %c0_35, %c0_36] : memref<3x64x512xbf16, #tpu.memory_space<vmem>>, vector<1x64x512xbf16>
    %29 = vector.shape_cast %28 : vector<1x64x512xbf16> to vector<64x512xbf16>
    %cst_37 = arith.constant dense<0.000000e+00> : vector<40x512xf32>
    %30 = tpu.matmul %27, %29, %cst_37 {dimension_numbers = #tpu.dot_dimension_numbers<[1], [0], [0], [1], [0, 0, 1, 1], [], []>} : vector<40x64xbf16>, vector<64x512xbf16>, vector<40x512xf32> -> vector<40x512xf32>
    %31 = arith.addf %26, %30 : vector<40x512xf32>
    %c9 = arith.constant 9 : index
    %c0_38 = arith.constant 0 : index
    %32 = vector.load %arg11[%c9, %c0_38] : memref<56x64xbf16, #tpu.memory_space<vmem>>, vector<40x64xbf16>
    %c2 = arith.constant 2 : index
    %c0_39 = arith.constant 0 : index
    %c0_40 = arith.constant 0 : index
    %33 = vector.load %arg2[%c2, %c0_39, %c0_40] : memref<3x64x512xbf16, #tpu.memory_space<vmem>>, vector<1x64x512xbf16>
    %34 = vector.shape_cast %33 : vector<1x64x512xbf16> to vector<64x512xbf16>
    %cst_41 = arith.constant dense<0.000000e+00> : vector<40x512xf32>
    %35 = tpu.matmul %32, %34, %cst_41 {dimension_numbers = #tpu.dot_dimension_numbers<[1], [0], [0], [1], [0, 0, 1, 1], [], []>} : vector<40x64xbf16>, vector<64x512xbf16>, vector<40x512xf32> -> vector<40x512xf32>
    %36 = arith.addf %31, %35 : vector<40x512xf32>
    %c0_42 = arith.constant 0 : index
    %c0_43 = arith.constant 0 : index
    %37 = vector.load %arg4[%c0_42, %c0_43] : memref<1x512xf32, #tpu.memory_space<vmem>>, vector<1x512xf32>
    %38 = vector.broadcast %37 : vector<1x512xf32> to vector<40x512xf32>
    %39 = arith.addf %36, %38 : vector<40x512xf32>
    %c0_44 = arith.constant 0 : index
    %c0_45 = arith.constant 0 : index
    %40 = vector.load %arg12[%c0_44, %c0_45] : memref<40x512xf32, #tpu.memory_space<vmem>>, vector<40x512xf32>
    tpu.vector_store %arg12[%c0_44, %c0_45], %39 {strides = array<i32>} : memref<40x512xf32, #tpu.memory_space<vmem>>, vector<40x512xf32>,
    %c0_46 = arith.constant 0 : index
    %c0_47 = arith.constant 0 : index
    %41 = vector.load %arg7[%c0_46, %c0_47] : memref<1x512xf32, #tpu.memory_space<vmem>>, vector<1x512xf32>
    %c0_48 = arith.constant 0 : index
    %c0_49 = arith.constant 0 : index
    %42 = vector.load %arg12[%c0_48, %c0_49] : memref<40x512xf32, #tpu.memory_space<vmem>>, vector<40x512xf32>
    %43 = vector.extract_strided_slice %42 {offsets = [0, 0], sizes = [16, 512], strides = [1, 1]} : vector<40x512xf32> to vector<16x512xf32>
    %44 = vector.extract_strided_slice %43 {offsets = [0, 0], sizes = [16, 128], strides = [1, 1]} : vector<16x512xf32> to vector<16x128xf32>
    %45 = vector.extract_strided_slice %43 {offsets = [0, 256], sizes = [16, 128], strides = [1, 1]} : vector<16x512xf32> to vector<16x128xf32>
    %46 = vector.extract_strided_slice %43 {offsets = [0, 384], sizes = [16, 128], strides = [1, 1]} : vector<16x512xf32> to vector<16x128xf32>
    %cst_50 = arith.constant 5.000000e-01 : f32
    %47 = vector.broadcast %cst_50 : f32 to vector<16x128xf32>
    %48 = arith.mulf %47, %44 : vector<16x128xf32>
    %49 = math.tanh %48 : vector<16x128xf32>
    %cst_51 = arith.constant 5.000000e-01 : f32
    %50 = vector.broadcast %cst_51 : f32 to vector<16x128xf32>
    %51 = arith.mulf %50, %49 : vector<16x128xf32>
    %cst_52 = arith.constant 5.000000e-01 : f32
    %52 = vector.broadcast %cst_52 : f32 to vector<16x128xf32>
    %53 = arith.addf %51, %52 : vector<16x128xf32>
    %54 = math.tanh %45 : vector<16x128xf32>
    %55 = arith.mulf %53, %54 : vector<16x128xf32>
    %cst_53 = arith.constant 5.000000e-01 : f32
    %56 = vector.broadcast %cst_53 : f32 to vector<16x128xf32>
    %57 = arith.mulf %56, %46 : vector<16x128xf32>
    %58 = math.tanh %57 : vector<16x128xf32>
    %cst_54 = arith.constant 5.000000e-01 : f32
    %59 = vector.broadcast %cst_54 : f32 to vector<16x128xf32>
    %60 = arith.mulf %59, %58 : vector<16x128xf32>
    %cst_55 = arith.constant 5.000000e-01 : f32
    %61 = vector.broadcast %cst_55 : f32 to vector<16x128xf32>
    %62 = arith.addf %60, %61 : vector<16x128xf32>
    %63 = math.tanh %55 : vector<16x128xf32>
    %64 = arith.mulf %62, %63 : vector<16x128xf32>
    %c0_56 = arith.constant 0 : index
    %c0_57 = arith.constant 0 : index
    %65 = vector.load %arg15[%c0_56, %c0_57] : memref<32x128xf32, #tpu.memory_space<vmem>>, vector<16x128xf32>
    tpu.vector_store %arg15[%c0_56, %c0_57], %55 {strides = array<i32>} : memref<32x128xf32, #tpu.memory_space<vmem>>, vector<16x128xf32>,
    %66 = arith.truncf %64 : vector<16x128xf32> to vector<16x128xbf16>
    %c8_58 = arith.constant 8 : index
    %c0_59 = arith.constant 0 : index
    %67 = vector.load %arg13[%c8_58, %c0_59] : memref<56x128xbf16, #tpu.memory_space<vmem>>, vector<16x128xbf16>
    tpu.vector_store %arg13[%c8_58, %c0_59], %66 {strides = array<i32>} : memref<56x128xbf16, #tpu.memory_space<vmem>>, vector<16x128xbf16>,
    %68 = vector.extract_strided_slice %42 {offsets = [24, 0], sizes = [16, 512], strides = [1, 1]} : vector<40x512xf32> to vector<16x512xf32>
    %69 = vector.extract_strided_slice %68 {offsets = [0, 0], sizes = [16, 128], strides = [1, 1]} : vector<16x512xf32> to vector<16x128xf32>
    %70 = vector.extract_strided_slice %68 {offsets = [0, 256], sizes = [16, 128], strides = [1, 1]} : vector<16x512xf32> to vector<16x128xf32>
    %71 = vector.extract_strided_slice %68 {offsets = [0, 384], sizes = [16, 128], strides = [1, 1]} : vector<16x512xf32> to vector<16x128xf32>
    %cst_60 = arith.constant 5.000000e-01 : f32
    %72 = vector.broadcast %cst_60 : f32 to vector<16x128xf32>
    %73 = arith.mulf %72, %69 : vector<16x128xf32>
    %74 = math.tanh %73 : vector<16x128xf32>
    %cst_61 = arith.constant 5.000000e-01 : f32
    %75 = vector.broadcast %cst_61 : f32 to vector<16x128xf32>
    %76 = arith.mulf %75, %74 : vector<16x128xf32>
    %cst_62 = arith.constant 5.000000e-01 : f32
    %77 = vector.broadcast %cst_62 : f32 to vector<16x128xf32>
    %78 = arith.addf %76, %77 : vector<16x128xf32>
    %79 = math.tanh %70 : vector<16x128xf32>
    %80 = arith.mulf %78, %79 : vector<16x128xf32>
    %cst_63 = arith.constant 5.000000e-01 : f32
    %81 = vector.broadcast %cst_63 : f32 to vector<16x128xf32>
    %82 = arith.mulf %81, %71 : vector<16x128xf32>
    %83 = math.tanh %82 : vector<16x128xf32>
    %cst_64 = arith.constant 5.000000e-01 : f32
    %84 = vector.broadcast %cst_64 : f32 to vector<16x128xf32>
    %85 = arith.mulf %84, %83 : vector<16x128xf32>
    %cst_65 = arith.constant 5.000000e-01 : f32
    %86 = vector.broadcast %cst_65 : f32 to vector<16x128xf32>
    %87 = arith.addf %85, %86 : vector<16x128xf32>
    %88 = math.tanh %80 : vector<16x128xf32>
    %89 = arith.mulf %87, %88 : vector<16x128xf32>
    %c16 = arith.constant 16 : index
    %c0_66 = arith.constant 0 : index
    %90 = vector.load %arg15[%c16, %c0_66] : memref<32x128xf32, #tpu.memory_space<vmem>>, vector<16x128xf32>
    tpu.vector_store %arg15[%c16, %c0_66], %80 {strides = array<i32>} : memref<32x128xf32, #tpu.memory_space<vmem>>, vector<16x128xf32>,
    %91 = arith.truncf %89 : vector<16x128xf32> to vector<16x128xbf16>
    %c32_67 = arith.constant 32 : index
    %c0_68 = arith.constant 0 : index
    %92 = vector.load %arg13[%c32_67, %c0_68] : memref<56x128xbf16, #tpu.memory_space<vmem>>, vector<16x128xbf16>
    tpu.vector_store %arg13[%c32_67, %c0_68], %91 {strides = array<i32>} : memref<56x128xbf16, #tpu.memory_space<vmem>>, vector<16x128xbf16>,
    %c7_69 = arith.constant 7 : index
    %c0_70 = arith.constant 0 : index
    %93 = vector.load %arg13[%c7_69, %c0_70] : memref<56x128xbf16, #tpu.memory_space<vmem>>, vector<40x128xbf16>
    %c0_71 = arith.constant 0 : index
    %c0_72 = arith.constant 0 : index
    %c0_73 = arith.constant 0 : index
    %94 = vector.load %arg5[%c0_71, %c0_72, %c0_73] : memref<3x128x512xbf16, #tpu.memory_space<vmem>>, vector<1x128x512xbf16>
    %95 = vector.shape_cast %94 : vector<1x128x512xbf16> to vector<128x512xbf16>
    %cst_74 = arith.constant dense<0.000000e+00> : vector<40x512xf32>
    %96 = tpu.matmul %93, %95, %cst_74 {dimension_numbers = #tpu.dot_dimension_numbers<[1], [0], [0], [1], [0, 0, 1, 1], [], []>} : vector<40x128xbf16>, vector<128x512xbf16>, vector<40x512xf32> -> vector<40x512xf32>
    %c8_75 = arith.constant 8 : index
    %c0_76 = arith.constant 0 : index
    %97 = vector.load %arg13[%c8_75, %c0_76] : memref<56x128xbf16, #tpu.memory_space<vmem>>, vector<40x128xbf16>
    %c1_77 = arith.constant 1 : index
    %c0_78 = arith.constant 0 : index
    %c0_79 = arith.constant 0 : index
    %98 = vector.load %arg5[%c1_77, %c0_78, %c0_79] : memref<3x128x512xbf16, #tpu.memory_space<vmem>>, vector<1x128x512xbf16>
    %99 = vector.shape_cast %98 : vector<1x128x512xbf16> to vector<128x512xbf16>
    %cst_80 = arith.constant dense<0.000000e+00> : vector<40x512xf32>
    %100 = tpu.matmul %97, %99, %cst_80 {dimension_numbers = #tpu.dot_dimension_numbers<[1], [0], [0], [1], [0, 0, 1, 1], [], []>} : vector<40x128xbf16>, vector<128x512xbf16>, vector<40x512xf32> -> vector<40x512xf32>
    %101 = arith.addf %96, %100 : vector<40x512xf32>
    %c9_81 = arith.constant 9 : index
    %c0_82 = arith.constant 0 : index
    %102 = vector.load %arg13[%c9_81, %c0_82] : memref<56x128xbf16, #tpu.memory_space<vmem>>, vector<40x128xbf16>
    %c2_83 = arith.constant 2 : index
    %c0_84 = arith.constant 0 : index
    %c0_85 = arith.constant 0 : index
    %103 = vector.load %arg5[%c2_83, %c0_84, %c0_85] : memref<3x128x512xbf16, #tpu.memory_space<vmem>>, vector<1x128x512xbf16>
    %104 = vector.shape_cast %103 : vector<1x128x512xbf16> to vector<128x512xbf16>
    %cst_86 = arith.constant dense<0.000000e+00> : vector<40x512xf32>
    %105 = tpu.matmul %102, %104, %cst_86 {dimension_numbers = #tpu.dot_dimension_numbers<[1], [0], [0], [1], [0, 0, 1, 1], [], []>} : vector<40x128xbf16>, vector<128x512xbf16>, vector<40x512xf32> -> vector<40x512xf32>
    %106 = arith.addf %101, %105 : vector<40x512xf32>
    %107 = vector.broadcast %41 : vector<1x512xf32> to vector<40x512xf32>
    %108 = arith.addf %106, %107 : vector<40x512xf32>
    %109 = vector.extract_strided_slice %108 {offsets = [0, 0], sizes = [16, 512], strides = [1, 1]} : vector<40x512xf32> to vector<16x512xf32>
    %110 = vector.extract_strided_slice %109 {offsets = [0, 0], sizes = [16, 128], strides = [1, 1]} : vector<16x512xf32> to vector<16x128xf32>
    %111 = vector.extract_strided_slice %109 {offsets = [0, 256], sizes = [16, 128], strides = [1, 1]} : vector<16x512xf32> to vector<16x128xf32>
    %112 = vector.extract_strided_slice %109 {offsets = [0, 384], sizes = [16, 128], strides = [1, 1]} : vector<16x512xf32> to vector<16x128xf32>
    %cst_87 = arith.constant 5.000000e-01 : f32
    %113 = vector.broadcast %cst_87 : f32 to vector<16x128xf32>
    %114 = arith.mulf %113, %110 : vector<16x128xf32>
    %115 = math.tanh %114 : vector<16x128xf32>
    %cst_88 = arith.constant 5.000000e-01 : f32
    %116 = vector.broadcast %cst_88 : f32 to vector<16x128xf32>
    %117 = arith.mulf %116, %115 : vector<16x128xf32>
    %cst_89 = arith.constant 5.000000e-01 : f32
    %118 = vector.broadcast %cst_89 : f32 to vector<16x128xf32>
    %119 = arith.addf %117, %118 : vector<16x128xf32>
    %120 = math.tanh %111 : vector<16x128xf32>
    %121 = arith.mulf %119, %120 : vector<16x128xf32>
    %cst_90 = arith.constant 5.000000e-01 : f32
    %122 = vector.broadcast %cst_90 : f32 to vector<16x128xf32>
    %123 = arith.mulf %122, %112 : vector<16x128xf32>
    %124 = math.tanh %123 : vector<16x128xf32>
    %cst_91 = arith.constant 5.000000e-01 : f32
    %125 = vector.broadcast %cst_91 : f32 to vector<16x128xf32>
    %126 = arith.mulf %125, %124 : vector<16x128xf32>
    %cst_92 = arith.constant 5.000000e-01 : f32
    %127 = vector.broadcast %cst_92 : f32 to vector<16x128xf32>
    %128 = arith.addf %126, %127 : vector<16x128xf32>
    %129 = math.tanh %121 : vector<16x128xf32>
    %130 = arith.mulf %128, %129 : vector<16x128xf32>
    %c0_93 = arith.constant 0 : index
    %c0_94 = arith.constant 0 : index
    %131 = vector.load %arg16[%c0_93, %c0_94] : memref<32x128xf32, #tpu.memory_space<vmem>>, vector<16x128xf32>
    tpu.vector_store %arg16[%c0_93, %c0_94], %121 {strides = array<i32>} : memref<32x128xf32, #tpu.memory_space<vmem>>, vector<16x128xf32>,
    %132 = arith.truncf %130 : vector<16x128xf32> to vector<16x128xbf16>
    %c8_95 = arith.constant 8 : index
    %c0_96 = arith.constant 0 : index
    %133 = vector.load %arg14[%c8_95, %c0_96] : memref<56x128xbf16, #tpu.memory_space<vmem>>, vector<16x128xbf16>
    tpu.vector_store %arg14[%c8_95, %c0_96], %132 {strides = array<i32>} : memref<56x128xbf16, #tpu.memory_space<vmem>>, vector<16x128xbf16>,
    %134 = vector.extract_strided_slice %108 {offsets = [24, 0], sizes = [16, 512], strides = [1, 1]} : vector<40x512xf32> to vector<16x512xf32>
    %135 = vector.extract_strided_slice %134 {offsets = [0, 0], sizes = [16, 128], strides = [1, 1]} : vector<16x512xf32> to vector<16x128xf32>
    %136 = vector.extract_strided_slice %134 {offsets = [0, 256], sizes = [16, 128], strides = [1, 1]} : vector<16x512xf32> to vector<16x128xf32>
    %137 = vector.extract_strided_slice %134 {offsets = [0, 384], sizes = [16, 128], strides = [1, 1]} : vector<16x512xf32> to vector<16x128xf32>
    %cst_97 = arith.constant 5.000000e-01 : f32
    %138 = vector.broadcast %cst_97 : f32 to vector<16x128xf32>
    %139 = arith.mulf %138, %135 : vector<16x128xf32>
    %140 = math.tanh %139 : vector<16x128xf32>
    %cst_98 = arith.constant 5.000000e-01 : f32
    %141 = vector.broadcast %cst_98 : f32 to vector<16x128xf32>
    %142 = arith.mulf %141, %140 : vector<16x128xf32>
    %cst_99 = arith.constant 5.000000e-01 : f32
    %143 = vector.broadcast %cst_99 : f32 to vector<16x128xf32>
    %144 = arith.addf %142, %143 : vector<16x128xf32>
    %145 = math.tanh %136 : vector<16x128xf32>
    %146 = arith.mulf %144, %145 : vector<16x128xf32>
    %cst_100 = arith.constant 5.000000e-01 : f32
    %147 = vector.broadcast %cst_100 : f32 to vector<16x128xf32>
    %148 = arith.mulf %147, %137 : vector<16x128xf32>
    %149 = math.tanh %148 : vector<16x128xf32>
    %cst_101 = arith.constant 5.000000e-01 : f32
    %150 = vector.broadcast %cst_101 : f32 to vector<16x128xf32>
    %151 = arith.mulf %150, %149 : vector<16x128xf32>
    %cst_102 = arith.constant 5.000000e-01 : f32
    %152 = vector.broadcast %cst_102 : f32 to vector<16x128xf32>
    %153 = arith.addf %151, %152 : vector<16x128xf32>
    %154 = math.tanh %146 : vector<16x128xf32>
    %155 = arith.mulf %153, %154 : vector<16x128xf32>
    %c16_103 = arith.constant 16 : index
    %c0_104 = arith.constant 0 : index
    %156 = vector.load %arg16[%c16_103, %c0_104] : memref<32x128xf32, #tpu.memory_space<vmem>>, vector<16x128xf32>
    tpu.vector_store %arg16[%c16_103, %c0_104], %146 {strides = array<i32>} : memref<32x128xf32, #tpu.memory_space<vmem>>, vector<16x128xf32>,
    %157 = arith.truncf %155 : vector<16x128xf32> to vector<16x128xbf16>
    %c32_105 = arith.constant 32 : index
    %c0_106 = arith.constant 0 : index
    %158 = vector.load %arg14[%c32_105, %c0_106] : memref<56x128xbf16, #tpu.memory_space<vmem>>, vector<16x128xbf16>
    tpu.vector_store %arg14[%c32_105, %c0_106], %157 {strides = array<i32>} : memref<56x128xbf16, #tpu.memory_space<vmem>>, vector<16x128xbf16>,
    %c0_107 = arith.constant 0 : index
    %c0_108 = arith.constant 0 : index
    %159 = vector.load %arg12[%c0_107, %c0_108] : memref<40x512xf32, #tpu.memory_space<vmem>>, vector<40x512xf32>
    %c7_109 = arith.constant 7 : index
    %c0_110 = arith.constant 0 : index
    %160 = vector.load %arg13[%c7_109, %c0_110] : memref<56x128xbf16, #tpu.memory_space<vmem>>, vector<40x128xbf16>
    %c0_111 = arith.constant 0 : index
    %c0_112 = arith.constant 0 : index
    %c0_113 = arith.constant 0 : index
    %161 = vector.load %arg3[%c0_111, %c0_112, %c0_113] : memref<3x128x512xbf16, #tpu.memory_space<vmem>>, vector<1x128x512xbf16>
    %162 = vector.shape_cast %161 : vector<1x128x512xbf16> to vector<128x512xbf16>
    %cst_114 = arith.constant dense<0.000000e+00> : vector<40x512xf32>
    %163 = tpu.matmul %160, %162, %cst_114 {dimension_numbers = #tpu.dot_dimension_numbers<[1], [0], [0], [1], [0, 0, 1, 1], [], []>} : vector<40x128xbf16>, vector<128x512xbf16>, vector<40x512xf32> -> vector<40x512xf32>
    %c8_115 = arith.constant 8 : index
    %c0_116 = arith.constant 0 : index
    %164 = vector.load %arg13[%c8_115, %c0_116] : memref<56x128xbf16, #tpu.memory_space<vmem>>, vector<40x128xbf16>
    %c1_117 = arith.constant 1 : index
    %c0_118 = arith.constant 0 : index
    %c0_119 = arith.constant 0 : index
    %165 = vector.load %arg3[%c1_117, %c0_118, %c0_119] : memref<3x128x512xbf16, #tpu.memory_space<vmem>>, vector<1x128x512xbf16>
    %166 = vector.shape_cast %165 : vector<1x128x512xbf16> to vector<128x512xbf16>
    %cst_120 = arith.constant dense<0.000000e+00> : vector<40x512xf32>
    %167 = tpu.matmul %164, %166, %cst_120 {dimension_numbers = #tpu.dot_dimension_numbers<[1], [0], [0], [1], [0, 0, 1, 1], [], []>} : vector<40x128xbf16>, vector<128x512xbf16>, vector<40x512xf32> -> vector<40x512xf32>
    %168 = arith.addf %163, %167 : vector<40x512xf32>
    %c9_121 = arith.constant 9 : index
    %c0_122 = arith.constant 0 : index
    %169 = vector.load %arg13[%c9_121, %c0_122] : memref<56x128xbf16, #tpu.memory_space<vmem>>, vector<40x128xbf16>
    %c2_123 = arith.constant 2 : index
    %c0_124 = arith.constant 0 : index
    %c0_125 = arith.constant 0 : index
    %170 = vector.load %arg3[%c2_123, %c0_124, %c0_125] : memref<3x128x512xbf16, #tpu.memory_space<vmem>>, vector<1x128x512xbf16>
    %171 = vector.shape_cast %170 : vector<1x128x512xbf16> to vector<128x512xbf16>
    %cst_126 = arith.constant dense<0.000000e+00> : vector<40x512xf32>
    %172 = tpu.matmul %169, %171, %cst_126 {dimension_numbers = #tpu.dot_dimension_numbers<[1], [0], [0], [1], [0, 0, 1, 1], [], []>} : vector<40x128xbf16>, vector<128x512xbf16>, vector<40x512xf32> -> vector<40x512xf32>
    %173 = arith.addf %168, %172 : vector<40x512xf32>
    %174 = arith.addf %159, %173 : vector<40x512xf32>
    %175 = vector.extract_strided_slice %174 {offsets = [0, 0], sizes = [16, 512], strides = [1, 1]} : vector<40x512xf32> to vector<16x512xf32>
    %176 = vector.extract_strided_slice %175 {offsets = [0, 0], sizes = [16, 128], strides = [1, 1]} : vector<16x512xf32> to vector<16x128xf32>
    %177 = vector.extract_strided_slice %175 {offsets = [0, 128], sizes = [16, 128], strides = [1, 1]} : vector<16x512xf32> to vector<16x128xf32>
    %178 = vector.extract_strided_slice %175 {offsets = [0, 256], sizes = [16, 128], strides = [1, 1]} : vector<16x512xf32> to vector<16x128xf32>
    %179 = vector.extract_strided_slice %175 {offsets = [0, 384], sizes = [16, 128], strides = [1, 1]} : vector<16x512xf32> to vector<16x128xf32>
    %c0_127 = arith.constant 0 : index
    %c0_128 = arith.constant 0 : index
    %180 = vector.load %arg15[%c0_127, %c0_128] : memref<32x128xf32, #tpu.memory_space<vmem>>, vector<16x128xf32>
    %cst_129 = arith.constant 5.000000e-01 : f32
    %181 = vector.broadcast %cst_129 : f32 to vector<16x128xf32>
    %182 = arith.mulf %181, %177 : vector<16x128xf32>
    %183 = math.tanh %182 : vector<16x128xf32>
    %cst_130 = arith.constant 5.000000e-01 : f32
    %184 = vector.broadcast %cst_130 : f32 to vector<16x128xf32>
    %185 = arith.mulf %184, %183 : vector<16x128xf32>
    %cst_131 = arith.constant 5.000000e-01 : f32
    %186 = vector.broadcast %cst_131 : f32 to vector<16x128xf32>
    %187 = arith.addf %185, %186 : vector<16x128xf32>
    %188 = arith.mulf %187, %180 : vector<16x128xf32>
    %cst_132 = arith.constant 5.000000e-01 : f32
    %189 = vector.broadcast %cst_132 : f32 to vector<16x128xf32>
    %190 = arith.mulf %189, %176 : vector<16x128xf32>
    %191 = math.tanh %190 : vector<16x128xf32>
    %cst_133 = arith.constant 5.000000e-01 : f32
    %192 = vector.broadcast %cst_133 : f32 to vector<16x128xf32>
    %193 = arith.mulf %192, %191 : vector<16x128xf32>
    %cst_134 = arith.constant 5.000000e-01 : f32
    %194 = vector.broadcast %cst_134 : f32 to vector<16x128xf32>
    %195 = arith.addf %193, %194 : vector<16x128xf32>
    %196 = math.tanh %178 : vector<16x128xf32>
    %197 = arith.mulf %195, %196 : vector<16x128xf32>
    %198 = arith.addf %188, %197 : vector<16x128xf32>
    %cst_135 = arith.constant 5.000000e-01 : f32
    %199 = vector.broadcast %cst_135 : f32 to vector<16x128xf32>
    %200 = arith.mulf %199, %179 : vector<16x128xf32>
    %201 = math.tanh %200 : vector<16x128xf32>
    %cst_136 = arith.constant 5.000000e-01 : f32
    %202 = vector.broadcast %cst_136 : f32 to vector<16x128xf32>
    %203 = arith.mulf %202, %201 : vector<16x128xf32>
    %cst_137 = arith.constant 5.000000e-01 : f32
    %204 = vector.broadcast %cst_137 : f32 to vector<16x128xf32>
    %205 = arith.addf %203, %204 : vector<16x128xf32>
    %206 = math.tanh %198 : vector<16x128xf32>
    %207 = arith.mulf %205, %206 : vector<16x128xf32>
    %c0_138 = arith.constant 0 : index
    %c0_139 = arith.constant 0 : index
    %208 = vector.load %arg15[%c0_138, %c0_139] : memref<32x128xf32, #tpu.memory_space<vmem>>, vector<16x128xf32>
    tpu.vector_store %arg15[%c0_138, %c0_139], %198 {strides = array<i32>} : memref<32x128xf32, #tpu.memory_space<vmem>>, vector<16x128xf32>,
    %209 = arith.truncf %207 : vector<16x128xf32> to vector<16x128xbf16>
    %c8_140 = arith.constant 8 : index
    %c0_141 = arith.constant 0 : index
    %210 = vector.load %arg13[%c8_140, %c0_141] : memref<56x128xbf16, #tpu.memory_space<vmem>>, vector<16x128xbf16>
    tpu.vector_store %arg13[%c8_140, %c0_141], %209 {strides = array<i32>} : memref<56x128xbf16, #tpu.memory_space<vmem>>, vector<16x128xbf16>,
    %211 = vector.extract_strided_slice %174 {offsets = [24, 0], sizes = [16, 512], strides = [1, 1]} : vector<40x512xf32> to vector<16x512xf32>
    %212 = vector.extract_strided_slice %211 {offsets = [0, 0], sizes = [16, 128], strides = [1, 1]} : vector<16x512xf32> to vector<16x128xf32>
    %213 = vector.extract_strided_slice %211 {offsets = [0, 128], sizes = [16, 128], strides = [1, 1]} : vector<16x512xf32> to vector<16x128xf32>
    %214 = vector.extract_strided_slice %211 {offsets = [0, 256], sizes = [16, 128], strides = [1, 1]} : vector<16x512xf32> to vector<16x128xf32>
    %215 = vector.extract_strided_slice %211 {offsets = [0, 384], sizes = [16, 128], strides = [1, 1]} : vector<16x512xf32> to vector<16x128xf32>
    %c16_142 = arith.constant 16 : index
    %c0_143 = arith.constant 0 : index
    %216 = vector.load %arg15[%c16_142, %c0_143] : memref<32x128xf32, #tpu.memory_space<vmem>>, vector<16x128xf32>
    %cst_144 = arith.constant 5.000000e-01 : f32
    %217 = vector.broadcast %cst_144 : f32 to vector<16x128xf32>
    %218 = arith.mulf %217, %213 : vector<16x128xf32>
    %219 = math.tanh %218 : vector<16x128xf32>
    %cst_145 = arith.constant 5.000000e-01 : f32
    %220 = vector.broadcast %cst_145 : f32 to vector<16x128xf32>
    %221 = arith.mulf %220, %219 : vector<16x128xf32>
    %cst_146 = arith.constant 5.000000e-01 : f32
    %222 = vector.broadcast %cst_146 : f32 to vector<16x128xf32>
    %223 = arith.addf %221, %222 : vector<16x128xf32>
    %224 = arith.mulf %223, %216 : vector<16x128xf32>
    %cst_147 = arith.constant 5.000000e-01 : f32
    %225 = vector.broadcast %cst_147 : f32 to vector<16x128xf32>
    %226 = arith.mulf %225, %212 : vector<16x128xf32>
    %227 = math.tanh %226 : vector<16x128xf32>
    %cst_148 = arith.constant 5.000000e-01 : f32
    %228 = vector.broadcast %cst_148 : f32 to vector<16x128xf32>
    %229 = arith.mulf %228, %227 : vector<16x128xf32>
    %cst_149 = arith.constant 5.000000e-01 : f32
    %230 = vector.broadcast %cst_149 : f32 to vector<16x128xf32>
    %231 = arith.addf %229, %230 : vector<16x128xf32>
    %232 = math.tanh %214 : vector<16x128xf32>
    %233 = arith.mulf %231, %232 : vector<16x128xf32>
    %234 = arith.addf %224, %233 : vector<16x128xf32>
    %cst_150 = arith.constant 5.000000e-01 : f32
    %235 = vector.broadcast %cst_150 : f32 to vector<16x128xf32>
    %236 = arith.mulf %235, %215 : vector<16x128xf32>
    %237 = math.tanh %236 : vector<16x128xf32>
    %cst_151 = arith.constant 5.000000e-01 : f32
    %238 = vector.broadcast %cst_151 : f32 to vector<16x128xf32>
    %239 = arith.mulf %238, %237 : vector<16x128xf32>
    %cst_152 = arith.constant 5.000000e-01 : f32
    %240 = vector.broadcast %cst_152 : f32 to vector<16x128xf32>
    %241 = arith.addf %239, %240 : vector<16x128xf32>
    %242 = math.tanh %234 : vector<16x128xf32>
    %243 = arith.mulf %241, %242 : vector<16x128xf32>
    %c16_153 = arith.constant 16 : index
    %c0_154 = arith.constant 0 : index
    %244 = vector.load %arg15[%c16_153, %c0_154] : memref<32x128xf32, #tpu.memory_space<vmem>>, vector<16x128xf32>
    tpu.vector_store %arg15[%c16_153, %c0_154], %234 {strides = array<i32>} : memref<32x128xf32, #tpu.memory_space<vmem>>, vector<16x128xf32>,
    %245 = arith.truncf %243 : vector<16x128xf32> to vector<16x128xbf16>
    %c32_155 = arith.constant 32 : index
    %c0_156 = arith.constant 0 : index
    %246 = vector.load %arg13[%c32_155, %c0_156] : memref<56x128xbf16, #tpu.memory_space<vmem>>, vector<16x128xbf16>
    tpu.vector_store %arg13[%c32_155, %c0_156], %245 {strides = array<i32>} : memref<56x128xbf16, #tpu.memory_space<vmem>>, vector<16x128xbf16>,
    %c7_157 = arith.constant 7 : index
    %c0_158 = arith.constant 0 : index
    %247 = vector.load %arg13[%c7_157, %c0_158] : memref<56x128xbf16, #tpu.memory_space<vmem>>, vector<40x128xbf16>
    %c0_159 = arith.constant 0 : index
    %c0_160 = arith.constant 0 : index
    %c0_161 = arith.constant 0 : index
    %248 = vector.load %arg5[%c0_159, %c0_160, %c0_161] : memref<3x128x512xbf16, #tpu.memory_space<vmem>>, vector<1x128x512xbf16>
    %249 = vector.shape_cast %248 : vector<1x128x512xbf16> to vector<128x512xbf16>
    %cst_162 = arith.constant dense<0.000000e+00> : vector<40x512xf32>
    %250 = tpu.matmul %247, %249, %cst_162 {dimension_numbers = #tpu.dot_dimension_numbers<[1], [0], [0], [1], [0, 0, 1, 1], [], []>} : vector<40x128xbf16>, vector<128x512xbf16>, vector<40x512xf32> -> vector<40x512xf32>
    %c8_163 = arith.constant 8 : index
    %c0_164 = arith.constant 0 : index
    %251 = vector.load %arg13[%c8_163, %c0_164] : memref<56x128xbf16, #tpu.memory_space<vmem>>, vector<40x128xbf16>
    %c1_165 = arith.constant 1 : index
    %c0_166 = arith.constant 0 : index
    %c0_167 = arith.constant 0 : index
    %252 = vector.load %arg5[%c1_165, %c0_166, %c0_167] : memref<3x128x512xbf16, #tpu.memory_space<vmem>>, vector<1x128x512xbf16>
    %253 = vector.shape_cast %252 : vector<1x128x512xbf16> to vector<128x512xbf16>
    %cst_168 = arith.constant dense<0.000000e+00> : vector<40x512xf32>
    %254 = tpu.matmul %251, %253, %cst_168 {dimension_numbers = #tpu.dot_dimension_numbers<[1], [0], [0], [1], [0, 0, 1, 1], [], []>} : vector<40x128xbf16>, vector<128x512xbf16>, vector<40x512xf32> -> vector<40x512xf32>
    %255 = arith.addf %250, %254 : vector<40x512xf32>
    %c9_169 = arith.constant 9 : index
    %c0_170 = arith.constant 0 : index
    %256 = vector.load %arg13[%c9_169, %c0_170] : memref<56x128xbf16, #tpu.memory_space<vmem>>, vector<40x128xbf16>
    %c2_171 = arith.constant 2 : index
    %c0_172 = arith.constant 0 : index
    %c0_173 = arith.constant 0 : index
    %257 = vector.load %arg5[%c2_171, %c0_172, %c0_173] : memref<3x128x512xbf16, #tpu.memory_space<vmem>>, vector<1x128x512xbf16>
    %258 = vector.shape_cast %257 : vector<1x128x512xbf16> to vector<128x512xbf16>
    %cst_174 = arith.constant dense<0.000000e+00> : vector<40x512xf32>
    %259 = tpu.matmul %256, %258, %cst_174 {dimension_numbers = #tpu.dot_dimension_numbers<[1], [0], [0], [1], [0, 0, 1, 1], [], []>} : vector<40x128xbf16>, vector<128x512xbf16>, vector<40x512xf32> -> vector<40x512xf32>
    %260 = arith.addf %255, %259 : vector<40x512xf32>
    %261 = vector.broadcast %41 : vector<1x512xf32> to vector<40x512xf32>
    %262 = arith.addf %260, %261 : vector<40x512xf32>
    %c7_175 = arith.constant 7 : index
    %c0_176 = arith.constant 0 : index
    %263 = vector.load %arg14[%c7_175, %c0_176] : memref<56x128xbf16, #tpu.memory_space<vmem>>, vector<40x128xbf16>
    %c0_177 = arith.constant 0 : index
    %c0_178 = arith.constant 0 : index
    %c0_179 = arith.constant 0 : index
    %264 = vector.load %arg6[%c0_177, %c0_178, %c0_179] : memref<3x128x512xbf16, #tpu.memory_space<vmem>>, vector<1x128x512xbf16>
    %265 = vector.shape_cast %264 : vector<1x128x512xbf16> to vector<128x512xbf16>
    %cst_180 = arith.constant dense<0.000000e+00> : vector<40x512xf32>
    %266 = tpu.matmul %263, %265, %cst_180 {dimension_numbers = #tpu.dot_dimension_numbers<[1], [0], [0], [1], [0, 0, 1, 1], [], []>} : vector<40x128xbf16>, vector<128x512xbf16>, vector<40x512xf32> -> vector<40x512xf32>
    %c8_181 = arith.constant 8 : index
    %c0_182 = arith.constant 0 : index
    %267 = vector.load %arg14[%c8_181, %c0_182] : memref<56x128xbf16, #tpu.memory_space<vmem>>, vector<40x128xbf16>
    %c1_183 = arith.constant 1 : index
    %c0_184 = arith.constant 0 : index
    %c0_185 = arith.constant 0 : index
    %268 = vector.load %arg6[%c1_183, %c0_184, %c0_185] : memref<3x128x512xbf16, #tpu.memory_space<vmem>>, vector<1x128x512xbf16>
    %269 = vector.shape_cast %268 : vector<1x128x512xbf16> to vector<128x512xbf16>
    %cst_186 = arith.constant dense<0.000000e+00> : vector<40x512xf32>
    %270 = tpu.matmul %267, %269, %cst_186 {dimension_numbers = #tpu.dot_dimension_numbers<[1], [0], [0], [1], [0, 0, 1, 1], [], []>} : vector<40x128xbf16>, vector<128x512xbf16>, vector<40x512xf32> -> vector<40x512xf32>
    %271 = arith.addf %266, %270 : vector<40x512xf32>
    %c9_187 = arith.constant 9 : index
    %c0_188 = arith.constant 0 : index
    %272 = vector.load %arg14[%c9_187, %c0_188] : memref<56x128xbf16, #tpu.memory_space<vmem>>, vector<40x128xbf16>
    %c2_189 = arith.constant 2 : index
    %c0_190 = arith.constant 0 : index
    %c0_191 = arith.constant 0 : index
    %273 = vector.load %arg6[%c2_189, %c0_190, %c0_191] : memref<3x128x512xbf16, #tpu.memory_space<vmem>>, vector<1x128x512xbf16>
    %274 = vector.shape_cast %273 : vector<1x128x512xbf16> to vector<128x512xbf16>
    %cst_192 = arith.constant dense<0.000000e+00> : vector<40x512xf32>
    %275 = tpu.matmul %272, %274, %cst_192 {dimension_numbers = #tpu.dot_dimension_numbers<[1], [0], [0], [1], [0, 0, 1, 1], [], []>} : vector<40x128xbf16>, vector<128x512xbf16>, vector<40x512xf32> -> vector<40x512xf32>
    %276 = arith.addf %271, %275 : vector<40x512xf32>
    %277 = arith.addf %262, %276 : vector<40x512xf32>
    %278 = vector.extract_strided_slice %277 {offsets = [0, 0], sizes = [16, 512], strides = [1, 1]} : vector<40x512xf32> to vector<16x512xf32>
    %279 = vector.extract_strided_slice %278 {offsets = [0, 0], sizes = [16, 128], strides = [1, 1]} : vector<16x512xf32> to vector<16x128xf32>
    %280 = vector.extract_strided_slice %278 {offsets = [0, 128], sizes = [16, 128], strides = [1, 1]} : vector<16x512xf32> to vector<16x128xf32>
    %281 = vector.extract_strided_slice %278 {offsets = [0, 256], sizes = [16, 128], strides = [1, 1]} : vector<16x512xf32> to vector<16x128xf32>
    %282 = vector.extract_strided_slice %278 {offsets = [0, 384], sizes = [16, 128], strides = [1, 1]} : vector<16x512xf32> to vector<16x128xf32>
    %c0_193 = arith.constant 0 : index
    %c0_194 = arith.constant 0 : index
    %283 = vector.load %arg16[%c0_193, %c0_194] : memref<32x128xf32, #tpu.memory_space<vmem>>, vector<16x128xf32>
    %cst_195 = arith.constant 5.000000e-01 : f32
    %284 = vector.broadcast %cst_195 : f32 to vector<16x128xf32>
    %285 = arith.mulf %284, %280 : vector<16x128xf32>
    %286 = math.tanh %285 : vector<16x128xf32>
    %cst_196 = arith.constant 5.000000e-01 : f32
    %287 = vector.broadcast %cst_196 : f32 to vector<16x128xf32>
    %288 = arith.mulf %287, %286 : vector<16x128xf32>
    %cst_197 = arith.constant 5.000000e-01 : f32
    %289 = vector.broadcast %cst_197 : f32 to vector<16x128xf32>
    %290 = arith.addf %288, %289 : vector<16x128xf32>
    %291 = arith.mulf %290, %283 : vector<16x128xf32>
    %cst_198 = arith.constant 5.000000e-01 : f32
    %292 = vector.broadcast %cst_198 : f32 to vector<16x128xf32>
    %293 = arith.mulf %292, %279 : vector<16x128xf32>
    %294 = math.tanh %293 : vector<16x128xf32>
    %cst_199 = arith.constant 5.000000e-01 : f32
    %295 = vector.broadcast %cst_199 : f32 to vector<16x128xf32>
    %296 = arith.mulf %295, %294 : vector<16x128xf32>
    %cst_200 = arith.constant 5.000000e-01 : f32
    %297 = vector.broadcast %cst_200 : f32 to vector<16x128xf32>
    %298 = arith.addf %296, %297 : vector<16x128xf32>
    %299 = math.tanh %281 : vector<16x128xf32>
    %300 = arith.mulf %298, %299 : vector<16x128xf32>
    %301 = arith.addf %291, %300 : vector<16x128xf32>
    %cst_201 = arith.constant 5.000000e-01 : f32
    %302 = vector.broadcast %cst_201 : f32 to vector<16x128xf32>
    %303 = arith.mulf %302, %282 : vector<16x128xf32>
    %304 = math.tanh %303 : vector<16x128xf32>
    %cst_202 = arith.constant 5.000000e-01 : f32
    %305 = vector.broadcast %cst_202 : f32 to vector<16x128xf32>
    %306 = arith.mulf %305, %304 : vector<16x128xf32>
    %cst_203 = arith.constant 5.000000e-01 : f32
    %307 = vector.broadcast %cst_203 : f32 to vector<16x128xf32>
    %308 = arith.addf %306, %307 : vector<16x128xf32>
    %309 = math.tanh %301 : vector<16x128xf32>
    %310 = arith.mulf %308, %309 : vector<16x128xf32>
    %c0_204 = arith.constant 0 : index
    %c0_205 = arith.constant 0 : index
    %311 = vector.load %arg16[%c0_204, %c0_205] : memref<32x128xf32, #tpu.memory_space<vmem>>, vector<16x128xf32>
    tpu.vector_store %arg16[%c0_204, %c0_205], %301 {strides = array<i32>} : memref<32x128xf32, #tpu.memory_space<vmem>>, vector<16x128xf32>,
    %312 = arith.truncf %310 : vector<16x128xf32> to vector<16x128xbf16>
    %c8_206 = arith.constant 8 : index
    %c0_207 = arith.constant 0 : index
    %313 = vector.load %arg14[%c8_206, %c0_207] : memref<56x128xbf16, #tpu.memory_space<vmem>>, vector<16x128xbf16>
    tpu.vector_store %arg14[%c8_206, %c0_207], %312 {strides = array<i32>} : memref<56x128xbf16, #tpu.memory_space<vmem>>, vector<16x128xbf16>,
    %c0_208 = arith.constant 0 : index
    %c0_209 = arith.constant 0 : index
    %c0_210 = arith.constant 0 : index
    %c0_211 = arith.constant 0 : index
    %314 = vector.load %arg8[%c0_208, %c0_209, %c0_210, %c0_211] : memref<1x2x16x128xf32, #tpu.memory_space<vmem>>, vector<1x1x16x128xf32>
    %315 = vector.shape_cast %314 : vector<1x1x16x128xf32> to vector<16x128xf32>
    %316 = vector.shape_cast %310 : vector<16x128xf32> to vector<1x1x16x128xf32>
    tpu.vector_store %arg8[%c0_208, %c0_209, %c0_210, %c0_211], %316 {strides = array<i32>} : memref<1x2x16x128xf32, #tpu.memory_space<vmem>>, vector<1x1x16x128xf32>,
    %c0_212 = arith.constant 0 : index
    %c0_213 = arith.constant 0 : index
    %c0_214 = arith.constant 0 : index
    %317 = vector.load %arg9[%c0_212, %c0_213, %c0_214] : memref<2x16x128xf32, #tpu.memory_space<vmem>>, vector<1x16x128xf32>
    %318 = vector.shape_cast %317 : vector<1x16x128xf32> to vector<16x128xf32>
    %319 = vector.shape_cast %310 : vector<16x128xf32> to vector<1x16x128xf32>
    tpu.vector_store %arg9[%c0_212, %c0_213, %c0_214], %319 {strides = array<i32>} : memref<2x16x128xf32, #tpu.memory_space<vmem>>, vector<1x16x128xf32>,
    %c0_215 = arith.constant 0 : index
    %c0_216 = arith.constant 0 : index
    %c0_217 = arith.constant 0 : index
    %320 = vector.load %arg10[%c0_215, %c0_216, %c0_217] : memref<2x16x128xf32, #tpu.memory_space<vmem>>, vector<1x16x128xf32>
    %321 = vector.shape_cast %320 : vector<1x16x128xf32> to vector<16x128xf32>
    %322 = vector.shape_cast %301 : vector<16x128xf32> to vector<1x16x128xf32>
    tpu.vector_store %arg10[%c0_215, %c0_216, %c0_217], %322 {strides = array<i32>} : memref<2x16x128xf32, #tpu.memory_space<vmem>>, vector<1x16x128xf32>,
    %323 = vector.extract_strided_slice %277 {offsets = [24, 0], sizes = [16, 512], strides = [1, 1]} : vector<40x512xf32> to vector<16x512xf32>
    %324 = vector.extract_strided_slice %323 {offsets = [0, 0], sizes = [16, 128], strides = [1, 1]} : vector<16x512xf32> to vector<16x128xf32>
    %325 = vector.extract_strided_slice %323 {offsets = [0, 128], sizes = [16, 128], strides = [1, 1]} : vector<16x512xf32> to vector<16x128xf32>
    %326 = vector.extract_strided_slice %323 {offsets = [0, 256], sizes = [16, 128], strides = [1, 1]} : vector<16x512xf32> to vector<16x128xf32>
    %327 = vector.extract_strided_slice %323 {offsets = [0, 384], sizes = [16, 128], strides = [1, 1]} : vector<16x512xf32> to vector<16x128xf32>
    %c16_218 = arith.constant 16 : index
    %c0_219 = arith.constant 0 : index
    %328 = vector.load %arg16[%c16_218, %c0_219] : memref<32x128xf32, #tpu.memory_space<vmem>>, vector<16x128xf32>
    %cst_220 = arith.constant 5.000000e-01 : f32
    %329 = vector.broadcast %cst_220 : f32 to vector<16x128xf32>
    %330 = arith.mulf %329, %325 : vector<16x128xf32>
    %331 = math.tanh %330 : vector<16x128xf32>
    %cst_221 = arith.constant 5.000000e-01 : f32
    %332 = vector.broadcast %cst_221 : f32 to vector<16x128xf32>
    %333 = arith.mulf %332, %331 : vector<16x128xf32>
    %cst_222 = arith.constant 5.000000e-01 : f32
    %334 = vector.broadcast %cst_222 : f32 to vector<16x128xf32>
    %335 = arith.addf %333, %334 : vector<16x128xf32>
    %336 = arith.mulf %335, %328 : vector<16x128xf32>
    %cst_223 = arith.constant 5.000000e-01 : f32
    %337 = vector.broadcast %cst_223 : f32 to vector<16x128xf32>
    %338 = arith.mulf %337, %324 : vector<16x128xf32>
    %339 = math.tanh %338 : vector<16x128xf32>
    %cst_224 = arith.constant 5.000000e-01 : f32
    %340 = vector.broadcast %cst_224 : f32 to vector<16x128xf32>
    %341 = arith.mulf %340, %339 : vector<16x128xf32>
    %cst_225 = arith.constant 5.000000e-01 : f32
    %342 = vector.broadcast %cst_225 : f32 to vector<16x128xf32>
    %343 = arith.addf %341, %342 : vector<16x128xf32>
    %344 = math.tanh %326 : vector<16x128xf32>
    %345 = arith.mulf %343, %344 : vector<16x128xf32>
    %346 = arith.addf %336, %345 : vector<16x128xf32>
    %cst_226 = arith.constant 5.000000e-01 : f32
    %347 = vector.broadcast %cst_226 : f32 to vector<16x128xf32>
    %348 = arith.mulf %347, %327 : vector<16x128xf32>
    %349 = math.tanh %348 : vector<16x128xf32>
    %cst_227 = arith.constant 5.000000e-01 : f32
    %350 = vector.broadcast %cst_227 : f32 to vector<16x128xf32>
    %351 = arith.mulf %350, %349 : vector<16x128xf32>
    %cst_228 = arith.constant 5.000000e-01 : f32
    %352 = vector.broadcast %cst_228 : f32 to vector<16x128xf32>
    %353 = arith.addf %351, %352 : vector<16x128xf32>
    %354 = math.tanh %346 : vector<16x128xf32>
    %355 = arith.mulf %353, %354 : vector<16x128xf32>
    %c16_229 = arith.constant 16 : index
    %c0_230 = arith.constant 0 : index
    %356 = vector.load %arg16[%c16_229, %c0_230] : memref<32x128xf32, #tpu.memory_space<vmem>>, vector<16x128xf32>
    tpu.vector_store %arg16[%c16_229, %c0_230], %346 {strides = array<i32>} : memref<32x128xf32, #tpu.memory_space<vmem>>, vector<16x128xf32>,
    %357 = arith.truncf %355 : vector<16x128xf32> to vector<16x128xbf16>
    %c32_231 = arith.constant 32 : index
    %c0_232 = arith.constant 0 : index
    %358 = vector.load %arg14[%c32_231, %c0_232] : memref<56x128xbf16, #tpu.memory_space<vmem>>, vector<16x128xbf16>
    tpu.vector_store %arg14[%c32_231, %c0_232], %357 {strides = array<i32>} : memref<56x128xbf16, #tpu.memory_space<vmem>>, vector<16x128xbf16>,
    %c0_233 = arith.constant 0 : index
    %c1_234 = arith.constant 1 : index
    %c0_235 = arith.constant 0 : index
    %c0_236 = arith.constant 0 : index
    %359 = vector.load %arg8[%c0_233, %c1_234, %c0_235, %c0_236] : memref<1x2x16x128xf32, #tpu.memory_space<vmem>>, vector<1x1x16x128xf32>
    %360 = vector.shape_cast %359 : vector<1x1x16x128xf32> to vector<16x128xf32>
    %361 = vector.shape_cast %355 : vector<16x128xf32> to vector<1x1x16x128xf32>
    tpu.vector_store %arg8[%c0_233, %c1_234, %c0_235, %c0_236], %361 {strides = array<i32>} : memref<1x2x16x128xf32, #tpu.memory_space<vmem>>, vector<1x1x16x128xf32>,
    %c1_237 = arith.constant 1 : index
    %c0_238 = arith.constant 0 : index
    %c0_239 = arith.constant 0 : index
    %362 = vector.load %arg9[%c1_237, %c0_238, %c0_239] : memref<2x16x128xf32, #tpu.memory_space<vmem>>, vector<1x16x128xf32>
    %363 = vector.shape_cast %362 : vector<1x16x128xf32> to vector<16x128xf32>
    %364 = vector.shape_cast %355 : vector<16x128xf32> to vector<1x16x128xf32>
    tpu.vector_store %arg9[%c1_237, %c0_238, %c0_239], %364 {strides = array<i32>} : memref<2x16x128xf32, #tpu.memory_space<vmem>>, vector<1x16x128xf32>,
    %c1_240 = arith.constant 1 : index
    %c0_241 = arith.constant 0 : index
    %c0_242 = arith.constant 0 : index
    %365 = vector.load %arg10[%c1_240, %c0_241, %c0_242] : memref<2x16x128xf32, #tpu.memory_space<vmem>>, vector<1x16x128xf32>
    %366 = vector.shape_cast %365 : vector<1x16x128xf32> to vector<16x128xf32>
    %367 = vector.shape_cast %346 : vector<16x128xf32> to vector<1x16x128xf32>
    tpu.vector_store %arg10[%c1_240, %c0_241, %c0_242], %367 {strides = array<i32>} : memref<2x16x128xf32, #tpu.memory_space<vmem>>, vector<1x16x128xf32>,
    return
  }
  func.func @transform_0(%arg0: i32) -> (i32, i32, i32) {
    %c0_i32 = arith.constant 0 : i32
    %c0_i32_0 = arith.constant 0 : i32
    %c0_i32_1 = arith.constant 0 : i32
    return %arg0, %c0_i32, %c0_i32_0 : i32, i32, i32
  }
  func.func @transform_1(%arg0: i32) -> (i32, i32, i32) {
    %c0_i32 = arith.constant 0 : i32
    %c0_i32_0 = arith.constant 0 : i32
    %c0_i32_1 = arith.constant 0 : i32
    %c0_i32_2 = arith.constant 0 : i32
    return %c0_i32, %c0_i32_0, %c0_i32_1 : i32, i32, i32
  }
  func.func @transform_2(%arg0: i32) -> (i32, i32, i32) {
    %c0_i32 = arith.constant 0 : i32
    %c0_i32_0 = arith.constant 0 : i32
    %c0_i32_1 = arith.constant 0 : i32
    %c0_i32_2 = arith.constant 0 : i32
    return %c0_i32, %c0_i32_0, %c0_i32_1 : i32, i32, i32
  }
  func.func @transform_3(%arg0: i32) -> (i32, i32) {
    %c0_i32 = arith.constant 0 : i32
    %c0_i32_0 = arith.constant 0 : i32
    %c0_i32_1 = arith.constant 0 : i32
    return %c0_i32, %c0_i32_0 : i32, i32
  }
  func.func @transform_4(%arg0: i32) -> (i32, i32, i32) {
    %c0_i32 = arith.constant 0 : i32
    %c0_i32_0 = arith.constant 0 : i32
    %c0_i32_1 = arith.constant 0 : i32
    %c0_i32_2 = arith.constant 0 : i32
    return %c0_i32, %c0_i32_0, %c0_i32_1 : i32, i32, i32
  }
  func.func @transform_5(%arg0: i32) -> (i32, i32, i32) {
    %c0_i32 = arith.constant 0 : i32
    %c0_i32_0 = arith.constant 0 : i32
    %c0_i32_1 = arith.constant 0 : i32
    %c0_i32_2 = arith.constant 0 : i32
    return %c0_i32, %c0_i32_0, %c0_i32_1 : i32, i32, i32
  }
  func.func @transform_6(%arg0: i32) -> (i32, i32) {
    %c0_i32 = arith.constant 0 : i32
    %c0_i32_0 = arith.constant 0 : i32
    %c0_i32_1 = arith.constant 0 : i32
    return %c0_i32, %c0_i32_0 : i32, i32
  }
  func.func @transform_7(%arg0: i32) -> (i32, i32, i32, i32) {
    %c0_i32 = arith.constant 0 : i32
    %c0_i32_0 = arith.constant 0 : i32
    %c0_i32_1 = arith.constant 0 : i32
    %c0_i32_2 = arith.constant 0 : i32
    return %c0_i32, %arg0, %c0_i32_0, %c0_i32_1 : i32, i32, i32, i32
  }
  func.func @transform_8(%arg0: i32) -> (i32, i32, i32) {
    %c0_i32 = arith.constant 0 : i32
    %c0_i32_0 = arith.constant 0 : i32
    %c0_i32_1 = arith.constant 0 : i32
    return %arg0, %c0_i32, %c0_i32_0 : i32, i32, i32
  }
  func.func @transform_9(%arg0: i32) -> (i32, i32, i32) {
    %c0_i32 = arith.constant 0 : i32
    %c0_i32_0 = arith.constant 0 : i32
    %c0_i32_1 = arith.constant 0 : i32
    return %arg0, %c0_i32, %c0_i32_0 : i32, i32, i32
  }
}

</mosaic_0001>

<llo_original>
// kernel: forward.1
$region0: #{forward.1}
  #allocation0 [shape = 'u32[]', space=smem, size = 0x4, offset = 0x4, fixed_abs, tag = 'smem constant byte address 0x4 - core index']
  #allocation1 [shape = 'u32[72,128]{1,0:T(1,128)}', space=vmem, size = 0x9000, scoped, tag = 'internal scratch']
  #allocation2 [shape = 'bf16[56,64]{1,0:T(8,128)(2,1)}', space=vmem, size = 0x3800, scoped, tag = 'scratch operand']
  #allocation3 [shape = 'f32[40,512]{1,0:T(8,128)}', space=vmem, size = 0x14000, scoped, tag = 'scratch operand']
  #allocation4 [shape = 'bf16[56,128]{1,0:T(8,128)(2,1)}', space=vmem, size = 0x3800, scoped, tag = 'scratch operand']
  #allocation5 [shape = 'bf16[56,128]{1,0:T(8,128)(2,1)}', space=vmem, size = 0x3800, scoped, tag = 'scratch operand']
  #allocation6 [shape = 'f32[32,128]{1,0:T(8,128)}', space=vmem, size = 0x4000, scoped, tag = 'scratch operand']
  #allocation7 [shape = 'f32[32,128]{1,0:T(8,128)}', space=vmem, size = 0x4000, scoped, tag = 'scratch operand']
  %s0 = inlined_call_operand.vmem [shape: f32[4,16,64], index: 0, kind: input, shape index: {}]
  %s1 = inlined_call_operand.hbm [shape: bf16[3,64,512], index: 1, kind: input, shape index: {}]
  %s2 = inlined_call_operand.hbm [shape: bf16[3,128,512], index: 2, kind: input, shape index: {}]
  %s3 = inlined_call_operand.vmem [shape: f32[1,512], index: 3, kind: input, shape index: {}]
  %s4 = inlined_call_operand.hbm [shape: bf16[3,128,512], index: 4, kind: input, shape index: {}]
  %s5 = inlined_call_operand.vmem [shape: bf16[3,128,512], index: 5, kind: input, shape index: {}]
  %s6 = inlined_call_operand.vmem [shape: f32[1,512], index: 6, kind: input, shape index: {}]
  %s7 = inlined_call_operand.vmem [shape: f32[1,4,16,128], index: 7, kind: output, shape index: {0}]
  %s8 = inlined_call_operand.vmem [shape: f32[4,16,128], index: 8, kind: output, shape index: {1}]
  %s9 = inlined_call_operand.vmem [shape: f32[4,16,128], index: 9, kind: output, shape index: {2}]
  %10 = xla_tuple %s7, %s8, %s9
  %s11 = sld [smem:[#allocation0]]
  $region89: #{forward.1} parent=0
    _
  %s13 = ssub.s32 1, %s11
  %s14 = scalar_select 0, %s13, %s11
  $region1: #{forward.1} parent=0
    #allocation8 [shape = 'u8[196608]{0}', space=vmem, size = 0x30000, scoped, tag = 'input window, operand 1, single buffered']
    #allocation9 [shape = 's32[2]{0}', space=sflag, size = 0x8, scoped, tag = 'scoped memory for forward.1']
    #allocation10 [shape = 'u8[393216]{0}', space=vmem, size = 0x60000, scoped, tag = 'input window, operand 2, single buffered']
    #allocation11 [shape = 's32[1]{0}', space=sflag, size = 0x4, scoped, tag = 'scoped memory for forward.1']
    #allocation12 [shape = 'u8[393216]{0}', space=vmem, size = 0x60000, scoped, tag = 'input window, operand 4, single buffered']
    %15 = vsyncpa [#allocation9], 0
    %16 = vsyncpa [#allocation11], 0
    loop: start=0, step=1, limit=4
    $region2: #{forward.1} parent=1 // loop_pre_header
      _
    $region3: #{forward.1} parent=1 // loop_header
      %s18 = sphi 0, %s22
      %p19 = scmp.ge.s32.totalorder %s18, 4
      %s28 = sphi 0, %s30
      %s31 = sphi 0, %s28
      %s32 = sphi 0, %s31
      %s48 = sphi 0, %s32
      %s52 = sphi 0, %s52
      %s54 = sphi 0, %s52
      %s55 = sphi 0, %s54
      %s69 = sphi 0, %s55
      %s73 = sphi 0, %s73
      %s75 = sphi 0, %s73
      %s76 = sphi 0, %s75
      %s90 = sphi 0, %s76
      %s94 = sphi 0, %s94
      %s96 = sphi 0, %s94
      %s97 = sphi 0, %s96
      %s111 = sphi 0, %s97
      %s115 = sphi 0, %s115
      %s117 = sphi 0, %s115
      %s118 = sphi 0, %s117
      %s132 = sphi 0, %s118
      %s136 = sphi 0, %s136
      %s138 = sphi 0, %s136
      %s139 = sphi 0, %s138
      %s153 = sphi 0, %s139
      %s157 = sphi 0, %s157
      %s159 = sphi 0, %s157
      %s160 = sphi 0, %s159
      %s174 = sphi 0, %s160
      %s180 = sphi 0, %s182
      %s183 = sphi 0, %s180
      %s184 = sphi 0, %s183
      %s200 = sphi 0, %s184
      %s206 = sphi 0, %s208
      %s209 = sphi 0, %s206
      %s210 = sphi 0, %s209
      %s226 = sphi 0, %s210
      %s232 = sphi 0, %s234
      %s235 = sphi 0, %s232
      %s236 = sphi 0, %s235
      %s252 = sphi 0, %s236
    $region4: #{forward.1} parent=1 // loop_header_branch
      %21 = sbr.rel (%p19) target = $region8
    $region5: #{forward.1} parent=1 // loop_body
      %s23 = ssub.s32 %s18, 1
      %s24 = ssub.s32 %s18, 2
      %s25 = sadd.s32 %s18, 1
      %s26 = ssub.s32 %s18, %s25
      %p27 = scmp.eq.s32.totalorder %s26, 0
      %s29 = sadd.s32 %s28, 1
      %s30 = scalar_select %p27, %s28, %s29
      %p33 = pneg %p27
      %p34 = scmp.eq.s32.totalorder %s18, 1
      %p35 = por %p33, %p34
      %p36 = scmp.ne.s32.totalorder %s28, %s31
      %p37 = scmp.eq.s32.totalorder %s18, 0
      %p38 = por %p36, %p37
      %p39 = scmp.ne.s32.totalorder %s28, %s31
      %p40 = scmp.eq.s32.totalorder %s23, 1
      %p41 = por %p39, %p40
      %p42 = scmp.ne.s32.totalorder %s31, %s32
      %p43 = scmp.eq.s32.totalorder %s23, 0
      %p44 = por %p42, %p43
      %p45 = scmp.ne.s32.totalorder %s31, %s32
      %p46 = scmp.eq.s32.totalorder %s24, 1
      %p47 = por %p45, %p46
      %p49 = scmp.ne.s32.totalorder %s32, %s48
      %p50 = scmp.eq.s32.totalorder %s24, 0
      %p51 = por %p49, %p50
      %s53 = sadd.s32 %s52, 1
      %p56 = scmp.eq.s32.totalorder %s18, 1
      %p57 = scmp.ne.s32.totalorder %s52, %s54
      %p58 = scmp.eq.s32.totalorder %s18, 0
      %p59 = por %p57, %p58
      %p60 = scmp.ne.s32.totalorder %s52, %s54
      %p61 = scmp.eq.s32.totalorder %s23, 1
      %p62 = por %p60, %p61
      %p63 = scmp.ne.s32.totalorder %s54, %s55
      %p64 = scmp.eq.s32.totalorder %s23, 0
      %p65 = por %p63, %p64
      %p66 = scmp.ne.s32.totalorder %s54, %s55
      %p67 = scmp.eq.s32.totalorder %s24, 1
      %p68 = por %p66, %p67
      %p70 = scmp.ne.s32.totalorder %s55, %s69
      %p71 = scmp.eq.s32.totalorder %s24, 0
      %p72 = por %p70, %p71
      %s74 = sadd.s32 %s73, 1
      %p77 = scmp.eq.s32.totalorder %s18, 1
      %p78 = scmp.ne.s32.totalorder %s73, %s75
      %p79 = scmp.eq.s32.totalorder %s18, 0
      %p80 = por %p78, %p79
      %p81 = scmp.ne.s32.totalorder %s73, %s75
      %p82 = scmp.eq.s32.totalorder %s23, 1
      %p83 = por %p81, %p82
      %p84 = scmp.ne.s32.totalorder %s75, %s76
      %p85 = scmp.eq.s32.totalorder %s23, 0
      %p86 = por %p84, %p85
      %p87 = scmp.ne.s32.totalorder %s75, %s76
      %p88 = scmp.eq.s32.totalorder %s24, 1
      %p89 = por %p87, %p88
      %p91 = scmp.ne.s32.totalorder %s76, %s90
      %p92 = scmp.eq.s32.totalorder %s24, 0
      %p93 = por %p91, %p92
      %s95 = sadd.s32 %s94, 1
      %p98 = scmp.eq.s32.totalorder %s18, 1
      %p99 = scmp.ne.s32.totalorder %s94, %s96
      %p100 = scmp.eq.s32.totalorder %s18, 0
      %p101 = por %p99, %p100
      %p102 = scmp.ne.s32.totalorder %s94, %s96
      %p103 = scmp.eq.s32.totalorder %s23, 1
      %p104 = por %p102, %p103
      %p105 = scmp.ne.s32.totalorder %s96, %s97
      %p106 = scmp.eq.s32.totalorder %s23, 0
      %p107 = por %p105, %p106
      %p108 = scmp.ne.s32.totalorder %s96, %s97
      %p109 = scmp.eq.s32.totalorder %s24, 1
      %p110 = por %p108, %p109
      %p112 = scmp.ne.s32.totalorder %s97, %s111
      %p113 = scmp.eq.s32.totalorder %s24, 0
      %p114 = por %p112, %p113
      %s116 = sadd.s32 %s115, 1
      %p119 = scmp.eq.s32.totalorder %s18, 1
      %p120 = scmp.ne.s32.totalorder %s115, %s117
      %p121 = scmp.eq.s32.totalorder %s18, 0
      %p122 = por %p120, %p121
      %p123 = scmp.ne.s32.totalorder %s115, %s117
      %p124 = scmp.eq.s32.totalorder %s23, 1
      %p125 = por %p123, %p124
      %p126 = scmp.ne.s32.totalorder %s117, %s118
      %p127 = scmp.eq.s32.totalorder %s23, 0
      %p128 = por %p126, %p127
      %p129 = scmp.ne.s32.totalorder %s117, %s118
      %p130 = scmp.eq.s32.totalorder %s24, 1
      %p131 = por %p129, %p130
      %p133 = scmp.ne.s32.totalorder %s118, %s132
      %p134 = scmp.eq.s32.totalorder %s24, 0
      %p135 = por %p133, %p134
      %s137 = sadd.s32 %s136, 1
      %p140 = scmp.eq.s32.totalorder %s18, 1
      %p141 = scmp.ne.s32.totalorder %s136, %s138
      %p142 = scmp.eq.s32.totalorder %s18, 0
      %p143 = por %p141, %p142
      %p144 = scmp.ne.s32.totalorder %s136, %s138
      %p145 = scmp.eq.s32.totalorder %s23, 1
      %p146 = por %p144, %p145
      %p147 = scmp.ne.s32.totalorder %s138, %s139
      %p148 = scmp.eq.s32.totalorder %s23, 0
      %p149 = por %p147, %p148
      %p150 = scmp.ne.s32.totalorder %s138, %s139
      %p151 = scmp.eq.s32.totalorder %s24, 1
      %p152 = por %p150, %p151
      %p154 = scmp.ne.s32.totalorder %s139, %s153
      %p155 = scmp.eq.s32.totalorder %s24, 0
      %p156 = por %p154, %p155
      %s158 = sadd.s32 %s157, 1
      %p161 = scmp.eq.s32.totalorder %s18, 1
      %p162 = scmp.ne.s32.totalorder %s157, %s159
      %p163 = scmp.eq.s32.totalorder %s18, 0
      %p164 = por %p162, %p163
      %p165 = scmp.ne.s32.totalorder %s157, %s159
      %p166 = scmp.eq.s32.totalorder %s23, 1
      %p167 = por %p165, %p166
      %p168 = scmp.ne.s32.totalorder %s159, %s160
      %p169 = scmp.eq.s32.totalorder %s23, 0
      %p170 = por %p168, %p169
      %p171 = scmp.ne.s32.totalorder %s159, %s160
      %p172 = scmp.eq.s32.totalorder %s24, 1
      %p173 = por %p171, %p172
      %p175 = scmp.ne.s32.totalorder %s160, %s174
      %p176 = scmp.eq.s32.totalorder %s24, 0
      %p177 = por %p175, %p176
      %s178 = ssub.s32 %s18, %s25
      %p179 = scmp.eq.s32.totalorder %s178, 0
      %s181 = sadd.s32 %s180, 1
      %s182 = scalar_select %p179, %s180, %s181
      %p185 = pneg %p179
      %p186 = scmp.eq.s32.totalorder %s18, 1
      %p187 = por %p185, %p186
      %p188 = scmp.ne.s32.totalorder %s180, %s183
      %p189 = scmp.eq.s32.totalorder %s18, 0
      %p190 = por %p188, %p189
      %p191 = scmp.ne.s32.totalorder %s180, %s183
      %p192 = scmp.eq.s32.totalorder %s23, 1
      %p193 = por %p191, %p192
      %p194 = scmp.ne.s32.totalorder %s183, %s184
      %p195 = scmp.eq.s32.totalorder %s23, 0
      %p196 = por %p194, %p195
      %p197 = scmp.ne.s32.totalorder %s183, %s184
      %p198 = scmp.eq.s32.totalorder %s24, 1
      %p199 = por %p197, %p198
      %p201 = scmp.ne.s32.totalorder %s184, %s200
      %p202 = scmp.eq.s32.totalorder %s24, 0
      %p203 = por %p201, %p202
      %s204 = ssub.s32 %s18, %s25
      %p205 = scmp.eq.s32.totalorder %s204, 0
      %s207 = sadd.s32 %s206, 1
      %s208 = scalar_select %p205, %s206, %s207
      %p211 = pneg %p205
      %p212 = scmp.eq.s32.totalorder %s18, 1
      %p213 = por %p211, %p212
      %p214 = scmp.ne.s32.totalorder %s206, %s209
      %p215 = scmp.eq.s32.totalorder %s18, 0
      %p216 = por %p214, %p215
      %p217 = scmp.ne.s32.totalorder %s206, %s209
      %p218 = scmp.eq.s32.totalorder %s23, 1
      %p219 = por %p217, %p218
      %p220 = scmp.ne.s32.totalorder %s209, %s210
      %p221 = scmp.eq.s32.totalorder %s23, 0
      %p222 = por %p220, %p221
      %p223 = scmp.ne.s32.totalorder %s209, %s210
      %p224 = scmp.eq.s32.totalorder %s24, 1
      %p225 = por %p223, %p224
      %p227 = scmp.ne.s32.totalorder %s210, %s226
      %p228 = scmp.eq.s32.totalorder %s24, 0
      %p229 = por %p227, %p228
      %s230 = ssub.s32 %s18, %s25
      %p231 = scmp.eq.s32.totalorder %s230, 0
      %s233 = sadd.s32 %s232, 1
      %s234 = scalar_select %p231, %s232, %s233
      %p237 = pneg %p231
      %p238 = scmp.eq.s32.totalorder %s18, 1
      %p239 = por %p237, %p238
      %p240 = scmp.ne.s32.totalorder %s232, %s235
      %p241 = scmp.eq.s32.totalorder %s18, 0
      %p242 = por %p240, %p241
      %p243 = scmp.ne.s32.totalorder %s232, %s235
      %p244 = scmp.eq.s32.totalorder %s23, 1
      %p245 = por %p243, %p244
      %p246 = scmp.ne.s32.totalorder %s235, %s236
      %p247 = scmp.eq.s32.totalorder %s23, 0
      %p248 = por %p246, %p247
      %p249 = scmp.ne.s32.totalorder %s235, %s236
      %p250 = scmp.eq.s32.totalorder %s24, 1
      %p251 = por %p249, %p250
      %p253 = scmp.ne.s32.totalorder %s236, %s252
      %p254 = scmp.eq.s32.totalorder %s24, 0
      %p255 = por %p253, %p254
      %p256 = scmp.le.s32.totalorder 1, %s18
      %p257 = scmp.lt.s32.totalorder %s18, 3
      %p258 = pnand %p256, %p257
      %p259 = pneg %p258
      // Predicated region
      $region9: #{forward.1} parent=5 // pred_check
        _
      $region10: #{forward.1} parent=5 // pred_check_branch
        %261 = sbr.rel (%p258) target = $region12
      $region11: #{forward.1} parent=5 // pred_region
        %s262 = ssub.s32 %s18, 1
        // Predicated region
        $region13: #{forward.1} parent=11 // pred_check
          %p263 = pneg %p65
        $region14: #{forward.1} parent=11 // pred_check_branch
          %265 = sbr.rel (%p263) target = $region16
        $region15: #{forward.1} parent=11 // pred_region
          %267 = vsyncadd [#allocation9], 0
          %s268 = sshll.u32 %s1, 4
          %s269 = int_to_ptr.hbm [resolvable:$true] %s268
          %s270 = sshll.u32 [#allocation8], 4
          %s271 = int_to_ptr.vmem [resolvable:$true] %s270
          %276 = dma.hbm_to_vmem [thread:$0]  %s269, 6144, %s271, [#allocation9], 256, 256, 16
        $region16: #{forward.1} parent=11 // pred_fallthru
          _
        // Predicated region
        $region17: #{forward.1} parent=11 // pred_check
          %p277 = pneg %p86
        $region18: #{forward.1} parent=11 // pred_check_branch
          %279 = sbr.rel (%p277) target = $region20
        $region19: #{forward.1} parent=11 // pred_region
          %281 = vsyncadd [#allocation11], 0
          %s282 = sshll.u32 %s2, 4
          %s283 = int_to_ptr.hbm [resolvable:$true] %s282
          %s284 = sshll.u32 [#allocation10], 4
          %s285 = int_to_ptr.vmem [resolvable:$true] %s284
          %290 = dma.hbm_to_vmem [thread:$0]  %s283, 12288, %s285, [#allocation11], 256, 256, 16
        $region20: #{forward.1} parent=11 // pred_fallthru
          _
        // Predicated region
        $region21: #{forward.1} parent=11 // pred_check
          %p291 = pneg %p107
        $region22: #{forward.1} parent=11 // pred_check_branch
          %293 = sbr.rel (%p291) target = $region24
        $region23: #{forward.1} parent=11 // pred_region
          _
        $region24: #{forward.1} parent=11 // pred_fallthru
          _
        // Predicated region
        $region25: #{forward.1} parent=11 // pred_check
          %p294 = pneg %p128
        $region26: #{forward.1} parent=11 // pred_check_branch
          %296 = sbr.rel (%p294) target = $region28
        $region27: #{forward.1} parent=11 // pred_region
          %298 = vsyncadd [#allocation11], 0
          %s299 = sshll.u32 %s4, 4
          %s300 = int_to_ptr.hbm [resolvable:$true] %s299
          %s301 = sshll.u32 [#allocation12], 4
          %s302 = int_to_ptr.vmem [resolvable:$true] %s301
          %307 = dma.hbm_to_vmem [thread:$0]  %s300, 12288, %s302, [#allocation11], 256, 256, 16
        $region28: #{forward.1} parent=11 // pred_fallthru
          _
        // Predicated region
        $region29: #{forward.1} parent=11 // pred_check
          %p308 = pneg %p149
        $region30: #{forward.1} parent=11 // pred_check_branch
          %310 = sbr.rel (%p308) target = $region32
        $region31: #{forward.1} parent=11 // pred_region
          _
        $region32: #{forward.1} parent=11 // pred_fallthru
          _
        // Predicated region
        $region33: #{forward.1} parent=11 // pred_check
          %p311 = pneg %p170
        $region34: #{forward.1} parent=11 // pred_check_branch
          %313 = sbr.rel (%p311) target = $region36
        $region35: #{forward.1} parent=11 // pred_region
          _
        $region36: #{forward.1} parent=11 // pred_fallthru
          _
      $region12: #{forward.1} parent=5 // pred_fallthru
        _
      %p314 = scmp.lt.s32.totalorder %s18, 2
      // Predicated region
      $region37: #{forward.1} parent=5 // pred_check
        %p315 = pneg %p314
      $region38: #{forward.1} parent=5 // pred_check_branch
        %317 = sbr.rel (%p315) target = $region40
      $region39: #{forward.1} parent=5 // pred_region
        // Predicated region
        $region41: #{forward.1} parent=39 // pred_check
          %p318 = pneg %p38
        $region42: #{forward.1} parent=39 // pred_check_branch
          %320 = sbr.rel (%p318) target = $region44
        $region43: #{forward.1} parent=39 // pred_region
          %s321 = smul.u32 2, %s18
          %p322 = scmp.lt.s32.totalorder %s321, 3
          %s323 = scalar_select %p322, %s321, 3
          %s324 = smul.addr %s323, 2
          %s325 = smul.addr %s324, 8
          %s326 = scalar_lea.vmem %s0, %s325
          %s327 = smul.u32 2, %s18
        $region44: #{forward.1} parent=39 // pred_fallthru
          _
      $region40: #{forward.1} parent=5 // pred_fallthru
        _
      %p328 = scmp.le.s32.totalorder 1, %s18
      %p329 = scmp.lt.s32.totalorder %s18, 3
      %p330 = pnand %p328, %p329
      %p331 = pneg %p330
      // Predicated region
      $region45: #{forward.1} parent=5 // pred_check
        _
      $region46: #{forward.1} parent=5 // pred_check_branch
        %333 = sbr.rel (%p330) target = $region48
      $region47: #{forward.1} parent=5 // pred_region
        %s334 = ssub.s32 %s18, 1
        // Predicated region
        $region49: #{forward.1} parent=47 // pred_check
          %p335 = pneg %p65
        $region50: #{forward.1} parent=47 // pred_check_branch
          %337 = sbr.rel (%p335) target = $region52
        $region51: #{forward.1} parent=47 // pred_region
          %339 = dma.done [#allocation9], 6144
        $region52: #{forward.1} parent=47 // pred_fallthru
          _
        // Predicated region
        $region53: #{forward.1} parent=47 // pred_check
          %p340 = pneg %p86
        $region54: #{forward.1} parent=47 // pred_check_branch
          %342 = sbr.rel (%p340) target = $region56
        $region55: #{forward.1} parent=47 // pred_region
          %344 = dma.done [#allocation11], 12288
        $region56: #{forward.1} parent=47 // pred_fallthru
          _
        // Predicated region
        $region57: #{forward.1} parent=47 // pred_check
          %p345 = pneg %p128
        $region58: #{forward.1} parent=47 // pred_check_branch
          %347 = sbr.rel (%p345) target = $region60
        $region59: #{forward.1} parent=47 // pred_region
          %349 = dma.done [#allocation11], 12288
        $region60: #{forward.1} parent=47 // pred_fallthru
          _
        %s350 = smul.u32 2, %s23
        %p351 = scmp.lt.s32.totalorder %s350, 3
        %s352 = scalar_select %p351, %s350, 3
        %s353 = smul.addr %s352, 2
        %s354 = smul.addr %s353, 8
        %s355 = scalar_lea.vmem %s0, %s354
        %p356 = pneg %p44
        %p357 = pneg %p41
        %p358 = pneg %p65
        %p359 = pneg %p62
        %p360 = pneg %p86
        %p361 = pneg %p83
        %p362 = pneg %p107
        %p363 = pneg %p104
        %p364 = pneg %p128
        %p365 = pneg %p125
        %p366 = pneg %p149
        %p367 = pneg %p146
        %p368 = pneg %p170
        %p369 = pneg %p167
        %p370 = pneg %p196
        %p371 = pneg %p193
        %s372 = smul.u32 2, %s23
        %p373 = scmp.lt.s32.totalorder %s372, 3
        %s374 = scalar_select %p373, %s372, 3
        %s375 = smul.addr %s374, 2
        %s376 = smul.addr %s375, 8
        %s377 = scalar_lea.vmem %s7, %s376
        %p378 = pneg %p222
        %p379 = pneg %p219
        %s380 = smul.u32 2, %s23
        %p381 = scmp.lt.s32.totalorder %s380, 3
        %s382 = scalar_select %p381, %s380, 3
        %s383 = smul.addr %s382, 2
        %s384 = smul.addr %s383, 8
        %s385 = scalar_lea.vmem %s8, %s384
        %p386 = pneg %p248
        %p387 = pneg %p245
        %s388 = smul.u32 2, %s23
        %p389 = scmp.lt.s32.totalorder %s388, 3
        %s390 = scalar_select %p389, %s388, 3
        %s391 = smul.addr %s390, 2
        %s392 = smul.addr %s391, 8
        %s393 = scalar_lea.vmem %s9, %s392
        %s394 = smul.u32 2, %s23
        %p395 = scmp.lt.s32.totalorder %s394, 3
        %s396 = scalar_select %p395, %s394, 3
        %s397 = smul.addr %s396, 2
        %s398 = smul.addr %s397, 8
        %s399 = scalar_lea.vmem %s0, %s398
        %s400 = smul.u32 2, %s23
        %s401 = smul.u32 2, %s23
        %p402 = scmp.lt.s32.totalorder %s401, 3
        %s403 = scalar_select %p402, %s401, 3
        %s404 = smul.addr %s403, 2
        %s405 = smul.addr %s404, 8
        %s406 = scalar_lea.vmem %s7, %s405
        %s407 = smul.u32 2, %s23
        %s408 = smul.u32 2, %s23
        %p409 = scmp.lt.s32.totalorder %s408, 3
        %s410 = scalar_select %p409, %s408, 3
        %s411 = smul.addr %s410, 2
        %s412 = smul.addr %s411, 8
        %s413 = scalar_lea.vmem %s8, %s412
        %s414 = smul.u32 2, %s23
        %s415 = smul.u32 2, %s23
        %p416 = scmp.lt.s32.totalorder %s415, 3
        %s417 = scalar_select %p416, %s415, 3
        %s418 = smul.addr %s417, 2
        %s419 = smul.addr %s418, 8
        %s420 = scalar_lea.vmem %s9, %s419
        %s421 = smul.u32 2, %s23
        %vm423 = vcmask 519168
        %424 = vst.msk [vmem:[#allocation2] sm:$0xf] %vm423, 0
        %425 = vst.msk [vmem:[#allocation2 + $0xc] sm:$0xf] %vm423, 0
        %426 = vst.msk [vmem:[#allocation2 + $0x18] sm:$0xf] %vm423, 0
        %427 = vst [vmem:[#allocation4] sm:$0xf] 0
        %428 = vst [vmem:[#allocation4 + $0xc] sm:$0xf] 0
        %429 = vst [vmem:[#allocation4 + $0x18] sm:$0xf] 0
        %430 = vst [vmem:[#allocation5] sm:$0xf] 0
        %431 = vst [vmem:[#allocation5 + $0xc] sm:$0xf] 0
        %432 = vst [vmem:[#allocation5 + $0x18] sm:$0xf] 0
        %v433 = vld [vmem:[%s399] sm:$0xff]
        %v434 = vld [vmem:[%s399 + $0x8] sm:$0xff]
        %v435 = vpack.c.bf16 %v433, %v433
        %v436 = vpack.c.bf16 %v434, %v434
        %437 = vst.msk [vmem:[#allocation2 + $0x4] sm:$0xf] %vm423, %v435
        %438 = vst.msk [vmem:[#allocation2 + $0x8] sm:$0xf] %vm423, %v436
        %s439 = scalar_lea.vmem %s399, 16
        %v440 = vld [vmem:[%s439] sm:$0xff]
        %v441 = vld [vmem:[%s439 + $0x8] sm:$0xff]
        %v442 = vpack.c.bf16 %v440, %v440
        %v443 = vpack.c.bf16 %v441, %v441
        %444 = vst.msk [vmem:[#allocation2 + $0x10] sm:$0xf] %vm423, %v442
        %445 = vst.msk [vmem:[#allocation2 + $0x14] sm:$0xf] %vm423, %v443
        %v446 = vld [vmem:[#allocation2] sm:$0x8]
        %v447 = vld [vmem:[#allocation2 + $0x4] sm:$0xf]
        %v448 = vld [vmem:[#allocation2 + $0x8] sm:$0xf]
        %v449 = vld [vmem:[#allocation2 + $0xc] sm:$0xf]
        %v450 = vld [vmem:[#allocation2 + $0x10] sm:$0xf]
        %v451 = vld [vmem:[#allocation2 + $0x14] sm:$0xf]
        %v452 = vld [vmem:[#allocation8] sm:$0xff]
        %v453 = vld [vmem:[#allocation8 + $0x8] sm:$0xff]
        %v454 = vld [vmem:[#allocation8 + $0x10] sm:$0xff]
        %v455 = vld [vmem:[#allocation8 + $0x18] sm:$0xff]
        %v456 = vld [vmem:[#allocation8 + $0x20] sm:$0xff]
        %v457 = vld [vmem:[#allocation8 + $0x28] sm:$0xff]
        %v458 = vld [vmem:[#allocation8 + $0x30] sm:$0xff]
        %v459 = vld [vmem:[#allocation8 + $0x38] sm:$0xff]
        %v460 = vld [vmem:[#allocation8 + $0x40] sm:$0xff]
        %v461 = vld [vmem:[#allocation8 + $0x48] sm:$0xff]
        %v462 = vld [vmem:[#allocation8 + $0x50] sm:$0xff]
        %v463 = vld [vmem:[#allocation8 + $0x58] sm:$0xff]
        %v464 = vld [vmem:[#allocation8 + $0x60] sm:$0xff]
        %v465 = vld [vmem:[#allocation8 + $0x68] sm:$0xff]
        %v466 = vld [vmem:[#allocation8 + $0x70] sm:$0xff]
        %v467 = vld [vmem:[#allocation8 + $0x78] sm:$0xff]
        %s468 = scalar_lea.vmem [#allocation8], 128
        %v469 = vld [vmem:[%s468] sm:$0xff]
        %v470 = vld [vmem:[%s468 + $0x8] sm:$0xff]
        %v471 = vld [vmem:[%s468 + $0x10] sm:$0xff]
        %v472 = vld [vmem:[%s468 + $0x18] sm:$0xff]
        %v473 = vld [vmem:[%s468 + $0x20] sm:$0xff]
        %v474 = vld [vmem:[%s468 + $0x28] sm:$0xff]
        %v475 = vld [vmem:[%s468 + $0x30] sm:$0xff]
        %v476 = vld [vmem:[%s468 + $0x38] sm:$0xff]
        %v477 = vld [vmem:[%s468 + $0x40] sm:$0xff]
        %v478 = vld [vmem:[%s468 + $0x48] sm:$0xff]
        %v479 = vld [vmem:[%s468 + $0x50] sm:$0xff]
        %v480 = vld [vmem:[%s468 + $0x58] sm:$0xff]
        %v481 = vld [vmem:[%s468 + $0x60] sm:$0xff]
        %v482 = vld [vmem:[%s468 + $0x68] sm:$0xff]
        %v483 = vld [vmem:[%s468 + $0x70] sm:$0xff]
        %v484 = vld [vmem:[%s468 + $0x78] sm:$0xff]
        %v490 = vunpack.c.l.b16 %v447
        %v491 = vunpack.c.l.b16 %v448
        %v492 = vunpack.c.l.b16 %v449
        %v493 = vunpack.c.l.b16 %v450
        %v494 = vunpack.c.l.b16 %v451
        %v495 = vpack.c.b16 %v491, %v490
        %v496 = vpack.c.b16 %v493, %v492
        %v497 = vpack.c.b16 %v494, %v494
        %v514 = vunpack.c.l.b16 %v469
        %v515 = vunpack.c.h.b16 %v469
        %v516 = vunpack.c.l.b16 %v470
        %v517 = vunpack.c.h.b16 %v470
        %v518 = vunpack.c.l.b16 %v471
        %v519 = vunpack.c.h.b16 %v471
        %v520 = vunpack.c.l.b16 %v472
        %v521 = vunpack.c.h.b16 %v472
        %v522 = vunpack.c.l.b16 %v473
        %v523 = vunpack.c.h.b16 %v473
        %v524 = vunpack.c.l.b16 %v474
        %v525 = vunpack.c.h.b16 %v474
        %v526 = vunpack.c.l.b16 %v475
        %v527 = vunpack.c.h.b16 %v475
        %v528 = vunpack.c.l.b16 %v476
        %v529 = vunpack.c.h.b16 %v476
        %v530 = vunpack.c.l.b16 %v477
        %v531 = vunpack.c.h.b16 %v477
        %v532 = vunpack.c.l.b16 %v478
        %v533 = vunpack.c.h.b16 %v478
        %v534 = vunpack.c.l.b16 %v479
        %v535 = vunpack.c.h.b16 %v479
        %v536 = vunpack.c.l.b16 %v480
        %v537 = vunpack.c.h.b16 %v480
        %v538 = vunpack.c.l.b16 %v481
        %v539 = vunpack.c.h.b16 %v481
        %v540 = vunpack.c.l.b16 %v482
        %v541 = vunpack.c.h.b16 %v482
        %v542 = vunpack.c.l.b16 %v483
        %v543 = vunpack.c.h.b16 %v483
        %v544 = vunpack.c.l.b16 %v484
        %v545 = vunpack.c.h.b16 %v484
        %v546 = vpack.c.b16 %v518, %v514
        %v547 = vpack.c.b16 %v519, %v515
        %v548 = vpack.c.b16 %v520, %v516
        %v549 = vpack.c.b16 %v521, %v517
        %v550 = vpack.c.b16 %v526, %v522
        %v551 = vpack.c.b16 %v527, %v523
        %v552 = vpack.c.b16 %v528, %v524
        %v553 = vpack.c.b16 %v529, %v525
        %v554 = vpack.c.b16 %v534, %v530
        %v555 = vpack.c.b16 %v535, %v531
        %v556 = vpack.c.b16 %v536, %v532
        %v557 = vpack.c.b16 %v537, %v533
        %v558 = vpack.c.b16 %v542, %v538
        %v559 = vpack.c.b16 %v543, %v539
        %v560 = vpack.c.b16 %v544, %v540
        %v561 = vpack.c.b16 %v545, %v541
        %vm578 = vcmask 523264
        %v580 = vsel %vm578, %v495, 0
        %v583 = vsel %vm578, %v496, 0
        %v586 = vsel %vm578, %v497, 0
        %588 = vmatpush.bf16.msra.mxu0 0
        %589 = vmatpush.bf16.msra.mxu0 0
        %590 = vmatpush.bf16.msra.mxu0 0
        %591 = vmatpush.bf16.msra.mxu0 0
        %592 = vmatpush.bf16.msra.mxu0 %v558
        %593 = vmatpush.bf16.msra.mxu0 %v554
        %594 = vmatpush.bf16.msra.mxu0 %v550
        %595 = vmatpush.bf16.msra.mxu0 %v546
        %596 = vmatmul.bf16.gmra.mxu0 %v580
        %v597 = vpop.f32.mrf.mxu0
        %v598 = vadd.f32 0.0, %v597
        %v599 = vpop.f32.mrf.mxu0
        %v600 = vadd.f32 0.0, %v599
        %601 = vmatmul.bf16.gmra.mxu0 %v583
        %v602 = vpop.f32.mrf.mxu0
        %v603 = vadd.f32 0.0, %v602
        %v604 = vpop.f32.mrf.mxu0
        %v605 = vadd.f32 0.0, %v604
        %606 = vmatmul.bf16.gmra.mxu0 %v586
        %v607 = vpop.f32.mrf.mxu0
        %v608 = vadd.f32 0.0, %v607
        %v609 = vpop.f32.mrf.mxu0
        %610 = vdwg.mxu0
        %611 = vmatpush.bf16.msra.mxu0 0
        %612 = vmatpush.bf16.msra.mxu0 0
        %613 = vmatpush.bf16.msra.mxu0 0
        %614 = vmatpush.bf16.msra.mxu0 0
        %615 = vmatpush.bf16.msra.mxu0 %v559
        %616 = vmatpush.bf16.msra.mxu0 %v555
        %617 = vmatpush.bf16.msra.mxu0 %v551
        %618 = vmatpush.bf16.msra.mxu0 %v547
        %619 = vmatmul.bf16.gmra.mxu0 %v580
        %v620 = vpop.f32.mrf.mxu0
        %v621 = vadd.f32 0.0, %v620
        %v622 = vpop.f32.mrf.mxu0
        %v623 = vadd.f32 0.0, %v622
        %624 = vmatmul.bf16.gmra.mxu0 %v583
        %v625 = vpop.f32.mrf.mxu0
        %v626 = vadd.f32 0.0, %v625
        %v627 = vpop.f32.mrf.mxu0
        %v628 = vadd.f32 0.0, %v627
        %629 = vmatmul.bf16.gmra.mxu0 %v586
        %v630 = vpop.f32.mrf.mxu0
        %v631 = vadd.f32 0.0, %v630
        %v632 = vpop.f32.mrf.mxu0
        %633 = vdwg.mxu0
        %634 = vmatpush.bf16.msra.mxu0 0
        %635 = vmatpush.bf16.msra.mxu0 0
        %636 = vmatpush.bf16.msra.mxu0 0
        %637 = vmatpush.bf16.msra.mxu0 0
        %638 = vmatpush.bf16.msra.mxu0 %v560
        %639 = vmatpush.bf16.msra.mxu0 %v556
        %640 = vmatpush.bf16.msra.mxu0 %v552
        %641 = vmatpush.bf16.msra.mxu0 %v548
        %642 = vmatmul.bf16.gmra.mxu0 %v580
        %v643 = vpop.f32.mrf.mxu0
        %v644 = vadd.f32 0.0, %v643
        %v645 = vpop.f32.mrf.mxu0
        %v646 = vadd.f32 0.0, %v645
        %647 = vmatmul.bf16.gmra.mxu0 %v583
        %v648 = vpop.f32.mrf.mxu0
        %v649 = vadd.f32 0.0, %v648
        %v650 = vpop.f32.mrf.mxu0
        %v651 = vadd.f32 0.0, %v650
        %652 = vmatmul.bf16.gmra.mxu0 %v586
        %v653 = vpop.f32.mrf.mxu0
        %v654 = vadd.f32 0.0, %v653
        %v655 = vpop.f32.mrf.mxu0
        %656 = vdwg.mxu0
        %657 = vmatpush.bf16.msra.mxu0 0
        %658 = vmatpush.bf16.msra.mxu0 0
        %659 = vmatpush.bf16.msra.mxu0 0
        %660 = vmatpush.bf16.msra.mxu0 0
        %661 = vmatpush.bf16.msra.mxu0 %v561
        %662 = vmatpush.bf16.msra.mxu0 %v557
        %663 = vmatpush.bf16.msra.mxu0 %v553
        %664 = vmatpush.bf16.msra.mxu0 %v549
        %665 = vmatmul.bf16.gmra.mxu0 %v580
        %v666 = vpop.f32.mrf.mxu0
        %v667 = vadd.f32 0.0, %v666
        %v668 = vpop.f32.mrf.mxu0
        %v669 = vadd.f32 0.0, %v668
        %670 = vmatmul.bf16.gmra.mxu0 %v583
        %v671 = vpop.f32.mrf.mxu0
        %v672 = vadd.f32 0.0, %v671
        %v673 = vpop.f32.mrf.mxu0
        %v674 = vadd.f32 0.0, %v673
        %675 = vmatmul.bf16.gmra.mxu0 %v586
        %v676 = vpop.f32.mrf.mxu0
        %v677 = vadd.f32 0.0, %v676
        %v678 = vpop.f32.mrf.mxu0
        %679 = vdwg.mxu0
        %v681 = vunpack.c.l.b16 %v446
        %v682 = vpack.c.b16 %v490, %v681
        %v683 = vpack.c.b16 %v492, %v491
        %v684 = vpack.c.b16 %v494, %v493
        %vm685 = vsmask.f32 4352
        %v687 = vshrl.u32 %v682, 16
        %v689 = vrot.slane %v687, 3
        %v690 = vshll.u32 %v682, 16
        %v692 = vrot.slane %v690, 4
        %v693 = vor.u32 %v689, %v692
        %v695 = vshrl.u32 %v683, 16
        %v697 = vrot.slane %v695, 3
        %v698 = vshll.u32 %v683, 16
        %v700 = vrot.slane %v698, 4
        %v701 = vor.u32 %v697, %v700
        %v702 = vsel %vm685, %v693, %v701
        %v704 = vshrl.u32 %v684, 16
        %v706 = vrot.slane %v704, 3
        %v707 = vshll.u32 %v684, 16
        %v709 = vrot.slane %v707, 4
        %v710 = vor.u32 %v706, %v709
        %v711 = vsel %vm685, %v701, %v710
        %v728 = vunpack.c.l.b16 %v452
        %v729 = vunpack.c.h.b16 %v452
        %v730 = vunpack.c.l.b16 %v453
        %v731 = vunpack.c.h.b16 %v453
        %v732 = vunpack.c.l.b16 %v454
        %v733 = vunpack.c.h.b16 %v454
        %v734 = vunpack.c.l.b16 %v455
        %v735 = vunpack.c.h.b16 %v455
        %v736 = vunpack.c.l.b16 %v456
        %v737 = vunpack.c.h.b16 %v456
        %v738 = vunpack.c.l.b16 %v457
        %v739 = vunpack.c.h.b16 %v457
        %v740 = vunpack.c.l.b16 %v458
        %v741 = vunpack.c.h.b16 %v458
        %v742 = vunpack.c.l.b16 %v459
        %v743 = vunpack.c.h.b16 %v459
        %v744 = vunpack.c.l.b16 %v460
        %v745 = vunpack.c.h.b16 %v460
        %v746 = vunpack.c.l.b16 %v461
        %v747 = vunpack.c.h.b16 %v461
        %v748 = vunpack.c.l.b16 %v462
        %v749 = vunpack.c.h.b16 %v462
        %v750 = vunpack.c.l.b16 %v463
        %v751 = vunpack.c.h.b16 %v463
        %v752 = vunpack.c.l.b16 %v464
        %v753 = vunpack.c.h.b16 %v464
        %v754 = vunpack.c.l.b16 %v465
        %v755 = vunpack.c.h.b16 %v465
        %v756 = vunpack.c.l.b16 %v466
        %v757 = vunpack.c.h.b16 %v466
        %v758 = vunpack.c.l.b16 %v467
        %v759 = vunpack.c.h.b16 %v467
        %v760 = vpack.c.b16 %v732, %v728
        %v761 = vpack.c.b16 %v733, %v729
        %v762 = vpack.c.b16 %v734, %v730
        %v763 = vpack.c.b16 %v735, %v731
        %v764 = vpack.c.b16 %v740, %v736
        %v765 = vpack.c.b16 %v741, %v737
        %v766 = vpack.c.b16 %v742, %v738
        %v767 = vpack.c.b16 %v743, %v739
        %v768 = vpack.c.b16 %v748, %v744
        %v769 = vpack.c.b16 %v749, %v745
        %v770 = vpack.c.b16 %v750, %v746
        %v771 = vpack.c.b16 %v751, %v747
        %v772 = vpack.c.b16 %v756, %v752
        %v773 = vpack.c.b16 %v757, %v753
        %v774 = vpack.c.b16 %v758, %v754
        %v775 = vpack.c.b16 %v759, %v755
        %v793 = vsel %vm578, %v702, 0
        %v796 = vsel %vm578, %v711, 0
        %v799 = vsel %vm578, %v710, 0
        %801 = vmatpush.bf16.msra.mxu0 0
        %802 = vmatpush.bf16.msra.mxu0 0
        %803 = vmatpush.bf16.msra.mxu0 0
        %804 = vmatpush.bf16.msra.mxu0 0
        %805 = vmatpush.bf16.msra.mxu0 %v772
        %806 = vmatpush.bf16.msra.mxu0 %v768
        %807 = vmatpush.bf16.msra.mxu0 %v764
        %808 = vmatpush.bf16.msra.mxu0 %v760
        %809 = vmatmul.bf16.gmra.mxu0 %v793
        %v810 = vpop.f32.mrf.mxu0
        %v811 = vadd.f32 %v598, %v810
        %v812 = vpop.f32.mrf.mxu0
        %v813 = vadd.f32 %v600, %v812
        %814 = vmatmul.bf16.gmra.mxu0 %v796
        %v815 = vpop.f32.mrf.mxu0
        %v816 = vadd.f32 %v603, %v815
        %v817 = vpop.f32.mrf.mxu0
        %v818 = vadd.f32 %v605, %v817
        %819 = vmatmul.bf16.gmra.mxu0 %v799
        %v820 = vpop.f32.mrf.mxu0
        %v821 = vadd.f32 %v608, %v820
        %v822 = vpop.f32.mrf.mxu0
        %823 = vdwg.mxu0
        %824 = vmatpush.bf16.msra.mxu0 0
        %825 = vmatpush.bf16.msra.mxu0 0
        %826 = vmatpush.bf16.msra.mxu0 0
        %827 = vmatpush.bf16.msra.mxu0 0
        %828 = vmatpush.bf16.msra.mxu0 %v773
        %829 = vmatpush.bf16.msra.mxu0 %v769
        %830 = vmatpush.bf16.msra.mxu0 %v765
        %831 = vmatpush.bf16.msra.mxu0 %v761
        %832 = vmatmul.bf16.gmra.mxu0 %v793
        %v833 = vpop.f32.mrf.mxu0
        %v834 = vadd.f32 %v621, %v833
        %v835 = vpop.f32.mrf.mxu0
        %v836 = vadd.f32 %v623, %v835
        %837 = vmatmul.bf16.gmra.mxu0 %v796
        %v838 = vpop.f32.mrf.mxu0
        %v839 = vadd.f32 %v626, %v838
        %v840 = vpop.f32.mrf.mxu0
        %v841 = vadd.f32 %v628, %v840
        %842 = vmatmul.bf16.gmra.mxu0 %v799
        %v843 = vpop.f32.mrf.mxu0
        %v844 = vadd.f32 %v631, %v843
        %v845 = vpop.f32.mrf.mxu0
        %846 = vdwg.mxu0
        %847 = vmatpush.bf16.msra.mxu0 0
        %848 = vmatpush.bf16.msra.mxu0 0
        %849 = vmatpush.bf16.msra.mxu0 0
        %850 = vmatpush.bf16.msra.mxu0 0
        %851 = vmatpush.bf16.msra.mxu0 %v774
        %852 = vmatpush.bf16.msra.mxu0 %v770
        %853 = vmatpush.bf16.msra.mxu0 %v766
        %854 = vmatpush.bf16.msra.mxu0 %v762
        %855 = vmatmul.bf16.gmra.mxu0 %v793
        %v856 = vpop.f32.mrf.mxu0
        %v857 = vadd.f32 %v644, %v856
        %v858 = vpop.f32.mrf.mxu0
        %v859 = vadd.f32 %v646, %v858
        %860 = vmatmul.bf16.gmra.mxu0 %v796
        %v861 = vpop.f32.mrf.mxu0
        %v862 = vadd.f32 %v649, %v861
        %v863 = vpop.f32.mrf.mxu0
        %v864 = vadd.f32 %v651, %v863
        %865 = vmatmul.bf16.gmra.mxu0 %v799
        %v866 = vpop.f32.mrf.mxu0
        %v867 = vadd.f32 %v654, %v866
        %v868 = vpop.f32.mrf.mxu0
        %869 = vdwg.mxu0
        %870 = vmatpush.bf16.msra.mxu0 0
        %871 = vmatpush.bf16.msra.mxu0 0
        %872 = vmatpush.bf16.msra.mxu0 0
        %873 = vmatpush.bf16.msra.mxu0 0
        %874 = vmatpush.bf16.msra.mxu0 %v775
        %875 = vmatpush.bf16.msra.mxu0 %v771
        %876 = vmatpush.bf16.msra.mxu0 %v767
        %877 = vmatpush.bf16.msra.mxu0 %v763
        %878 = vmatmul.bf16.gmra.mxu0 %v793
        %v879 = vpop.f32.mrf.mxu0
        %v880 = vadd.f32 %v667, %v879
        %v881 = vpop.f32.mrf.mxu0
        %v882 = vadd.f32 %v669, %v881
        %883 = vmatmul.bf16.gmra.mxu0 %v796
        %v884 = vpop.f32.mrf.mxu0
        %v885 = vadd.f32 %v672, %v884
        %v886 = vpop.f32.mrf.mxu0
        %v887 = vadd.f32 %v674, %v886
        %888 = vmatmul.bf16.gmra.mxu0 %v799
        %v889 = vpop.f32.mrf.mxu0
        %v890 = vadd.f32 %v677, %v889
        %v891 = vpop.f32.mrf.mxu0
        %892 = vdwg.mxu0
        %v893 = vld [vmem:[#allocation2 + $0x4] sm:$0xf]
        %v894 = vld [vmem:[#allocation2 + $0x8] sm:$0xf]
        %v895 = vld [vmem:[#allocation2 + $0xc] sm:$0xf]
        %v896 = vld [vmem:[#allocation2 + $0x10] sm:$0xf]
        %v897 = vld [vmem:[#allocation2 + $0x14] sm:$0xf]
        %v898 = vld [vmem:[#allocation2 + $0x18] sm:$0x1]
        %s899 = scalar_lea.vmem [#allocation8], 256
        %v900 = vld [vmem:[%s899] sm:$0xff]
        %v901 = vld [vmem:[%s899 + $0x8] sm:$0xff]
        %v902 = vld [vmem:[%s899 + $0x10] sm:$0xff]
        %v903 = vld [vmem:[%s899 + $0x18] sm:$0xff]
        %v904 = vld [vmem:[%s899 + $0x20] sm:$0xff]
        %v905 = vld [vmem:[%s899 + $0x28] sm:$0xff]
        %v906 = vld [vmem:[%s899 + $0x30] sm:$0xff]
        %v907 = vld [vmem:[%s899 + $0x38] sm:$0xff]
        %v908 = vld [vmem:[%s899 + $0x40] sm:$0xff]
        %v909 = vld [vmem:[%s899 + $0x48] sm:$0xff]
        %v910 = vld [vmem:[%s899 + $0x50] sm:$0xff]
        %v911 = vld [vmem:[%s899 + $0x58] sm:$0xff]
        %v912 = vld [vmem:[%s899 + $0x60] sm:$0xff]
        %v913 = vld [vmem:[%s899 + $0x68] sm:$0xff]
        %v914 = vld [vmem:[%s899 + $0x70] sm:$0xff]
        %v915 = vld [vmem:[%s899 + $0x78] sm:$0xff]
        %v922 = vunpack.c.l.b16 %v893
        %v923 = vunpack.c.l.b16 %v894
        %v924 = vunpack.c.l.b16 %v895
        %v925 = vunpack.c.l.b16 %v896
        %v926 = vunpack.c.l.b16 %v897
        %v927 = vunpack.c.l.b16 %v898
        %v928 = vpack.c.b16 %v923, %v922
        %v929 = vpack.c.b16 %v925, %v924
        %v930 = vpack.c.b16 %v927, %v926
        %vm931 = vsmask.f32 7424
        %v933 = vshrl.u32 %v928, 16
        %v935 = vshll.u32 %v928, 16
        %v937 = vrot.slane %v935, 1
        %v938 = vor.u32 %v933, %v937
        %v940 = vshll.u32 %v929, 16
        %v942 = vrot.slane %v940, 1
        %v943 = vsel %vm931, %v938, %v942
        %v944 = vshrl.u32 %v929, 16
        %v946 = vor.u32 %v944, %v942
        %v948 = vshll.u32 %v930, 16
        %v950 = vrot.slane %v948, 1
        %v951 = vsel %vm931, %v946, %v950
        %v952 = vshrl.u32 %v930, 16
        %v954 = vor.u32 %v952, %v950
        %v971 = vunpack.c.l.b16 %v900
        %v972 = vunpack.c.h.b16 %v900
        %v973 = vunpack.c.l.b16 %v901
        %v974 = vunpack.c.h.b16 %v901
        %v975 = vunpack.c.l.b16 %v902
        %v976 = vunpack.c.h.b16 %v902
        %v977 = vunpack.c.l.b16 %v903
        %v978 = vunpack.c.h.b16 %v903
        %v979 = vunpack.c.l.b16 %v904
        %v980 = vunpack.c.h.b16 %v904
        %v981 = vunpack.c.l.b16 %v905
        %v982 = vunpack.c.h.b16 %v905
        %v983 = vunpack.c.l.b16 %v906
        %v984 = vunpack.c.h.b16 %v906
        %v985 = vunpack.c.l.b16 %v907
        %v986 = vunpack.c.h.b16 %v907
        %v987 = vunpack.c.l.b16 %v908
        %v988 = vunpack.c.h.b16 %v908
        %v989 = vunpack.c.l.b16 %v909
        %v990 = vunpack.c.h.b16 %v909
        %v991 = vunpack.c.l.b16 %v910
        %v992 = vunpack.c.h.b16 %v910
        %v993 = vunpack.c.l.b16 %v911
        %v994 = vunpack.c.h.b16 %v911
        %v995 = vunpack.c.l.b16 %v912
        %v996 = vunpack.c.h.b16 %v912
        %v997 = vunpack.c.l.b16 %v913
        %v998 = vunpack.c.h.b16 %v913
        %v999 = vunpack.c.l.b16 %v914
        %v1000 = vunpack.c.h.b16 %v914
        %v1001 = vunpack.c.l.b16 %v915
        %v1002 = vunpack.c.h.b16 %v915
        %v1003 = vpack.c.b16 %v975, %v971
        %v1004 = vpack.c.b16 %v976, %v972
        %v1005 = vpack.c.b16 %v977, %v973
        %v1006 = vpack.c.b16 %v978, %v974
        %v1007 = vpack.c.b16 %v983, %v979
        %v1008 = vpack.c.b16 %v984, %v980
        %v1009 = vpack.c.b16 %v985, %v981
        %v1010 = vpack.c.b16 %v986, %v982
        %v1011 = vpack.c.b16 %v991, %v987
        %v1012 = vpack.c.b16 %v992, %v988
        %v1013 = vpack.c.b16 %v993, %v989
        %v1014 = vpack.c.b16 %v994, %v990
        %v1015 = vpack.c.b16 %v999, %v995
        %v1016 = vpack.c.b16 %v1000, %v996
        %v1017 = vpack.c.b16 %v1001, %v997
        %v1018 = vpack.c.b16 %v1002, %v998
        %v1036 = vsel %vm578, %v943, 0
        %v1039 = vsel %vm578, %v951, 0
        %v1042 = vsel %vm578, %v954, 0
        %1044 = vmatpush.bf16.msra.mxu0 0
        %1045 = vmatpush.bf16.msra.mxu0 0
        %1046 = vmatpush.bf16.msra.mxu0 0
        %1047 = vmatpush.bf16.msra.mxu0 0
        %1048 = vmatpush.bf16.msra.mxu0 %v1015
        %1049 = vmatpush.bf16.msra.mxu0 %v1011
        %1050 = vmatpush.bf16.msra.mxu0 %v1007
        %1051 = vmatpush.bf16.msra.mxu0 %v1003
        %1052 = vmatmul.bf16.gmra.mxu0 %v1036
        %v1053 = vpop.f32.mrf.mxu0
        %v1054 = vadd.f32 0.0, %v1053
        %v1055 = vpop.f32.mrf.mxu0
        %v1056 = vadd.f32 0.0, %v1055
        %1057 = vmatmul.bf16.gmra.mxu0 %v1039
        %v1058 = vpop.f32.mrf.mxu0
        %v1059 = vadd.f32 0.0, %v1058
        %v1060 = vpop.f32.mrf.mxu0
        %v1061 = vadd.f32 0.0, %v1060
        %1062 = vmatmul.bf16.gmra.mxu0 %v1042
        %v1063 = vpop.f32.mrf.mxu0
        %v1064 = vadd.f32 0.0, %v1063
        %v1065 = vpop.f32.mrf.mxu0
        %1066 = vdwg.mxu0
        %1067 = vmatpush.bf16.msra.mxu0 0
        %1068 = vmatpush.bf16.msra.mxu0 0
        %1069 = vmatpush.bf16.msra.mxu0 0
        %1070 = vmatpush.bf16.msra.mxu0 0
        %1071 = vmatpush.bf16.msra.mxu0 %v1016
        %1072 = vmatpush.bf16.msra.mxu0 %v1012
        %1073 = vmatpush.bf16.msra.mxu0 %v1008
        %1074 = vmatpush.bf16.msra.mxu0 %v1004
        %1075 = vmatmul.bf16.gmra.mxu0 %v1036
        %v1076 = vpop.f32.mrf.mxu0
        %v1077 = vadd.f32 0.0, %v1076
        %v1078 = vpop.f32.mrf.mxu0
        %v1079 = vadd.f32 0.0, %v1078
        %1080 = vmatmul.bf16.gmra.mxu0 %v1039
        %v1081 = vpop.f32.mrf.mxu0
        %v1082 = vadd.f32 0.0, %v1081
        %v1083 = vpop.f32.mrf.mxu0
        %v1084 = vadd.f32 0.0, %v1083
        %1085 = vmatmul.bf16.gmra.mxu0 %v1042
        %v1086 = vpop.f32.mrf.mxu0
        %v1087 = vadd.f32 0.0, %v1086
        %v1088 = vpop.f32.mrf.mxu0
        %1089 = vdwg.mxu0
        %1090 = vmatpush.bf16.msra.mxu0 0
        %1091 = vmatpush.bf16.msra.mxu0 0
        %1092 = vmatpush.bf16.msra.mxu0 0
        %1093 = vmatpush.bf16.msra.mxu0 0
        %1094 = vmatpush.bf16.msra.mxu0 %v1017
        %1095 = vmatpush.bf16.msra.mxu0 %v1013
        %1096 = vmatpush.bf16.msra.mxu0 %v1009
        %1097 = vmatpush.bf16.msra.mxu0 %v1005
        %1098 = vmatmul.bf16.gmra.mxu0 %v1036
        %v1099 = vpop.f32.mrf.mxu0
        %v1100 = vadd.f32 0.0, %v1099
        %v1101 = vpop.f32.mrf.mxu0
        %v1102 = vadd.f32 0.0, %v1101
        %1103 = vmatmul.bf16.gmra.mxu0 %v1039
        %v1104 = vpop.f32.mrf.mxu0
        %v1105 = vadd.f32 0.0, %v1104
        %v1106 = vpop.f32.mrf.mxu0
        %v1107 = vadd.f32 0.0, %v1106
        %1108 = vmatmul.bf16.gmra.mxu0 %v1042
        %v1109 = vpop.f32.mrf.mxu0
        %v1110 = vadd.f32 0.0, %v1109
        %v1111 = vpop.f32.mrf.mxu0
        %1112 = vdwg.mxu0
        %1113 = vmatpush.bf16.msra.mxu0 0
        %1114 = vmatpush.bf16.msra.mxu0 0
        %1115 = vmatpush.bf16.msra.mxu0 0
        %1116 = vmatpush.bf16.msra.mxu0 0
        %1117 = vmatpush.bf16.msra.mxu0 %v1018
        %1118 = vmatpush.bf16.msra.mxu0 %v1014
        %1119 = vmatpush.bf16.msra.mxu0 %v1010
        %1120 = vmatpush.bf16.msra.mxu0 %v1006
        %1121 = vmatmul.bf16.gmra.mxu0 %v1036
        %v1122 = vpop.f32.mrf.mxu0
        %v1123 = vadd.f32 0.0, %v1122
        %v1124 = vpop.f32.mrf.mxu0
        %v1125 = vadd.f32 0.0, %v1124
        %1126 = vmatmul.bf16.gmra.mxu0 %v1039
        %v1127 = vpop.f32.mrf.mxu0
        %v1128 = vadd.f32 0.0, %v1127
        %v1129 = vpop.f32.mrf.mxu0
        %v1130 = vadd.f32 0.0, %v1129
        %1131 = vmatmul.bf16.gmra.mxu0 %v1042
        %v1132 = vpop.f32.mrf.mxu0
        %v1133 = vadd.f32 0.0, %v1132
        %v1134 = vpop.f32.mrf.mxu0
        %1135 = vdwg.mxu0
        %v1136 = vadd.f32 %v811, %v1054
        %v1137 = vadd.f32 %v834, %v1077
        %v1138 = vadd.f32 %v857, %v1100
        %v1139 = vadd.f32 %v880, %v1123
        %v1140 = vadd.f32 %v813, %v1056
        %v1141 = vadd.f32 %v836, %v1079
        %v1142 = vadd.f32 %v859, %v1102
        %v1143 = vadd.f32 %v882, %v1125
        %v1144 = vadd.f32 %v816, %v1059
        %v1145 = vadd.f32 %v839, %v1082
        %v1146 = vadd.f32 %v862, %v1105
        %v1147 = vadd.f32 %v885, %v1128
        %v1148 = vadd.f32 %v818, %v1061
        %v1149 = vadd.f32 %v841, %v1084
        %v1150 = vadd.f32 %v864, %v1107
        %v1151 = vadd.f32 %v887, %v1130
        %v1152 = vadd.f32 %v821, %v1064
        %v1153 = vadd.f32 %v844, %v1087
        %v1154 = vadd.f32 %v867, %v1110
        %v1155 = vadd.f32 %v890, %v1133
        %v1156 = vld [vmem:[%s3] sm:$0xf]
        %v1158 = vperm.slane %v1156, 0
        %v1159 = vperm.slane %v1156, 1
        %v1160 = vperm.slane %v1156, 2
        %v1161 = vperm.slane %v1156, 3
        %v1166 = vadd.f32 %v1136, %v1158
        %v1167 = vadd.f32 %v1137, %v1159
        %v1168 = vadd.f32 %v1138, %v1160
        %v1169 = vadd.f32 %v1139, %v1161
        %v1170 = vadd.f32 %v1140, %v1158
        %v1171 = vadd.f32 %v1141, %v1159
        %v1172 = vadd.f32 %v1142, %v1160
        %v1173 = vadd.f32 %v1143, %v1161
        %v1174 = vadd.f32 %v1144, %v1158
        %v1175 = vadd.f32 %v1145, %v1159
        %v1176 = vadd.f32 %v1146, %v1160
        %v1177 = vadd.f32 %v1147, %v1161
        %v1178 = vadd.f32 %v1148, %v1158
        %v1179 = vadd.f32 %v1149, %v1159
        %v1180 = vadd.f32 %v1150, %v1160
        %v1181 = vadd.f32 %v1151, %v1161
        %v1182 = vadd.f32 %v1152, %v1158
        %v1183 = vadd.f32 %v1153, %v1159
        %v1184 = vadd.f32 %v1154, %v1160
        %v1185 = vadd.f32 %v1155, %v1161
        %1186 = vst [vmem:[#allocation3] sm:$0xff] %v1166
        %1187 = vst [vmem:[#allocation3 + $0x8] sm:$0xff] %v1167
        %1188 = vst [vmem:[#allocation3 + $0x10] sm:$0xff] %v1168
        %1189 = vst [vmem:[#allocation3 + $0x18] sm:$0xff] %v1169
        %1190 = vst [vmem:[#allocation3 + $0x20] sm:$0xff] %v1170
        %1191 = vst [vmem:[#allocation3 + $0x28] sm:$0xff] %v1171
        %1192 = vst [vmem:[#allocation3 + $0x30] sm:$0xff] %v1172
        %1193 = vst [vmem:[#allocation3 + $0x38] sm:$0xff] %v1173
        %1194 = vst [vmem:[#allocation3 + $0x40] sm:$0xff] %v1174
        %1195 = vst [vmem:[#allocation3 + $0x48] sm:$0xff] %v1175
        %1196 = vst [vmem:[#allocation3 + $0x50] sm:$0xff] %v1176
        %1197 = vst [vmem:[#allocation3 + $0x58] sm:$0xff] %v1177
        %1198 = vst [vmem:[#allocation3 + $0x60] sm:$0xff] %v1178
        %1199 = vst [vmem:[#allocation3 + $0x68] sm:$0xff] %v1179
        %1200 = vst [vmem:[#allocation3 + $0x70] sm:$0xff] %v1180
        %1201 = vst [vmem:[#allocation3 + $0x78] sm:$0xff] %v1181
        %1202 = vst [vmem:[#allocation3 + $0x80] sm:$0xff] %v1182
        %1203 = vst [vmem:[#allocation3 + $0x88] sm:$0xff] %v1183
        %1204 = vst [vmem:[#allocation3 + $0x90] sm:$0xff] %v1184
        %1205 = vst [vmem:[#allocation3 + $0x98] sm:$0xff] %v1185
        %v1206 = vld [vmem:[%s6] sm:$0xf]
        %v1207 = vld [vmem:[#allocation3] sm:$0xff]
        %v1208 = vld [vmem:[#allocation3 + $0x10] sm:$0xff]
        %v1209 = vld [vmem:[#allocation3 + $0x18] sm:$0xff]
        %v1210 = vld [vmem:[#allocation3 + $0x20] sm:$0xff]
        %v1211 = vld [vmem:[#allocation3 + $0x30] sm:$0xff]
        %v1212 = vld [vmem:[#allocation3 + $0x38] sm:$0xff]
        %v1213 = vld [vmem:[#allocation3 + $0x60] sm:$0xff]
        %v1214 = vld [vmem:[#allocation3 + $0x70] sm:$0xff]
        %v1215 = vld [vmem:[#allocation3 + $0x78] sm:$0xff]
        %v1216 = vld [vmem:[#allocation3 + $0x80] sm:$0xff]
        %v1217 = vld [vmem:[#allocation3 + $0x90] sm:$0xff]
        %v1218 = vld [vmem:[#allocation3 + $0x98] sm:$0xff]
        %v1219 = vmul.f32 %v1207, 0.5
        %v1220 = vmul.f32 %v1210, 0.5
        %v1221 = vtanh.pop %v1219
        %v1222 = vtanh.pop %v1220
        %v1223 = vmul.f32 %v1221, 0.5
        %v1224 = vmul.f32 %v1222, 0.5
        %v1225 = vadd.f32 %v1223, 0.5
        %v1226 = vadd.f32 %v1224, 0.5
        %v1227 = vtanh.pop %v1208
        %v1228 = vtanh.pop %v1211
        %v1229 = vmul.f32 %v1225, %v1227
        %v1230 = vmul.f32 %v1226, %v1228
        %v1231 = vmul.f32 %v1209, 0.5
        %v1232 = vmul.f32 %v1212, 0.5
        %v1233 = vtanh.pop %v1231
        %v1234 = vtanh.pop %v1232
        %v1235 = vmul.f32 %v1233, 0.5
        %v1236 = vmul.f32 %v1234, 0.5
        %v1237 = vadd.f32 %v1235, 0.5
        %v1238 = vadd.f32 %v1236, 0.5
        %v1239 = vtanh.pop %v1229
        %v1240 = vtanh.pop %v1230
        %v1241 = vmul.f32 %v1237, %v1239
        %v1242 = vmul.f32 %v1238, %v1240
        %1243 = vst [vmem:[#allocation6] sm:$0xff] %v1229
        %1244 = vst [vmem:[#allocation6 + $0x8] sm:$0xff] %v1230
        %v1245 = vpack.c.bf16 %v1241, %v1241
        %v1246 = vpack.c.bf16 %v1242, %v1242
        %1247 = vst [vmem:[#allocation4 + $0x4] sm:$0xf] %v1245
        %1248 = vst [vmem:[#allocation4 + $0x8] sm:$0xf] %v1246
        %v1249 = vmul.f32 %v1213, 0.5
        %v1250 = vmul.f32 %v1216, 0.5
        %v1251 = vtanh.pop %v1249
        %v1252 = vtanh.pop %v1250
        %v1253 = vmul.f32 %v1251, 0.5
        %v1254 = vmul.f32 %v1252, 0.5
        %v1255 = vadd.f32 %v1253, 0.5
        %v1256 = vadd.f32 %v1254, 0.5
        %v1257 = vtanh.pop %v1214
        %v1258 = vtanh.pop %v1217
        %v1259 = vmul.f32 %v1255, %v1257
        %v1260 = vmul.f32 %v1256, %v1258
        %v1261 = vmul.f32 %v1215, 0.5
        %v1262 = vmul.f32 %v1218, 0.5
        %v1263 = vtanh.pop %v1261
        %v1264 = vtanh.pop %v1262
        %v1265 = vmul.f32 %v1263, 0.5
        %v1266 = vmul.f32 %v1264, 0.5
        %v1267 = vadd.f32 %v1265, 0.5
        %v1268 = vadd.f32 %v1266, 0.5
        %v1269 = vtanh.pop %v1259
        %v1270 = vtanh.pop %v1260
        %v1271 = vmul.f32 %v1267, %v1269
        %v1272 = vmul.f32 %v1268, %v1270
        %1273 = vst [vmem:[#allocation6 + $0x10] sm:$0xff] %v1259
        %1274 = vst [vmem:[#allocation6 + $0x18] sm:$0xff] %v1260
        %v1275 = vpack.c.bf16 %v1271, %v1271
        %v1276 = vpack.c.bf16 %v1272, %v1272
        %1277 = vst [vmem:[#allocation4 + $0x10] sm:$0xf] %v1275
        %1278 = vst [vmem:[#allocation4 + $0x14] sm:$0xf] %v1276
        %v1279 = vld [vmem:[#allocation4] sm:$0x8]
        %v1280 = vld [vmem:[#allocation4 + $0x4] sm:$0xf]
        %v1281 = vld [vmem:[#allocation4 + $0x8] sm:$0xf]
        %v1282 = vld [vmem:[#allocation4 + $0xc] sm:$0xf]
        %v1283 = vld [vmem:[#allocation4 + $0x10] sm:$0xf]
        %v1284 = vld [vmem:[#allocation4 + $0x14] sm:$0xf]
        %v1285 = vld [vmem:[#allocation12] sm:$0xff]
        %v1286 = vld [vmem:[#allocation12 + $0x8] sm:$0xff]
        %v1287 = vld [vmem:[#allocation12 + $0x10] sm:$0xff]
        %v1288 = vld [vmem:[#allocation12 + $0x18] sm:$0xff]
        %v1289 = vld [vmem:[#allocation12 + $0x20] sm:$0xff]
        %v1290 = vld [vmem:[#allocation12 + $0x28] sm:$0xff]
        %v1291 = vld [vmem:[#allocation12 + $0x30] sm:$0xff]
        %v1292 = vld [vmem:[#allocation12 + $0x38] sm:$0xff]
        %v1293 = vld [vmem:[#allocation12 + $0x40] sm:$0xff]
        %v1294 = vld [vmem:[#allocation12 + $0x48] sm:$0xff]
        %v1295 = vld [vmem:[#allocation12 + $0x50] sm:$0xff]
        %v1296 = vld [vmem:[#allocation12 + $0x58] sm:$0xff]
        %v1297 = vld [vmem:[#allocation12 + $0x60] sm:$0xff]
        %v1298 = vld [vmem:[#allocation12 + $0x68] sm:$0xff]
        %v1299 = vld [vmem:[#allocation12 + $0x70] sm:$0xff]
        %v1300 = vld [vmem:[#allocation12 + $0x78] sm:$0xff]
        %v1301 = vld [vmem:[#allocation12 + $0x80] sm:$0xff]
        %v1302 = vld [vmem:[#allocation12 + $0x88] sm:$0xff]
        %v1303 = vld [vmem:[#allocation12 + $0x90] sm:$0xff]
        %v1304 = vld [vmem:[#allocation12 + $0x98] sm:$0xff]
        %v1305 = vld [vmem:[#allocation12 + $0xa0] sm:$0xff]
        %v1306 = vld [vmem:[#allocation12 + $0xa8] sm:$0xff]
        %v1307 = vld [vmem:[#allocation12 + $0xb0] sm:$0xff]
        %v1308 = vld [vmem:[#allocation12 + $0xb8] sm:$0xff]
        %v1309 = vld [vmem:[#allocation12 + $0xc0] sm:$0xff]
        %v1310 = vld [vmem:[#allocation12 + $0xc8] sm:$0xff]
        %v1311 = vld [vmem:[#allocation12 + $0xd0] sm:$0xff]
        %v1312 = vld [vmem:[#allocation12 + $0xd8] sm:$0xff]
        %v1313 = vld [vmem:[#allocation12 + $0xe0] sm:$0xff]
        %v1314 = vld [vmem:[#allocation12 + $0xe8] sm:$0xff]
        %v1315 = vld [vmem:[#allocation12 + $0xf0] sm:$0xff]
        %v1316 = vld [vmem:[#allocation12 + $0xf8] sm:$0xff]
        %s1317 = scalar_lea.vmem [#allocation12], 256
        %v1318 = vld [vmem:[%s1317] sm:$0xff]
        %v1319 = vld [vmem:[%s1317 + $0x8] sm:$0xff]
        %v1320 = vld [vmem:[%s1317 + $0x10] sm:$0xff]
        %v1321 = vld [vmem:[%s1317 + $0x18] sm:$0xff]
        %v1322 = vld [vmem:[%s1317 + $0x20] sm:$0xff]
        %v1323 = vld [vmem:[%s1317 + $0x28] sm:$0xff]
        %v1324 = vld [vmem:[%s1317 + $0x30] sm:$0xff]
        %v1325 = vld [vmem:[%s1317 + $0x38] sm:$0xff]
        %v1326 = vld [vmem:[%s1317 + $0x40] sm:$0xff]
        %v1327 = vld [vmem:[%s1317 + $0x48] sm:$0xff]
        %v1328 = vld [vmem:[%s1317 + $0x50] sm:$0xff]
        %v1329 = vld [vmem:[%s1317 + $0x58] sm:$0xff]
        %v1330 = vld [vmem:[%s1317 + $0x60] sm:$0xff]
        %v1331 = vld [vmem:[%s1317 + $0x68] sm:$0xff]
        %v1332 = vld [vmem:[%s1317 + $0x70] sm:$0xff]
        %v1333 = vld [vmem:[%s1317 + $0x78] sm:$0xff]
        %v1334 = vld [vmem:[%s1317 + $0x80] sm:$0xff]
        %v1335 = vld [vmem:[%s1317 + $0x88] sm:$0xff]
        %v1336 = vld [vmem:[%s1317 + $0x90] sm:$0xff]
        %v1337 = vld [vmem:[%s1317 + $0x98] sm:$0xff]
        %v1338 = vld [vmem:[%s1317 + $0xa0] sm:$0xff]
        %v1339 = vld [vmem:[%s1317 + $0xa8] sm:$0xff]
        %v1340 = vld [vmem:[%s1317 + $0xb0] sm:$0xff]
        %v1341 = vld [vmem:[%s1317 + $0xb8] sm:$0xff]
        %v1342 = vld [vmem:[%s1317 + $0xc0] sm:$0xff]
        %v1343 = vld [vmem:[%s1317 + $0xc8] sm:$0xff]
        %v1344 = vld [vmem:[%s1317 + $0xd0] sm:$0xff]
        %v1345 = vld [vmem:[%s1317 + $0xd8] sm:$0xff]
        %v1346 = vld [vmem:[%s1317 + $0xe0] sm:$0xff]
        %v1347 = vld [vmem:[%s1317 + $0xe8] sm:$0xff]
        %v1348 = vld [vmem:[%s1317 + $0xf0] sm:$0xff]
        %v1349 = vld [vmem:[%s1317 + $0xf8] sm:$0xff]
        %v1355 = vunpack.c.l.b16 %v1280
        %v1356 = vunpack.c.l.b16 %v1281
        %v1357 = vunpack.c.l.b16 %v1282
        %v1358 = vunpack.c.l.b16 %v1283
        %v1359 = vunpack.c.l.b16 %v1284
        %v1360 = vpack.c.b16 %v1356, %v1355
        %v1361 = vpack.c.b16 %v1358, %v1357
        %v1362 = vpack.c.b16 %v1359, %v1359
        %v1398 = vunpack.c.l.b16 %v1318
        %v1399 = vunpack.c.l.b16 %v1319
        %v1400 = vunpack.c.h.b16 %v1319
        %v1401 = vunpack.c.l.b16 %v1320
        %v1402 = vunpack.c.l.b16 %v1321
        %v1403 = vunpack.c.h.b16 %v1321
        %v1404 = vunpack.c.l.b16 %v1322
        %v1405 = vunpack.c.l.b16 %v1323
        %v1406 = vunpack.c.h.b16 %v1323
        %v1407 = vunpack.c.l.b16 %v1324
        %v1408 = vunpack.c.l.b16 %v1325
        %v1409 = vunpack.c.h.b16 %v1325
        %v1410 = vunpack.c.l.b16 %v1326
        %v1411 = vunpack.c.l.b16 %v1327
        %v1412 = vunpack.c.h.b16 %v1327
        %v1413 = vunpack.c.l.b16 %v1328
        %v1414 = vunpack.c.l.b16 %v1329
        %v1415 = vunpack.c.h.b16 %v1329
        %v1416 = vunpack.c.l.b16 %v1330
        %v1417 = vunpack.c.l.b16 %v1331
        %v1418 = vunpack.c.h.b16 %v1331
        %v1419 = vunpack.c.l.b16 %v1332
        %v1420 = vunpack.c.l.b16 %v1333
        %v1421 = vunpack.c.h.b16 %v1333
        %v1422 = vunpack.c.l.b16 %v1334
        %v1423 = vunpack.c.l.b16 %v1335
        %v1424 = vunpack.c.h.b16 %v1335
        %v1425 = vunpack.c.l.b16 %v1336
        %v1426 = vunpack.c.l.b16 %v1337
        %v1427 = vunpack.c.h.b16 %v1337
        %v1428 = vunpack.c.l.b16 %v1338
        %v1429 = vunpack.c.l.b16 %v1339
        %v1430 = vunpack.c.h.b16 %v1339
        %v1431 = vunpack.c.l.b16 %v1340
        %v1432 = vunpack.c.l.b16 %v1341
        %v1433 = vunpack.c.h.b16 %v1341
        %v1434 = vunpack.c.l.b16 %v1342
        %v1435 = vunpack.c.l.b16 %v1343
        %v1436 = vunpack.c.h.b16 %v1343
        %v1437 = vunpack.c.l.b16 %v1344
        %v1438 = vunpack.c.l.b16 %v1345
        %v1439 = vunpack.c.h.b16 %v1345
        %v1440 = vunpack.c.l.b16 %v1346
        %v1441 = vunpack.c.l.b16 %v1347
        %v1442 = vunpack.c.h.b16 %v1347
        %v1443 = vunpack.c.l.b16 %v1348
        %v1444 = vunpack.c.l.b16 %v1349
        %v1445 = vunpack.c.h.b16 %v1349
        %v1446 = vpack.c.b16 %v1401, %v1398
        %v1447 = vpack.c.b16 %v1402, %v1399
        %v1448 = vpack.c.b16 %v1403, %v1400
        %v1449 = vpack.c.b16 %v1407, %v1404
        %v1450 = vpack.c.b16 %v1408, %v1405
        %v1451 = vpack.c.b16 %v1409, %v1406
        %v1452 = vpack.c.b16 %v1413, %v1410
        %v1453 = vpack.c.b16 %v1414, %v1411
        %v1454 = vpack.c.b16 %v1415, %v1412
        %v1455 = vpack.c.b16 %v1419, %v1416
        %v1456 = vpack.c.b16 %v1420, %v1417
        %v1457 = vpack.c.b16 %v1421, %v1418
        %v1458 = vpack.c.b16 %v1425, %v1422
        %v1459 = vpack.c.b16 %v1426, %v1423
        %v1460 = vpack.c.b16 %v1427, %v1424
        %v1461 = vpack.c.b16 %v1431, %v1428
        %v1462 = vpack.c.b16 %v1432, %v1429
        %v1463 = vpack.c.b16 %v1433, %v1430
        %v1464 = vpack.c.b16 %v1437, %v1434
        %v1465 = vpack.c.b16 %v1438, %v1435
        %v1466 = vpack.c.b16 %v1439, %v1436
        %v1467 = vpack.c.b16 %v1443, %v1440
        %v1468 = vpack.c.b16 %v1444, %v1441
        %v1469 = vpack.c.b16 %v1445, %v1442
        %1494 = vmatpush.bf16.msra.mxu0 %v1467
        %1495 = vmatpush.bf16.msra.mxu0 %v1464
        %1496 = vmatpush.bf16.msra.mxu0 %v1461
        %1497 = vmatpush.bf16.msra.mxu0 %v1458
        %1498 = vmatpush.bf16.msra.mxu0 %v1455
        %1499 = vmatpush.bf16.msra.mxu0 %v1452
        %1500 = vmatpush.bf16.msra.mxu0 %v1449
        %1501 = vmatpush.bf16.msra.mxu0 %v1446
        %1502 = vmatmul.bf16.gmra.mxu0 %v1360
        %v1503 = vpop.f32.mrf.mxu0
        %v1504 = vadd.f32 0.0, %v1503
        %v1505 = vpop.f32.mrf.mxu0
        %v1506 = vadd.f32 0.0, %v1505
        %1507 = vmatmul.bf16.gmra.mxu0 %v1361
        %v1508 = vpop.f32.mrf.mxu0
        %v1509 = vpop.f32.mrf.mxu0
        %v1510 = vadd.f32 0.0, %v1509
        %1511 = vmatmul.bf16.gmra.mxu0 %v1362
        %v1512 = vpop.f32.mrf.mxu0
        %v1513 = vadd.f32 0.0, %v1512
        %v1514 = vpop.f32.mrf.mxu0
        %1515 = vdwg.mxu0
        %1516 = vmatpush.bf16.msra.mxu0 %v1468
        %1517 = vmatpush.bf16.msra.mxu0 %v1465
        %1518 = vmatpush.bf16.msra.mxu0 %v1462
        %1519 = vmatpush.bf16.msra.mxu0 %v1459
        %1520 = vmatpush.bf16.msra.mxu0 %v1456
        %1521 = vmatpush.bf16.msra.mxu0 %v1453
        %1522 = vmatpush.bf16.msra.mxu0 %v1450
        %1523 = vmatpush.bf16.msra.mxu0 %v1447
        %1524 = vmatmul.bf16.gmra.mxu0 %v1360
        %v1525 = vpop.f32.mrf.mxu0
        %v1526 = vadd.f32 0.0, %v1525
        %v1527 = vpop.f32.mrf.mxu0
        %v1528 = vadd.f32 0.0, %v1527
        %1529 = vmatmul.bf16.gmra.mxu0 %v1361
        %v1530 = vpop.f32.mrf.mxu0
        %v1531 = vpop.f32.mrf.mxu0
        %v1532 = vadd.f32 0.0, %v1531
        %1533 = vmatmul.bf16.gmra.mxu0 %v1362
        %v1534 = vpop.f32.mrf.mxu0
        %v1535 = vadd.f32 0.0, %v1534
        %v1536 = vpop.f32.mrf.mxu0
        %1537 = vdwg.mxu0
        %1538 = vmatpush.bf16.msra.mxu0 %v1469
        %1539 = vmatpush.bf16.msra.mxu0 %v1466
        %1540 = vmatpush.bf16.msra.mxu0 %v1463
        %1541 = vmatpush.bf16.msra.mxu0 %v1460
        %1542 = vmatpush.bf16.msra.mxu0 %v1457
        %1543 = vmatpush.bf16.msra.mxu0 %v1454
        %1544 = vmatpush.bf16.msra.mxu0 %v1451
        %1545 = vmatpush.bf16.msra.mxu0 %v1448
        %1546 = vmatmul.bf16.gmra.mxu0 %v1360
        %v1547 = vpop.f32.mrf.mxu0
        %v1548 = vadd.f32 0.0, %v1547
        %v1549 = vpop.f32.mrf.mxu0
        %v1550 = vadd.f32 0.0, %v1549
        %1551 = vmatmul.bf16.gmra.mxu0 %v1361
        %v1552 = vpop.f32.mrf.mxu0
        %v1553 = vpop.f32.mrf.mxu0
        %v1554 = vadd.f32 0.0, %v1553
        %1555 = vmatmul.bf16.gmra.mxu0 %v1362
        %v1556 = vpop.f32.mrf.mxu0
        %v1557 = vadd.f32 0.0, %v1556
        %v1558 = vpop.f32.mrf.mxu0
        %1559 = vdwg.mxu0
        %v1561 = vunpack.c.l.b16 %v1279
        %v1562 = vpack.c.b16 %v1355, %v1561
        %v1563 = vpack.c.b16 %v1357, %v1356
        %v1564 = vpack.c.b16 %v1359, %v1358
        %v1566 = vshrl.u32 %v1562, 16
        %v1568 = vrot.slane %v1566, 3
        %v1569 = vshll.u32 %v1562, 16
        %v1571 = vrot.slane %v1569, 4
        %v1572 = vor.u32 %v1568, %v1571
        %v1574 = vshrl.u32 %v1563, 16
        %v1576 = vrot.slane %v1574, 3
        %v1577 = vshll.u32 %v1563, 16
        %v1579 = vrot.slane %v1577, 4
        %v1580 = vor.u32 %v1576, %v1579
        %v1581 = vsel %vm685, %v1572, %v1580
        %v1583 = vshrl.u32 %v1564, 16
        %v1585 = vrot.slane %v1583, 3
        %v1586 = vshll.u32 %v1564, 16
        %v1588 = vrot.slane %v1586, 4
        %v1589 = vor.u32 %v1585, %v1588
        %v1590 = vsel %vm685, %v1580, %v1589
        %v1626 = vunpack.c.l.b16 %v1285
        %v1627 = vunpack.c.l.b16 %v1286
        %v1628 = vunpack.c.h.b16 %v1286
        %v1629 = vunpack.c.l.b16 %v1287
        %v1630 = vunpack.c.l.b16 %v1288
        %v1631 = vunpack.c.h.b16 %v1288
        %v1632 = vunpack.c.l.b16 %v1289
        %v1633 = vunpack.c.l.b16 %v1290
        %v1634 = vunpack.c.h.b16 %v1290
        %v1635 = vunpack.c.l.b16 %v1291
        %v1636 = vunpack.c.l.b16 %v1292
        %v1637 = vunpack.c.h.b16 %v1292
        %v1638 = vunpack.c.l.b16 %v1293
        %v1639 = vunpack.c.l.b16 %v1294
        %v1640 = vunpack.c.h.b16 %v1294
        %v1641 = vunpack.c.l.b16 %v1295
        %v1642 = vunpack.c.l.b16 %v1296
        %v1643 = vunpack.c.h.b16 %v1296
        %v1644 = vunpack.c.l.b16 %v1297
        %v1645 = vunpack.c.l.b16 %v1298
        %v1646 = vunpack.c.h.b16 %v1298
        %v1647 = vunpack.c.l.b16 %v1299
        %v1648 = vunpack.c.l.b16 %v1300
        %v1649 = vunpack.c.h.b16 %v1300
        %v1650 = vunpack.c.l.b16 %v1301
        %v1651 = vunpack.c.l.b16 %v1302
        %v1652 = vunpack.c.h.b16 %v1302
        %v1653 = vunpack.c.l.b16 %v1303
        %v1654 = vunpack.c.l.b16 %v1304
        %v1655 = vunpack.c.h.b16 %v1304
        %v1656 = vunpack.c.l.b16 %v1305
        %v1657 = vunpack.c.l.b16 %v1306
        %v1658 = vunpack.c.h.b16 %v1306
        %v1659 = vunpack.c.l.b16 %v1307
        %v1660 = vunpack.c.l.b16 %v1308
        %v1661 = vunpack.c.h.b16 %v1308
        %v1662 = vunpack.c.l.b16 %v1309
        %v1663 = vunpack.c.l.b16 %v1310
        %v1664 = vunpack.c.h.b16 %v1310
        %v1665 = vunpack.c.l.b16 %v1311
        %v1666 = vunpack.c.l.b16 %v1312
        %v1667 = vunpack.c.h.b16 %v1312
        %v1668 = vunpack.c.l.b16 %v1313
        %v1669 = vunpack.c.l.b16 %v1314
        %v1670 = vunpack.c.h.b16 %v1314
        %v1671 = vunpack.c.l.b16 %v1315
        %v1672 = vunpack.c.l.b16 %v1316
        %v1673 = vunpack.c.h.b16 %v1316
        %v1674 = vpack.c.b16 %v1629, %v1626
        %v1675 = vpack.c.b16 %v1630, %v1627
        %v1676 = vpack.c.b16 %v1631, %v1628
        %v1677 = vpack.c.b16 %v1635, %v1632
        %v1678 = vpack.c.b16 %v1636, %v1633
        %v1679 = vpack.c.b16 %v1637, %v1634
        %v1680 = vpack.c.b16 %v1641, %v1638
        %v1681 = vpack.c.b16 %v1642, %v1639
        %v1682 = vpack.c.b16 %v1643, %v1640
        %v1683 = vpack.c.b16 %v1647, %v1644
        %v1684 = vpack.c.b16 %v1648, %v1645
        %v1685 = vpack.c.b16 %v1649, %v1646
        %v1686 = vpack.c.b16 %v1653, %v1650
        %v1687 = vpack.c.b16 %v1654, %v1651
        %v1688 = vpack.c.b16 %v1655, %v1652
        %v1689 = vpack.c.b16 %v1659, %v1656
        %v1690 = vpack.c.b16 %v1660, %v1657
        %v1691 = vpack.c.b16 %v1661, %v1658
        %v1692 = vpack.c.b16 %v1665, %v1662
        %v1693 = vpack.c.b16 %v1666, %v1663
        %v1694 = vpack.c.b16 %v1667, %v1664
        %v1695 = vpack.c.b16 %v1671, %v1668
        %v1696 = vpack.c.b16 %v1672, %v1669
        %v1697 = vpack.c.b16 %v1673, %v1670
        %1722 = vmatpush.bf16.msra.mxu0 %v1695
        %1723 = vmatpush.bf16.msra.mxu0 %v1692
        %1724 = vmatpush.bf16.msra.mxu0 %v1689
        %1725 = vmatpush.bf16.msra.mxu0 %v1686
        %1726 = vmatpush.bf16.msra.mxu0 %v1683
        %1727 = vmatpush.bf16.msra.mxu0 %v1680
        %1728 = vmatpush.bf16.msra.mxu0 %v1677
        %1729 = vmatpush.bf16.msra.mxu0 %v1674
        %1730 = vmatmul.bf16.gmra.mxu0 %v1581
        %v1731 = vpop.f32.mrf.mxu0
        %v1732 = vadd.f32 %v1504, %v1731
        %v1733 = vpop.f32.mrf.mxu0
        %v1734 = vadd.f32 %v1506, %v1733
        %1735 = vmatmul.bf16.gmra.mxu0 %v1590
        %v1736 = vpop.f32.mrf.mxu0
        %v1737 = vpop.f32.mrf.mxu0
        %v1738 = vadd.f32 %v1510, %v1737
        %1739 = vmatmul.bf16.gmra.mxu0 %v1589
        %v1740 = vpop.f32.mrf.mxu0
        %v1741 = vadd.f32 %v1513, %v1740
        %v1742 = vpop.f32.mrf.mxu0
        %1743 = vdwg.mxu0
        %1744 = vmatpush.bf16.msra.mxu0 %v1696
        %1745 = vmatpush.bf16.msra.mxu0 %v1693
        %1746 = vmatpush.bf16.msra.mxu0 %v1690
        %1747 = vmatpush.bf16.msra.mxu0 %v1687
        %1748 = vmatpush.bf16.msra.mxu0 %v1684
        %1749 = vmatpush.bf16.msra.mxu0 %v1681
        %1750 = vmatpush.bf16.msra.mxu0 %v1678
        %1751 = vmatpush.bf16.msra.mxu0 %v1675
        %1752 = vmatmul.bf16.gmra.mxu0 %v1581
        %v1753 = vpop.f32.mrf.mxu0
        %v1754 = vadd.f32 %v1526, %v1753
        %v1755 = vpop.f32.mrf.mxu0
        %v1756 = vadd.f32 %v1528, %v1755
        %1757 = vmatmul.bf16.gmra.mxu0 %v1590
        %v1758 = vpop.f32.mrf.mxu0
        %v1759 = vpop.f32.mrf.mxu0
        %v1760 = vadd.f32 %v1532, %v1759
        %1761 = vmatmul.bf16.gmra.mxu0 %v1589
        %v1762 = vpop.f32.mrf.mxu0
        %v1763 = vadd.f32 %v1535, %v1762
        %v1764 = vpop.f32.mrf.mxu0
        %1765 = vdwg.mxu0
        %1766 = vmatpush.bf16.msra.mxu0 %v1697
        %1767 = vmatpush.bf16.msra.mxu0 %v1694
        %1768 = vmatpush.bf16.msra.mxu0 %v1691
        %1769 = vmatpush.bf16.msra.mxu0 %v1688
        %1770 = vmatpush.bf16.msra.mxu0 %v1685
        %1771 = vmatpush.bf16.msra.mxu0 %v1682
        %1772 = vmatpush.bf16.msra.mxu0 %v1679
        %1773 = vmatpush.bf16.msra.mxu0 %v1676
        %1774 = vmatmul.bf16.gmra.mxu0 %v1581
        %v1775 = vpop.f32.mrf.mxu0
        %v1776 = vadd.f32 %v1548, %v1775
        %v1777 = vpop.f32.mrf.mxu0
        %v1778 = vadd.f32 %v1550, %v1777
        %1779 = vmatmul.bf16.gmra.mxu0 %v1590
        %v1780 = vpop.f32.mrf.mxu0
        %v1781 = vpop.f32.mrf.mxu0
        %v1782 = vadd.f32 %v1554, %v1781
        %1783 = vmatmul.bf16.gmra.mxu0 %v1589
        %v1784 = vpop.f32.mrf.mxu0
        %v1785 = vadd.f32 %v1557, %v1784
        %v1786 = vpop.f32.mrf.mxu0
        %1787 = vdwg.mxu0
        %v1788 = vld [vmem:[#allocation4 + $0x4] sm:$0xf]
        %v1789 = vld [vmem:[#allocation4 + $0x8] sm:$0xf]
        %v1790 = vld [vmem:[#allocation4 + $0xc] sm:$0xf]
        %v1791 = vld [vmem:[#allocation4 + $0x10] sm:$0xf]
        %v1792 = vld [vmem:[#allocation4 + $0x14] sm:$0xf]
        %v1793 = vld [vmem:[#allocation4 + $0x18] sm:$0x1]
        %s1794 = scalar_lea.vmem [#allocation12], 512
        %v1795 = vld [vmem:[%s1794] sm:$0xff]
        %v1796 = vld [vmem:[%s1794 + $0x8] sm:$0xff]
        %v1797 = vld [vmem:[%s1794 + $0x10] sm:$0xff]
        %v1798 = vld [vmem:[%s1794 + $0x18] sm:$0xff]
        %v1799 = vld [vmem:[%s1794 + $0x20] sm:$0xff]
        %v1800 = vld [vmem:[%s1794 + $0x28] sm:$0xff]
        %v1801 = vld [vmem:[%s1794 + $0x30] sm:$0xff]
        %v1802 = vld [vmem:[%s1794 + $0x38] sm:$0xff]
        %v1803 = vld [vmem:[%s1794 + $0x40] sm:$0xff]
        %v1804 = vld [vmem:[%s1794 + $0x48] sm:$0xff]
        %v1805 = vld [vmem:[%s1794 + $0x50] sm:$0xff]
        %v1806 = vld [vmem:[%s1794 + $0x58] sm:$0xff]
        %v1807 = vld [vmem:[%s1794 + $0x60] sm:$0xff]
        %v1808 = vld [vmem:[%s1794 + $0x68] sm:$0xff]
        %v1809 = vld [vmem:[%s1794 + $0x70] sm:$0xff]
        %v1810 = vld [vmem:[%s1794 + $0x78] sm:$0xff]
        %v1811 = vld [vmem:[%s1794 + $0x80] sm:$0xff]
        %v1812 = vld [vmem:[%s1794 + $0x88] sm:$0xff]
        %v1813 = vld [vmem:[%s1794 + $0x90] sm:$0xff]
        %v1814 = vld [vmem:[%s1794 + $0x98] sm:$0xff]
        %v1815 = vld [vmem:[%s1794 + $0xa0] sm:$0xff]
        %v1816 = vld [vmem:[%s1794 + $0xa8] sm:$0xff]
        %v1817 = vld [vmem:[%s1794 + $0xb0] sm:$0xff]
        %v1818 = vld [vmem:[%s1794 + $0xb8] sm:$0xff]
        %v1819 = vld [vmem:[%s1794 + $0xc0] sm:$0xff]
        %v1820 = vld [vmem:[%s1794 + $0xc8] sm:$0xff]
        %v1821 = vld [vmem:[%s1794 + $0xd0] sm:$0xff]
        %v1822 = vld [vmem:[%s1794 + $0xd8] sm:$0xff]
        %v1823 = vld [vmem:[%s1794 + $0xe0] sm:$0xff]
        %v1824 = vld [vmem:[%s1794 + $0xe8] sm:$0xff]
        %v1825 = vld [vmem:[%s1794 + $0xf0] sm:$0xff]
        %v1826 = vld [vmem:[%s1794 + $0xf8] sm:$0xff]
        %v1833 = vunpack.c.l.b16 %v1788
        %v1834 = vunpack.c.l.b16 %v1789
        %v1835 = vunpack.c.l.b16 %v1790
        %v1836 = vunpack.c.l.b16 %v1791
        %v1837 = vunpack.c.l.b16 %v1792
        %v1838 = vunpack.c.l.b16 %v1793
        %v1839 = vpack.c.b16 %v1834, %v1833
        %v1840 = vpack.c.b16 %v1836, %v1835
        %v1841 = vpack.c.b16 %v1838, %v1837
        %v1843 = vshrl.u32 %v1839, 16
        %v1845 = vshll.u32 %v1839, 16
        %v1847 = vrot.slane %v1845, 1
        %v1848 = vor.u32 %v1843, %v1847
        %v1850 = vshll.u32 %v1840, 16
        %v1852 = vrot.slane %v1850, 1
        %v1853 = vsel %vm931, %v1848, %v1852
        %v1854 = vshrl.u32 %v1840, 16
        %v1856 = vor.u32 %v1854, %v1852
        %v1858 = vshll.u32 %v1841, 16
        %v1860 = vrot.slane %v1858, 1
        %v1861 = vsel %vm931, %v1856, %v1860
        %v1862 = vshrl.u32 %v1841, 16
        %v1864 = vor.u32 %v1862, %v1860
        %v1900 = vunpack.c.l.b16 %v1795
        %v1901 = vunpack.c.l.b16 %v1796
        %v1902 = vunpack.c.h.b16 %v1796
        %v1903 = vunpack.c.l.b16 %v1797
        %v1904 = vunpack.c.l.b16 %v1798
        %v1905 = vunpack.c.h.b16 %v1798
        %v1906 = vunpack.c.l.b16 %v1799
        %v1907 = vunpack.c.l.b16 %v1800
        %v1908 = vunpack.c.h.b16 %v1800
        %v1909 = vunpack.c.l.b16 %v1801
        %v1910 = vunpack.c.l.b16 %v1802
        %v1911 = vunpack.c.h.b16 %v1802
        %v1912 = vunpack.c.l.b16 %v1803
        %v1913 = vunpack.c.l.b16 %v1804
        %v1914 = vunpack.c.h.b16 %v1804
        %v1915 = vunpack.c.l.b16 %v1805
        %v1916 = vunpack.c.l.b16 %v1806
        %v1917 = vunpack.c.h.b16 %v1806
        %v1918 = vunpack.c.l.b16 %v1807
        %v1919 = vunpack.c.l.b16 %v1808
        %v1920 = vunpack.c.h.b16 %v1808
        %v1921 = vunpack.c.l.b16 %v1809
        %v1922 = vunpack.c.l.b16 %v1810
        %v1923 = vunpack.c.h.b16 %v1810
        %v1924 = vunpack.c.l.b16 %v1811
        %v1925 = vunpack.c.l.b16 %v1812
        %v1926 = vunpack.c.h.b16 %v1812
        %v1927 = vunpack.c.l.b16 %v1813
        %v1928 = vunpack.c.l.b16 %v1814
        %v1929 = vunpack.c.h.b16 %v1814
        %v1930 = vunpack.c.l.b16 %v1815
        %v1931 = vunpack.c.l.b16 %v1816
        %v1932 = vunpack.c.h.b16 %v1816
        %v1933 = vunpack.c.l.b16 %v1817
        %v1934 = vunpack.c.l.b16 %v1818
        %v1935 = vunpack.c.h.b16 %v1818
        %v1936 = vunpack.c.l.b16 %v1819
        %v1937 = vunpack.c.l.b16 %v1820
        %v1938 = vunpack.c.h.b16 %v1820
        %v1939 = vunpack.c.l.b16 %v1821
        %v1940 = vunpack.c.l.b16 %v1822
        %v1941 = vunpack.c.h.b16 %v1822
        %v1942 = vunpack.c.l.b16 %v1823
        %v1943 = vunpack.c.l.b16 %v1824
        %v1944 = vunpack.c.h.b16 %v1824
        %v1945 = vunpack.c.l.b16 %v1825
        %v1946 = vunpack.c.l.b16 %v1826
        %v1947 = vunpack.c.h.b16 %v1826
        %v1948 = vpack.c.b16 %v1903, %v1900
        %v1949 = vpack.c.b16 %v1904, %v1901
        %v1950 = vpack.c.b16 %v1905, %v1902
        %v1951 = vpack.c.b16 %v1909, %v1906
        %v1952 = vpack.c.b16 %v1910, %v1907
        %v1953 = vpack.c.b16 %v1911, %v1908
        %v1954 = vpack.c.b16 %v1915, %v1912
        %v1955 = vpack.c.b16 %v1916, %v1913
        %v1956 = vpack.c.b16 %v1917, %v1914
        %v1957 = vpack.c.b16 %v1921, %v1918
        %v1958 = vpack.c.b16 %v1922, %v1919
        %v1959 = vpack.c.b16 %v1923, %v1920
        %v1960 = vpack.c.b16 %v1927, %v1924
        %v1961 = vpack.c.b16 %v1928, %v1925
        %v1962 = vpack.c.b16 %v1929, %v1926
        %v1963 = vpack.c.b16 %v1933, %v1930
        %v1964 = vpack.c.b16 %v1934, %v1931
        %v1965 = vpack.c.b16 %v1935, %v1932
        %v1966 = vpack.c.b16 %v1939, %v1936
        %v1967 = vpack.c.b16 %v1940, %v1937
        %v1968 = vpack.c.b16 %v1941, %v1938
        %v1969 = vpack.c.b16 %v1945, %v1942
        %v1970 = vpack.c.b16 %v1946, %v1943
        %v1971 = vpack.c.b16 %v1947, %v1944
        %1996 = vmatpush.bf16.msra.mxu0 %v1969
        %1997 = vmatpush.bf16.msra.mxu0 %v1966
        %1998 = vmatpush.bf16.msra.mxu0 %v1963
        %1999 = vmatpush.bf16.msra.mxu0 %v1960
        %2000 = vmatpush.bf16.msra.mxu0 %v1957
        %2001 = vmatpush.bf16.msra.mxu0 %v1954
        %2002 = vmatpush.bf16.msra.mxu0 %v1951
        %2003 = vmatpush.bf16.msra.mxu0 %v1948
        %2004 = vmatmul.bf16.gmra.mxu0 %v1853
        %v2005 = vpop.f32.mrf.mxu0
        %v2006 = vadd.f32 0.0, %v2005
        %v2007 = vpop.f32.mrf.mxu0
        %v2008 = vadd.f32 0.0, %v2007
        %2009 = vmatmul.bf16.gmra.mxu0 %v1861
        %v2010 = vpop.f32.mrf.mxu0
        %v2011 = vpop.f32.mrf.mxu0
        %v2012 = vadd.f32 0.0, %v2011
        %2013 = vmatmul.bf16.gmra.mxu0 %v1864
        %v2014 = vpop.f32.mrf.mxu0
        %v2015 = vadd.f32 0.0, %v2014
        %v2016 = vpop.f32.mrf.mxu0
        %2017 = vdwg.mxu0
        %2018 = vmatpush.bf16.msra.mxu0 %v1970
        %2019 = vmatpush.bf16.msra.mxu0 %v1967
        %2020 = vmatpush.bf16.msra.mxu0 %v1964
        %2021 = vmatpush.bf16.msra.mxu0 %v1961
        %2022 = vmatpush.bf16.msra.mxu0 %v1958
        %2023 = vmatpush.bf16.msra.mxu0 %v1955
        %2024 = vmatpush.bf16.msra.mxu0 %v1952
        %2025 = vmatpush.bf16.msra.mxu0 %v1949
        %2026 = vmatmul.bf16.gmra.mxu0 %v1853
        %v2027 = vpop.f32.mrf.mxu0
        %v2028 = vadd.f32 0.0, %v2027
        %v2029 = vpop.f32.mrf.mxu0
        %v2030 = vadd.f32 0.0, %v2029
        %2031 = vmatmul.bf16.gmra.mxu0 %v1861
        %v2032 = vpop.f32.mrf.mxu0
        %v2033 = vpop.f32.mrf.mxu0
        %v2034 = vadd.f32 0.0, %v2033
        %2035 = vmatmul.bf16.gmra.mxu0 %v1864
        %v2036 = vpop.f32.mrf.mxu0
        %v2037 = vadd.f32 0.0, %v2036
        %v2038 = vpop.f32.mrf.mxu0
        %2039 = vdwg.mxu0
        %2040 = vmatpush.bf16.msra.mxu0 %v1971
        %2041 = vmatpush.bf16.msra.mxu0 %v1968
        %2042 = vmatpush.bf16.msra.mxu0 %v1965
        %2043 = vmatpush.bf16.msra.mxu0 %v1962
        %2044 = vmatpush.bf16.msra.mxu0 %v1959
        %2045 = vmatpush.bf16.msra.mxu0 %v1956
        %2046 = vmatpush.bf16.msra.mxu0 %v1953
        %2047 = vmatpush.bf16.msra.mxu0 %v1950
        %2048 = vmatmul.bf16.gmra.mxu0 %v1853
        %v2049 = vpop.f32.mrf.mxu0
        %v2050 = vadd.f32 0.0, %v2049
        %v2051 = vpop.f32.mrf.mxu0
        %v2052 = vadd.f32 0.0, %v2051
        %2053 = vmatmul.bf16.gmra.mxu0 %v1861
        %v2054 = vpop.f32.mrf.mxu0
        %v2055 = vpop.f32.mrf.mxu0
        %v2056 = vadd.f32 0.0, %v2055
        %2057 = vmatmul.bf16.gmra.mxu0 %v1864
        %v2058 = vpop.f32.mrf.mxu0
        %v2059 = vadd.f32 0.0, %v2058
        %v2060 = vpop.f32.mrf.mxu0
        %2061 = vdwg.mxu0
        %v2062 = vadd.f32 %v1732, %v2006
        %v2063 = vadd.f32 %v1754, %v2028
        %v2064 = vadd.f32 %v1776, %v2050
        %v2065 = vadd.f32 %v1734, %v2008
        %v2066 = vadd.f32 %v1756, %v2030
        %v2067 = vadd.f32 %v1778, %v2052
        %v2068 = vadd.f32 %v1738, %v2012
        %v2069 = vadd.f32 %v1760, %v2034
        %v2070 = vadd.f32 %v1782, %v2056
        %v2071 = vadd.f32 %v1741, %v2015
        %v2072 = vadd.f32 %v1763, %v2037
        %v2073 = vadd.f32 %v1785, %v2059
        %v2075 = vperm.slane %v1206, 0
        %v2076 = vperm.slane %v1206, 1
        %v2077 = vperm.slane %v1206, 2
        %v2078 = vperm.slane %v1206, 3
        %v2083 = vadd.f32 %v2062, %v2075
        %v2084 = vadd.f32 %v2063, %v2077
        %v2085 = vadd.f32 %v2064, %v2078
        %v2086 = vadd.f32 %v2065, %v2075
        %v2087 = vadd.f32 %v2066, %v2077
        %v2088 = vadd.f32 %v2067, %v2078
        %v2089 = vadd.f32 %v2068, %v2075
        %v2090 = vadd.f32 %v2069, %v2077
        %v2091 = vadd.f32 %v2070, %v2078
        %v2092 = vadd.f32 %v2071, %v2075
        %v2093 = vadd.f32 %v2072, %v2077
        %v2094 = vadd.f32 %v2073, %v2078
        %v2095 = vmul.f32 %v2083, 0.5
        %v2096 = vmul.f32 %v2086, 0.5
        %v2097 = vtanh.pop %v2095
        %v2098 = vtanh.pop %v2096
        %v2099 = vmul.f32 %v2097, 0.5
        %v2100 = vmul.f32 %v2098, 0.5
        %v2101 = vadd.f32 %v2099, 0.5
        %v2102 = vadd.f32 %v2100, 0.5
        %v2103 = vtanh.pop %v2084
        %v2104 = vtanh.pop %v2087
        %v2105 = vmul.f32 %v2101, %v2103
        %v2106 = vmul.f32 %v2102, %v2104
        %v2107 = vmul.f32 %v2085, 0.5
        %v2108 = vmul.f32 %v2088, 0.5
        %v2109 = vtanh.pop %v2107
        %v2110 = vtanh.pop %v2108
        %v2111 = vmul.f32 %v2109, 0.5
        %v2112 = vmul.f32 %v2110, 0.5
        %v2113 = vadd.f32 %v2111, 0.5
        %v2114 = vadd.f32 %v2112, 0.5
        %v2115 = vtanh.pop %v2105
        %v2116 = vtanh.pop %v2106
        %v2117 = vmul.f32 %v2113, %v2115
        %v2118 = vmul.f32 %v2114, %v2116
        %2119 = vst [vmem:[#allocation7] sm:$0xff] %v2105
        %2120 = vst [vmem:[#allocation7 + $0x8] sm:$0xff] %v2106
        %v2121 = vpack.c.bf16 %v2117, %v2117
        %v2122 = vpack.c.bf16 %v2118, %v2118
        %2123 = vst [vmem:[#allocation5 + $0x4] sm:$0xf] %v2121
        %2124 = vst [vmem:[#allocation5 + $0x8] sm:$0xf] %v2122
        %v2125 = vmul.f32 %v2089, 0.5
        %v2126 = vmul.f32 %v2092, 0.5
        %v2127 = vtanh.pop %v2125
        %v2128 = vtanh.pop %v2126
        %v2129 = vmul.f32 %v2127, 0.5
        %v2130 = vmul.f32 %v2128, 0.5
        %v2131 = vadd.f32 %v2129, 0.5
        %v2132 = vadd.f32 %v2130, 0.5
        %v2133 = vtanh.pop %v2090
        %v2134 = vtanh.pop %v2093
        %v2135 = vmul.f32 %v2131, %v2133
        %v2136 = vmul.f32 %v2132, %v2134
        %v2137 = vmul.f32 %v2091, 0.5
        %v2138 = vmul.f32 %v2094, 0.5
        %v2139 = vtanh.pop %v2137
        %v2140 = vtanh.pop %v2138
        %v2141 = vmul.f32 %v2139, 0.5
        %v2142 = vmul.f32 %v2140, 0.5
        %v2143 = vadd.f32 %v2141, 0.5
        %v2144 = vadd.f32 %v2142, 0.5
        %v2145 = vtanh.pop %v2135
        %v2146 = vtanh.pop %v2136
        %v2147 = vmul.f32 %v2143, %v2145
        %v2148 = vmul.f32 %v2144, %v2146
        %2149 = vst [vmem:[#allocation7 + $0x10] sm:$0xff] %v2135
        %2150 = vst [vmem:[#allocation7 + $0x18] sm:$0xff] %v2136
        %v2151 = vpack.c.bf16 %v2147, %v2147
        %v2152 = vpack.c.bf16 %v2148, %v2148
        %2153 = vst [vmem:[#allocation5 + $0x10] sm:$0xf] %v2151
        %2154 = vst [vmem:[#allocation5 + $0x14] sm:$0xf] %v2152
        %v2155 = vld [vmem:[#allocation3] sm:$0xff]
        %v2156 = vld [vmem:[#allocation3 + $0x8] sm:$0xff]
        %v2157 = vld [vmem:[#allocation3 + $0x10] sm:$0xff]
        %v2158 = vld [vmem:[#allocation3 + $0x18] sm:$0xff]
        %v2159 = vld [vmem:[#allocation3 + $0x20] sm:$0xff]
        %v2160 = vld [vmem:[#allocation3 + $0x28] sm:$0xff]
        %v2161 = vld [vmem:[#allocation3 + $0x30] sm:$0xff]
        %v2162 = vld [vmem:[#allocation3 + $0x38] sm:$0xff]
        %v2163 = vld [vmem:[#allocation3 + $0x60] sm:$0xff]
        %v2164 = vld [vmem:[#allocation3 + $0x68] sm:$0xff]
        %v2165 = vld [vmem:[#allocation3 + $0x70] sm:$0xff]
        %v2166 = vld [vmem:[#allocation3 + $0x78] sm:$0xff]
        %v2167 = vld [vmem:[#allocation3 + $0x80] sm:$0xff]
        %v2168 = vld [vmem:[#allocation3 + $0x88] sm:$0xff]
        %v2169 = vld [vmem:[#allocation3 + $0x90] sm:$0xff]
        %v2170 = vld [vmem:[#allocation3 + $0x98] sm:$0xff]
        %v2171 = vld [vmem:[#allocation4] sm:$0x8]
        %v2172 = vld [vmem:[#allocation4 + $0x4] sm:$0xf]
        %v2173 = vld [vmem:[#allocation4 + $0x8] sm:$0xf]
        %v2174 = vld [vmem:[#allocation4 + $0xc] sm:$0xf]
        %v2175 = vld [vmem:[#allocation4 + $0x10] sm:$0xf]
        %v2176 = vld [vmem:[#allocation4 + $0x14] sm:$0xf]
        %v2177 = vld [vmem:[#allocation10] sm:$0xff]
        %v2178 = vld [vmem:[#allocation10 + $0x8] sm:$0xff]
        %v2179 = vld [vmem:[#allocation10 + $0x10] sm:$0xff]
        %v2180 = vld [vmem:[#allocation10 + $0x18] sm:$0xff]
        %v2181 = vld [vmem:[#allocation10 + $0x20] sm:$0xff]
        %v2182 = vld [vmem:[#allocation10 + $0x28] sm:$0xff]
        %v2183 = vld [vmem:[#allocation10 + $0x30] sm:$0xff]
        %v2184 = vld [vmem:[#allocation10 + $0x38] sm:$0xff]
        %v2185 = vld [vmem:[#allocation10 + $0x40] sm:$0xff]
        %v2186 = vld [vmem:[#allocation10 + $0x48] sm:$0xff]
        %v2187 = vld [vmem:[#allocation10 + $0x50] sm:$0xff]
        %v2188 = vld [vmem:[#allocation10 + $0x58] sm:$0xff]
        %v2189 = vld [vmem:[#allocation10 + $0x60] sm:$0xff]
        %v2190 = vld [vmem:[#allocation10 + $0x68] sm:$0xff]
        %v2191 = vld [vmem:[#allocation10 + $0x70] sm:$0xff]
        %v2192 = vld [vmem:[#allocation10 + $0x78] sm:$0xff]
        %v2193 = vld [vmem:[#allocation10 + $0x80] sm:$0xff]
        %v2194 = vld [vmem:[#allocation10 + $0x88] sm:$0xff]
        %v2195 = vld [vmem:[#allocation10 + $0x90] sm:$0xff]
        %v2196 = vld [vmem:[#allocation10 + $0x98] sm:$0xff]
        %v2197 = vld [vmem:[#allocation10 + $0xa0] sm:$0xff]
        %v2198 = vld [vmem:[#allocation10 + $0xa8] sm:$0xff]
        %v2199 = vld [vmem:[#allocation10 + $0xb0] sm:$0xff]
        %v2200 = vld [vmem:[#allocation10 + $0xb8] sm:$0xff]
        %v2201 = vld [vmem:[#allocation10 + $0xc0] sm:$0xff]
        %v2202 = vld [vmem:[#allocation10 + $0xc8] sm:$0xff]
        %v2203 = vld [vmem:[#allocation10 + $0xd0] sm:$0xff]
        %v2204 = vld [vmem:[#allocation10 + $0xd8] sm:$0xff]
        %v2205 = vld [vmem:[#allocation10 + $0xe0] sm:$0xff]
        %v2206 = vld [vmem:[#allocation10 + $0xe8] sm:$0xff]
        %v2207 = vld [vmem:[#allocation10 + $0xf0] sm:$0xff]
        %v2208 = vld [vmem:[#allocation10 + $0xf8] sm:$0xff]
        %s2209 = scalar_lea.vmem [#allocation10], 256
        %v2210 = vld [vmem:[%s2209] sm:$0xff]
        %v2211 = vld [vmem:[%s2209 + $0x8] sm:$0xff]
        %v2212 = vld [vmem:[%s2209 + $0x10] sm:$0xff]
        %v2213 = vld [vmem:[%s2209 + $0x18] sm:$0xff]
        %v2214 = vld [vmem:[%s2209 + $0x20] sm:$0xff]
        %v2215 = vld [vmem:[%s2209 + $0x28] sm:$0xff]
        %v2216 = vld [vmem:[%s2209 + $0x30] sm:$0xff]
        %v2217 = vld [vmem:[%s2209 + $0x38] sm:$0xff]
        %v2218 = vld [vmem:[%s2209 + $0x40] sm:$0xff]
        %v2219 = vld [vmem:[%s2209 + $0x48] sm:$0xff]
        %v2220 = vld [vmem:[%s2209 + $0x50] sm:$0xff]
        %v2221 = vld [vmem:[%s2209 + $0x58] sm:$0xff]
        %v2222 = vld [vmem:[%s2209 + $0x60] sm:$0xff]
        %v2223 = vld [vmem:[%s2209 + $0x68] sm:$0xff]
        %v2224 = vld [vmem:[%s2209 + $0x70] sm:$0xff]
        %v2225 = vld [vmem:[%s2209 + $0x78] sm:$0xff]
        %v2226 = vld [vmem:[%s2209 + $0x80] sm:$0xff]
        %v2227 = vld [vmem:[%s2209 + $0x88] sm:$0xff]
        %v2228 = vld [vmem:[%s2209 + $0x90] sm:$0xff]
        %v2229 = vld [vmem:[%s2209 + $0x98] sm:$0xff]
        %v2230 = vld [vmem:[%s2209 + $0xa0] sm:$0xff]
        %v2231 = vld [vmem:[%s2209 + $0xa8] sm:$0xff]
        %v2232 = vld [vmem:[%s2209 + $0xb0] sm:$0xff]
        %v2233 = vld [vmem:[%s2209 + $0xb8] sm:$0xff]
        %v2234 = vld [vmem:[%s2209 + $0xc0] sm:$0xff]
        %v2235 = vld [vmem:[%s2209 + $0xc8] sm:$0xff]
        %v2236 = vld [vmem:[%s2209 + $0xd0] sm:$0xff]
        %v2237 = vld [vmem:[%s2209 + $0xd8] sm:$0xff]
        %v2238 = vld [vmem:[%s2209 + $0xe0] sm:$0xff]
        %v2239 = vld [vmem:[%s2209 + $0xe8] sm:$0xff]
        %v2240 = vld [vmem:[%s2209 + $0xf0] sm:$0xff]
        %v2241 = vld [vmem:[%s2209 + $0xf8] sm:$0xff]
        %v2247 = vunpack.c.l.b16 %v2172
        %v2248 = vunpack.c.l.b16 %v2173
        %v2249 = vunpack.c.l.b16 %v2174
        %v2250 = vunpack.c.l.b16 %v2175
        %v2251 = vunpack.c.l.b16 %v2176
        %v2252 = vpack.c.b16 %v2248, %v2247
        %v2253 = vpack.c.b16 %v2250, %v2249
        %v2254 = vpack.c.b16 %v2251, %v2251
        %v2290 = vunpack.c.l.b16 %v2210
        %v2291 = vunpack.c.h.b16 %v2210
        %v2292 = vunpack.c.l.b16 %v2211
        %v2293 = vunpack.c.h.b16 %v2211
        %v2294 = vunpack.c.l.b16 %v2212
        %v2295 = vunpack.c.h.b16 %v2212
        %v2296 = vunpack.c.l.b16 %v2213
        %v2297 = vunpack.c.h.b16 %v2213
        %v2298 = vunpack.c.l.b16 %v2214
        %v2299 = vunpack.c.h.b16 %v2214
        %v2300 = vunpack.c.l.b16 %v2215
        %v2301 = vunpack.c.h.b16 %v2215
        %v2302 = vunpack.c.l.b16 %v2216
        %v2303 = vunpack.c.h.b16 %v2216
        %v2304 = vunpack.c.l.b16 %v2217
        %v2305 = vunpack.c.h.b16 %v2217
        %v2306 = vunpack.c.l.b16 %v2218
        %v2307 = vunpack.c.h.b16 %v2218
        %v2308 = vunpack.c.l.b16 %v2219
        %v2309 = vunpack.c.h.b16 %v2219
        %v2310 = vunpack.c.l.b16 %v2220
        %v2311 = vunpack.c.h.b16 %v2220
        %v2312 = vunpack.c.l.b16 %v2221
        %v2313 = vunpack.c.h.b16 %v2221
        %v2314 = vunpack.c.l.b16 %v2222
        %v2315 = vunpack.c.h.b16 %v2222
        %v2316 = vunpack.c.l.b16 %v2223
        %v2317 = vunpack.c.h.b16 %v2223
        %v2318 = vunpack.c.l.b16 %v2224
        %v2319 = vunpack.c.h.b16 %v2224
        %v2320 = vunpack.c.l.b16 %v2225
        %v2321 = vunpack.c.h.b16 %v2225
        %v2322 = vunpack.c.l.b16 %v2226
        %v2323 = vunpack.c.h.b16 %v2226
        %v2324 = vunpack.c.l.b16 %v2227
        %v2325 = vunpack.c.h.b16 %v2227
        %v2326 = vunpack.c.l.b16 %v2228
        %v2327 = vunpack.c.h.b16 %v2228
        %v2328 = vunpack.c.l.b16 %v2229
        %v2329 = vunpack.c.h.b16 %v2229
        %v2330 = vunpack.c.l.b16 %v2230
        %v2331 = vunpack.c.h.b16 %v2230
        %v2332 = vunpack.c.l.b16 %v2231
        %v2333 = vunpack.c.h.b16 %v2231
        %v2334 = vunpack.c.l.b16 %v2232
        %v2335 = vunpack.c.h.b16 %v2232
        %v2336 = vunpack.c.l.b16 %v2233
        %v2337 = vunpack.c.h.b16 %v2233
        %v2338 = vunpack.c.l.b16 %v2234
        %v2339 = vunpack.c.h.b16 %v2234
        %v2340 = vunpack.c.l.b16 %v2235
        %v2341 = vunpack.c.h.b16 %v2235
        %v2342 = vunpack.c.l.b16 %v2236
        %v2343 = vunpack.c.h.b16 %v2236
        %v2344 = vunpack.c.l.b16 %v2237
        %v2345 = vunpack.c.h.b16 %v2237
        %v2346 = vunpack.c.l.b16 %v2238
        %v2347 = vunpack.c.h.b16 %v2238
        %v2348 = vunpack.c.l.b16 %v2239
        %v2349 = vunpack.c.h.b16 %v2239
        %v2350 = vunpack.c.l.b16 %v2240
        %v2351 = vunpack.c.h.b16 %v2240
        %v2352 = vunpack.c.l.b16 %v2241
        %v2353 = vunpack.c.h.b16 %v2241
        %v2354 = vpack.c.b16 %v2294, %v2290
        %v2355 = vpack.c.b16 %v2295, %v2291
        %v2356 = vpack.c.b16 %v2296, %v2292
        %v2357 = vpack.c.b16 %v2297, %v2293
        %v2358 = vpack.c.b16 %v2302, %v2298
        %v2359 = vpack.c.b16 %v2303, %v2299
        %v2360 = vpack.c.b16 %v2304, %v2300
        %v2361 = vpack.c.b16 %v2305, %v2301
        %v2362 = vpack.c.b16 %v2310, %v2306
        %v2363 = vpack.c.b16 %v2311, %v2307
        %v2364 = vpack.c.b16 %v2312, %v2308
        %v2365 = vpack.c.b16 %v2313, %v2309
        %v2366 = vpack.c.b16 %v2318, %v2314
        %v2367 = vpack.c.b16 %v2319, %v2315
        %v2368 = vpack.c.b16 %v2320, %v2316
        %v2369 = vpack.c.b16 %v2321, %v2317
        %v2370 = vpack.c.b16 %v2326, %v2322
        %v2371 = vpack.c.b16 %v2327, %v2323
        %v2372 = vpack.c.b16 %v2328, %v2324
        %v2373 = vpack.c.b16 %v2329, %v2325
        %v2374 = vpack.c.b16 %v2334, %v2330
        %v2375 = vpack.c.b16 %v2335, %v2331
        %v2376 = vpack.c.b16 %v2336, %v2332
        %v2377 = vpack.c.b16 %v2337, %v2333
        %v2378 = vpack.c.b16 %v2342, %v2338
        %v2379 = vpack.c.b16 %v2343, %v2339
        %v2380 = vpack.c.b16 %v2344, %v2340
        %v2381 = vpack.c.b16 %v2345, %v2341
        %v2382 = vpack.c.b16 %v2350, %v2346
        %v2383 = vpack.c.b16 %v2351, %v2347
        %v2384 = vpack.c.b16 %v2352, %v2348
        %v2385 = vpack.c.b16 %v2353, %v2349
        %2418 = vmatpush.bf16.msra.mxu0 %v2382
        %2419 = vmatpush.bf16.msra.mxu0 %v2378
        %2420 = vmatpush.bf16.msra.mxu0 %v2374
        %2421 = vmatpush.bf16.msra.mxu0 %v2370
        %2422 = vmatpush.bf16.msra.mxu0 %v2366
        %2423 = vmatpush.bf16.msra.mxu0 %v2362
        %2424 = vmatpush.bf16.msra.mxu0 %v2358
        %2425 = vmatpush.bf16.msra.mxu0 %v2354
        %2426 = vmatmul.bf16.gmra.mxu0 %v2252
        %v2427 = vpop.f32.mrf.mxu0
        %v2428 = vadd.f32 0.0, %v2427
        %v2429 = vpop.f32.mrf.mxu0
        %v2430 = vadd.f32 0.0, %v2429
        %2431 = vmatmul.bf16.gmra.mxu0 %v2253
        %v2432 = vpop.f32.mrf.mxu0
        %v2433 = vpop.f32.mrf.mxu0
        %v2434 = vadd.f32 0.0, %v2433
        %2435 = vmatmul.bf16.gmra.mxu0 %v2254
        %v2436 = vpop.f32.mrf.mxu0
        %v2437 = vadd.f32 0.0, %v2436
        %v2438 = vpop.f32.mrf.mxu0
        %2439 = vdwg.mxu0
        %2440 = vmatpush.bf16.msra.mxu0 %v2383
        %2441 = vmatpush.bf16.msra.mxu0 %v2379
        %2442 = vmatpush.bf16.msra.mxu0 %v2375
        %2443 = vmatpush.bf16.msra.mxu0 %v2371
        %2444 = vmatpush.bf16.msra.mxu0 %v2367
        %2445 = vmatpush.bf16.msra.mxu0 %v2363
        %2446 = vmatpush.bf16.msra.mxu0 %v2359
        %2447 = vmatpush.bf16.msra.mxu0 %v2355
        %2448 = vmatmul.bf16.gmra.mxu0 %v2252
        %v2449 = vpop.f32.mrf.mxu0
        %v2450 = vadd.f32 0.0, %v2449
        %v2451 = vpop.f32.mrf.mxu0
        %v2452 = vadd.f32 0.0, %v2451
        %2453 = vmatmul.bf16.gmra.mxu0 %v2253
        %v2454 = vpop.f32.mrf.mxu0
        %v2455 = vpop.f32.mrf.mxu0
        %v2456 = vadd.f32 0.0, %v2455
        %2457 = vmatmul.bf16.gmra.mxu0 %v2254
        %v2458 = vpop.f32.mrf.mxu0
        %v2459 = vadd.f32 0.0, %v2458
        %v2460 = vpop.f32.mrf.mxu0
        %2461 = vdwg.mxu0
        %2462 = vmatpush.bf16.msra.mxu0 %v2384
        %2463 = vmatpush.bf16.msra.mxu0 %v2380
        %2464 = vmatpush.bf16.msra.mxu0 %v2376
        %2465 = vmatpush.bf16.msra.mxu0 %v2372
        %2466 = vmatpush.bf16.msra.mxu0 %v2368
        %2467 = vmatpush.bf16.msra.mxu0 %v2364
        %2468 = vmatpush.bf16.msra.mxu0 %v2360
        %2469 = vmatpush.bf16.msra.mxu0 %v2356
        %2470 = vmatmul.bf16.gmra.mxu0 %v2252
        %v2471 = vpop.f32.mrf.mxu0
        %v2472 = vadd.f32 0.0, %v2471
        %v2473 = vpop.f32.mrf.mxu0
        %v2474 = vadd.f32 0.0, %v2473
        %2475 = vmatmul.bf16.gmra.mxu0 %v2253
        %v2476 = vpop.f32.mrf.mxu0
        %v2477 = vpop.f32.mrf.mxu0
        %v2478 = vadd.f32 0.0, %v2477
        %2479 = vmatmul.bf16.gmra.mxu0 %v2254
        %v2480 = vpop.f32.mrf.mxu0
        %v2481 = vadd.f32 0.0, %v2480
        %v2482 = vpop.f32.mrf.mxu0
        %2483 = vdwg.mxu0
        %2484 = vmatpush.bf16.msra.mxu0 %v2385
        %2485 = vmatpush.bf16.msra.mxu0 %v2381
        %2486 = vmatpush.bf16.msra.mxu0 %v2377
        %2487 = vmatpush.bf16.msra.mxu0 %v2373
        %2488 = vmatpush.bf16.msra.mxu0 %v2369
        %2489 = vmatpush.bf16.msra.mxu0 %v2365
        %2490 = vmatpush.bf16.msra.mxu0 %v2361
        %2491 = vmatpush.bf16.msra.mxu0 %v2357
        %2492 = vmatmul.bf16.gmra.mxu0 %v2252
        %v2493 = vpop.f32.mrf.mxu0
        %v2494 = vadd.f32 0.0, %v2493
        %v2495 = vpop.f32.mrf.mxu0
        %v2496 = vadd.f32 0.0, %v2495
        %2497 = vmatmul.bf16.gmra.mxu0 %v2253
        %v2498 = vpop.f32.mrf.mxu0
        %v2499 = vpop.f32.mrf.mxu0
        %v2500 = vadd.f32 0.0, %v2499
        %2501 = vmatmul.bf16.gmra.mxu0 %v2254
        %v2502 = vpop.f32.mrf.mxu0
        %v2503 = vadd.f32 0.0, %v2502
        %v2504 = vpop.f32.mrf.mxu0
        %2505 = vdwg.mxu0
        %v2507 = vunpack.c.l.b16 %v2171
        %v2508 = vpack.c.b16 %v2247, %v2507
        %v2509 = vpack.c.b16 %v2249, %v2248
        %v2510 = vpack.c.b16 %v2251, %v2250
        %v2512 = vshrl.u32 %v2508, 16
        %v2514 = vrot.slane %v2512, 3
        %v2515 = vshll.u32 %v2508, 16
        %v2517 = vrot.slane %v2515, 4
        %v2518 = vor.u32 %v2514, %v2517
        %v2520 = vshrl.u32 %v2509, 16
        %v2522 = vrot.slane %v2520, 3
        %v2523 = vshll.u32 %v2509, 16
        %v2525 = vrot.slane %v2523, 4
        %v2526 = vor.u32 %v2522, %v2525
        %v2527 = vsel %vm685, %v2518, %v2526
        %v2529 = vshrl.u32 %v2510, 16
        %v2531 = vrot.slane %v2529, 3
        %v2532 = vshll.u32 %v2510, 16
        %v2534 = vrot.slane %v2532, 4
        %v2535 = vor.u32 %v2531, %v2534
        %v2536 = vsel %vm685, %v2526, %v2535
        %v2572 = vunpack.c.l.b16 %v2177
        %v2573 = vunpack.c.h.b16 %v2177
        %v2574 = vunpack.c.l.b16 %v2178
        %v2575 = vunpack.c.h.b16 %v2178
        %v2576 = vunpack.c.l.b16 %v2179
        %v2577 = vunpack.c.h.b16 %v2179
        %v2578 = vunpack.c.l.b16 %v2180
        %v2579 = vunpack.c.h.b16 %v2180
        %v2580 = vunpack.c.l.b16 %v2181
        %v2581 = vunpack.c.h.b16 %v2181
        %v2582 = vunpack.c.l.b16 %v2182
        %v2583 = vunpack.c.h.b16 %v2182
        %v2584 = vunpack.c.l.b16 %v2183
        %v2585 = vunpack.c.h.b16 %v2183
        %v2586 = vunpack.c.l.b16 %v2184
        %v2587 = vunpack.c.h.b16 %v2184
        %v2588 = vunpack.c.l.b16 %v2185
        %v2589 = vunpack.c.h.b16 %v2185
        %v2590 = vunpack.c.l.b16 %v2186
        %v2591 = vunpack.c.h.b16 %v2186
        %v2592 = vunpack.c.l.b16 %v2187
        %v2593 = vunpack.c.h.b16 %v2187
        %v2594 = vunpack.c.l.b16 %v2188
        %v2595 = vunpack.c.h.b16 %v2188
        %v2596 = vunpack.c.l.b16 %v2189
        %v2597 = vunpack.c.h.b16 %v2189
        %v2598 = vunpack.c.l.b16 %v2190
        %v2599 = vunpack.c.h.b16 %v2190
        %v2600 = vunpack.c.l.b16 %v2191
        %v2601 = vunpack.c.h.b16 %v2191
        %v2602 = vunpack.c.l.b16 %v2192
        %v2603 = vunpack.c.h.b16 %v2192
        %v2604 = vunpack.c.l.b16 %v2193
        %v2605 = vunpack.c.h.b16 %v2193
        %v2606 = vunpack.c.l.b16 %v2194
        %v2607 = vunpack.c.h.b16 %v2194
        %v2608 = vunpack.c.l.b16 %v2195
        %v2609 = vunpack.c.h.b16 %v2195
        %v2610 = vunpack.c.l.b16 %v2196
        %v2611 = vunpack.c.h.b16 %v2196
        %v2612 = vunpack.c.l.b16 %v2197
        %v2613 = vunpack.c.h.b16 %v2197
        %v2614 = vunpack.c.l.b16 %v2198
        %v2615 = vunpack.c.h.b16 %v2198
        %v2616 = vunpack.c.l.b16 %v2199
        %v2617 = vunpack.c.h.b16 %v2199
        %v2618 = vunpack.c.l.b16 %v2200
        %v2619 = vunpack.c.h.b16 %v2200
        %v2620 = vunpack.c.l.b16 %v2201
        %v2621 = vunpack.c.h.b16 %v2201
        %v2622 = vunpack.c.l.b16 %v2202
        %v2623 = vunpack.c.h.b16 %v2202
        %v2624 = vunpack.c.l.b16 %v2203
        %v2625 = vunpack.c.h.b16 %v2203
        %v2626 = vunpack.c.l.b16 %v2204
        %v2627 = vunpack.c.h.b16 %v2204
        %v2628 = vunpack.c.l.b16 %v2205
        %v2629 = vunpack.c.h.b16 %v2205
        %v2630 = vunpack.c.l.b16 %v2206
        %v2631 = vunpack.c.h.b16 %v2206
        %v2632 = vunpack.c.l.b16 %v2207
        %v2633 = vunpack.c.h.b16 %v2207
        %v2634 = vunpack.c.l.b16 %v2208
        %v2635 = vunpack.c.h.b16 %v2208
        %v2636 = vpack.c.b16 %v2576, %v2572
        %v2637 = vpack.c.b16 %v2577, %v2573
        %v2638 = vpack.c.b16 %v2578, %v2574
        %v2639 = vpack.c.b16 %v2579, %v2575
        %v2640 = vpack.c.b16 %v2584, %v2580
        %v2641 = vpack.c.b16 %v2585, %v2581
        %v2642 = vpack.c.b16 %v2586, %v2582
        %v2643 = vpack.c.b16 %v2587, %v2583
        %v2644 = vpack.c.b16 %v2592, %v2588
        %v2645 = vpack.c.b16 %v2593, %v2589
        %v2646 = vpack.c.b16 %v2594, %v2590
        %v2647 = vpack.c.b16 %v2595, %v2591
        %v2648 = vpack.c.b16 %v2600, %v2596
        %v2649 = vpack.c.b16 %v2601, %v2597
        %v2650 = vpack.c.b16 %v2602, %v2598
        %v2651 = vpack.c.b16 %v2603, %v2599
        %v2652 = vpack.c.b16 %v2608, %v2604
        %v2653 = vpack.c.b16 %v2609, %v2605
        %v2654 = vpack.c.b16 %v2610, %v2606
        %v2655 = vpack.c.b16 %v2611, %v2607
        %v2656 = vpack.c.b16 %v2616, %v2612
        %v2657 = vpack.c.b16 %v2617, %v2613
        %v2658 = vpack.c.b16 %v2618, %v2614
        %v2659 = vpack.c.b16 %v2619, %v2615
        %v2660 = vpack.c.b16 %v2624, %v2620
        %v2661 = vpack.c.b16 %v2625, %v2621
        %v2662 = vpack.c.b16 %v2626, %v2622
        %v2663 = vpack.c.b16 %v2627, %v2623
        %v2664 = vpack.c.b16 %v2632, %v2628
        %v2665 = vpack.c.b16 %v2633, %v2629
        %v2666 = vpack.c.b16 %v2634, %v2630
        %v2667 = vpack.c.b16 %v2635, %v2631
        %2700 = vmatpush.bf16.msra.mxu0 %v2664
        %2701 = vmatpush.bf16.msra.mxu0 %v2660
        %2702 = vmatpush.bf16.msra.mxu0 %v2656
        %2703 = vmatpush.bf16.msra.mxu0 %v2652
        %2704 = vmatpush.bf16.msra.mxu0 %v2648
        %2705 = vmatpush.bf16.msra.mxu0 %v2644
        %2706 = vmatpush.bf16.msra.mxu0 %v2640
        %2707 = vmatpush.bf16.msra.mxu0 %v2636
        %2708 = vmatmul.bf16.gmra.mxu0 %v2527
        %v2709 = vpop.f32.mrf.mxu0
        %v2710 = vadd.f32 %v2428, %v2709
        %v2711 = vpop.f32.mrf.mxu0
        %v2712 = vadd.f32 %v2430, %v2711
        %2713 = vmatmul.bf16.gmra.mxu0 %v2536
        %v2714 = vpop.f32.mrf.mxu0
        %v2715 = vpop.f32.mrf.mxu0
        %v2716 = vadd.f32 %v2434, %v2715
        %2717 = vmatmul.bf16.gmra.mxu0 %v2535
        %v2718 = vpop.f32.mrf.mxu0
        %v2719 = vadd.f32 %v2437, %v2718
        %v2720 = vpop.f32.mrf.mxu0
        %2721 = vdwg.mxu0
        %2722 = vmatpush.bf16.msra.mxu0 %v2665
        %2723 = vmatpush.bf16.msra.mxu0 %v2661
        %2724 = vmatpush.bf16.msra.mxu0 %v2657
        %2725 = vmatpush.bf16.msra.mxu0 %v2653
        %2726 = vmatpush.bf16.msra.mxu0 %v2649
        %2727 = vmatpush.bf16.msra.mxu0 %v2645
        %2728 = vmatpush.bf16.msra.mxu0 %v2641
        %2729 = vmatpush.bf16.msra.mxu0 %v2637
        %2730 = vmatmul.bf16.gmra.mxu0 %v2527
        %v2731 = vpop.f32.mrf.mxu0
        %v2732 = vadd.f32 %v2450, %v2731
        %v2733 = vpop.f32.mrf.mxu0
        %v2734 = vadd.f32 %v2452, %v2733
        %2735 = vmatmul.bf16.gmra.mxu0 %v2536
        %v2736 = vpop.f32.mrf.mxu0
        %v2737 = vpop.f32.mrf.mxu0
        %v2738 = vadd.f32 %v2456, %v2737
        %2739 = vmatmul.bf16.gmra.mxu0 %v2535
        %v2740 = vpop.f32.mrf.mxu0
        %v2741 = vadd.f32 %v2459, %v2740
        %v2742 = vpop.f32.mrf.mxu0
        %2743 = vdwg.mxu0
        %2744 = vmatpush.bf16.msra.mxu0 %v2666
        %2745 = vmatpush.bf16.msra.mxu0 %v2662
        %2746 = vmatpush.bf16.msra.mxu0 %v2658
        %2747 = vmatpush.bf16.msra.mxu0 %v2654
        %2748 = vmatpush.bf16.msra.mxu0 %v2650
        %2749 = vmatpush.bf16.msra.mxu0 %v2646
        %2750 = vmatpush.bf16.msra.mxu0 %v2642
        %2751 = vmatpush.bf16.msra.mxu0 %v2638
        %2752 = vmatmul.bf16.gmra.mxu0 %v2527
        %v2753 = vpop.f32.mrf.mxu0
        %v2754 = vadd.f32 %v2472, %v2753
        %v2755 = vpop.f32.mrf.mxu0
        %v2756 = vadd.f32 %v2474, %v2755
        %2757 = vmatmul.bf16.gmra.mxu0 %v2536
        %v2758 = vpop.f32.mrf.mxu0
        %v2759 = vpop.f32.mrf.mxu0
        %v2760 = vadd.f32 %v2478, %v2759
        %2761 = vmatmul.bf16.gmra.mxu0 %v2535
        %v2762 = vpop.f32.mrf.mxu0
        %v2763 = vadd.f32 %v2481, %v2762
        %v2764 = vpop.f32.mrf.mxu0
        %2765 = vdwg.mxu0
        %2766 = vmatpush.bf16.msra.mxu0 %v2667
        %2767 = vmatpush.bf16.msra.mxu0 %v2663
        %2768 = vmatpush.bf16.msra.mxu0 %v2659
        %2769 = vmatpush.bf16.msra.mxu0 %v2655
        %2770 = vmatpush.bf16.msra.mxu0 %v2651
        %2771 = vmatpush.bf16.msra.mxu0 %v2647
        %2772 = vmatpush.bf16.msra.mxu0 %v2643
        %2773 = vmatpush.bf16.msra.mxu0 %v2639
        %2774 = vmatmul.bf16.gmra.mxu0 %v2527
        %v2775 = vpop.f32.mrf.mxu0
        %v2776 = vadd.f32 %v2494, %v2775
        %v2777 = vpop.f32.mrf.mxu0
        %v2778 = vadd.f32 %v2496, %v2777
        %2779 = vmatmul.bf16.gmra.mxu0 %v2536
        %v2780 = vpop.f32.mrf.mxu0
        %v2781 = vpop.f32.mrf.mxu0
        %v2782 = vadd.f32 %v2500, %v2781
        %2783 = vmatmul.bf16.gmra.mxu0 %v2535
        %v2784 = vpop.f32.mrf.mxu0
        %v2785 = vadd.f32 %v2503, %v2784
        %v2786 = vpop.f32.mrf.mxu0
        %2787 = vdwg.mxu0
        %v2788 = vld [vmem:[#allocation4 + $0x4] sm:$0xf]
        %v2789 = vld [vmem:[#allocation4 + $0x8] sm:$0xf]
        %v2790 = vld [vmem:[#allocation4 + $0xc] sm:$0xf]
        %v2791 = vld [vmem:[#allocation4 + $0x10] sm:$0xf]
        %v2792 = vld [vmem:[#allocation4 + $0x14] sm:$0xf]
        %v2793 = vld [vmem:[#allocation4 + $0x18] sm:$0x1]
        %s2794 = scalar_lea.vmem [#allocation10], 512
        %v2795 = vld [vmem:[%s2794] sm:$0xff]
        %v2796 = vld [vmem:[%s2794 + $0x8] sm:$0xff]
        %v2797 = vld [vmem:[%s2794 + $0x10] sm:$0xff]
        %v2798 = vld [vmem:[%s2794 + $0x18] sm:$0xff]
        %v2799 = vld [vmem:[%s2794 + $0x20] sm:$0xff]
        %v2800 = vld [vmem:[%s2794 + $0x28] sm:$0xff]
        %v2801 = vld [vmem:[%s2794 + $0x30] sm:$0xff]
        %v2802 = vld [vmem:[%s2794 + $0x38] sm:$0xff]
        %v2803 = vld [vmem:[%s2794 + $0x40] sm:$0xff]
        %v2804 = vld [vmem:[%s2794 + $0x48] sm:$0xff]
        %v2805 = vld [vmem:[%s2794 + $0x50] sm:$0xff]
        %v2806 = vld [vmem:[%s2794 + $0x58] sm:$0xff]
        %v2807 = vld [vmem:[%s2794 + $0x60] sm:$0xff]
        %v2808 = vld [vmem:[%s2794 + $0x68] sm:$0xff]
        %v2809 = vld [vmem:[%s2794 + $0x70] sm:$0xff]
        %v2810 = vld [vmem:[%s2794 + $0x78] sm:$0xff]
        %v2811 = vld [vmem:[%s2794 + $0x80] sm:$0xff]
        %v2812 = vld [vmem:[%s2794 + $0x88] sm:$0xff]
        %v2813 = vld [vmem:[%s2794 + $0x90] sm:$0xff]
        %v2814 = vld [vmem:[%s2794 + $0x98] sm:$0xff]
        %v2815 = vld [vmem:[%s2794 + $0xa0] sm:$0xff]
        %v2816 = vld [vmem:[%s2794 + $0xa8] sm:$0xff]
        %v2817 = vld [vmem:[%s2794 + $0xb0] sm:$0xff]
        %v2818 = vld [vmem:[%s2794 + $0xb8] sm:$0xff]
        %v2819 = vld [vmem:[%s2794 + $0xc0] sm:$0xff]
        %v2820 = vld [vmem:[%s2794 + $0xc8] sm:$0xff]
        %v2821 = vld [vmem:[%s2794 + $0xd0] sm:$0xff]
        %v2822 = vld [vmem:[%s2794 + $0xd8] sm:$0xff]
        %v2823 = vld [vmem:[%s2794 + $0xe0] sm:$0xff]
        %v2824 = vld [vmem:[%s2794 + $0xe8] sm:$0xff]
        %v2825 = vld [vmem:[%s2794 + $0xf0] sm:$0xff]
        %v2826 = vld [vmem:[%s2794 + $0xf8] sm:$0xff]
        %v2833 = vunpack.c.l.b16 %v2788
        %v2834 = vunpack.c.l.b16 %v2789
        %v2835 = vunpack.c.l.b16 %v2790
        %v2836 = vunpack.c.l.b16 %v2791
        %v2837 = vunpack.c.l.b16 %v2792
        %v2838 = vunpack.c.l.b16 %v2793
        %v2839 = vpack.c.b16 %v2834, %v2833
        %v2840 = vpack.c.b16 %v2836, %v2835
        %v2841 = vpack.c.b16 %v2838, %v2837
        %v2843 = vshrl.u32 %v2839, 16
        %v2845 = vshll.u32 %v2839, 16
        %v2847 = vrot.slane %v2845, 1
        %v2848 = vor.u32 %v2843, %v2847
        %v2850 = vshll.u32 %v2840, 16
        %v2852 = vrot.slane %v2850, 1
        %v2853 = vsel %vm931, %v2848, %v2852
        %v2854 = vshrl.u32 %v2840, 16
        %v2856 = vor.u32 %v2854, %v2852
        %v2858 = vshll.u32 %v2841, 16
        %v2860 = vrot.slane %v2858, 1
        %v2861 = vsel %vm931, %v2856, %v2860
        %v2862 = vshrl.u32 %v2841, 16
        %v2864 = vor.u32 %v2862, %v2860
        %v2900 = vunpack.c.l.b16 %v2795
        %v2901 = vunpack.c.h.b16 %v2795
        %v2902 = vunpack.c.l.b16 %v2796
        %v2903 = vunpack.c.h.b16 %v2796
        %v2904 = vunpack.c.l.b16 %v2797
        %v2905 = vunpack.c.h.b16 %v2797
        %v2906 = vunpack.c.l.b16 %v2798
        %v2907 = vunpack.c.h.b16 %v2798
        %v2908 = vunpack.c.l.b16 %v2799
        %v2909 = vunpack.c.h.b16 %v2799
        %v2910 = vunpack.c.l.b16 %v2800
        %v2911 = vunpack.c.h.b16 %v2800
        %v2912 = vunpack.c.l.b16 %v2801
        %v2913 = vunpack.c.h.b16 %v2801
        %v2914 = vunpack.c.l.b16 %v2802
        %v2915 = vunpack.c.h.b16 %v2802
        %v2916 = vunpack.c.l.b16 %v2803
        %v2917 = vunpack.c.h.b16 %v2803
        %v2918 = vunpack.c.l.b16 %v2804
        %v2919 = vunpack.c.h.b16 %v2804
        %v2920 = vunpack.c.l.b16 %v2805
        %v2921 = vunpack.c.h.b16 %v2805
        %v2922 = vunpack.c.l.b16 %v2806
        %v2923 = vunpack.c.h.b16 %v2806
        %v2924 = vunpack.c.l.b16 %v2807
        %v2925 = vunpack.c.h.b16 %v2807
        %v2926 = vunpack.c.l.b16 %v2808
        %v2927 = vunpack.c.h.b16 %v2808
        %v2928 = vunpack.c.l.b16 %v2809
        %v2929 = vunpack.c.h.b16 %v2809
        %v2930 = vunpack.c.l.b16 %v2810
        %v2931 = vunpack.c.h.b16 %v2810
        %v2932 = vunpack.c.l.b16 %v2811
        %v2933 = vunpack.c.h.b16 %v2811
        %v2934 = vunpack.c.l.b16 %v2812
        %v2935 = vunpack.c.h.b16 %v2812
        %v2936 = vunpack.c.l.b16 %v2813
        %v2937 = vunpack.c.h.b16 %v2813
        %v2938 = vunpack.c.l.b16 %v2814
        %v2939 = vunpack.c.h.b16 %v2814
        %v2940 = vunpack.c.l.b16 %v2815
        %v2941 = vunpack.c.h.b16 %v2815
        %v2942 = vunpack.c.l.b16 %v2816
        %v2943 = vunpack.c.h.b16 %v2816
        %v2944 = vunpack.c.l.b16 %v2817
        %v2945 = vunpack.c.h.b16 %v2817
        %v2946 = vunpack.c.l.b16 %v2818
        %v2947 = vunpack.c.h.b16 %v2818
        %v2948 = vunpack.c.l.b16 %v2819
        %v2949 = vunpack.c.h.b16 %v2819
        %v2950 = vunpack.c.l.b16 %v2820
        %v2951 = vunpack.c.h.b16 %v2820
        %v2952 = vunpack.c.l.b16 %v2821
        %v2953 = vunpack.c.h.b16 %v2821
        %v2954 = vunpack.c.l.b16 %v2822
        %v2955 = vunpack.c.h.b16 %v2822
        %v2956 = vunpack.c.l.b16 %v2823
        %v2957 = vunpack.c.h.b16 %v2823
        %v2958 = vunpack.c.l.b16 %v2824
        %v2959 = vunpack.c.h.b16 %v2824
        %v2960 = vunpack.c.l.b16 %v2825
        %v2961 = vunpack.c.h.b16 %v2825
        %v2962 = vunpack.c.l.b16 %v2826
        %v2963 = vunpack.c.h.b16 %v2826
        %v2964 = vpack.c.b16 %v2904, %v2900
        %v2965 = vpack.c.b16 %v2905, %v2901
        %v2966 = vpack.c.b16 %v2906, %v2902
        %v2967 = vpack.c.b16 %v2907, %v2903
        %v2968 = vpack.c.b16 %v2912, %v2908
        %v2969 = vpack.c.b16 %v2913, %v2909
        %v2970 = vpack.c.b16 %v2914, %v2910
        %v2971 = vpack.c.b16 %v2915, %v2911
        %v2972 = vpack.c.b16 %v2920, %v2916
        %v2973 = vpack.c.b16 %v2921, %v2917
        %v2974 = vpack.c.b16 %v2922, %v2918
        %v2975 = vpack.c.b16 %v2923, %v2919
        %v2976 = vpack.c.b16 %v2928, %v2924
        %v2977 = vpack.c.b16 %v2929, %v2925
        %v2978 = vpack.c.b16 %v2930, %v2926
        %v2979 = vpack.c.b16 %v2931, %v2927
        %v2980 = vpack.c.b16 %v2936, %v2932
        %v2981 = vpack.c.b16 %v2937, %v2933
        %v2982 = vpack.c.b16 %v2938, %v2934
        %v2983 = vpack.c.b16 %v2939, %v2935
        %v2984 = vpack.c.b16 %v2944, %v2940
        %v2985 = vpack.c.b16 %v2945, %v2941
        %v2986 = vpack.c.b16 %v2946, %v2942
        %v2987 = vpack.c.b16 %v2947, %v2943
        %v2988 = vpack.c.b16 %v2952, %v2948
        %v2989 = vpack.c.b16 %v2953, %v2949
        %v2990 = vpack.c.b16 %v2954, %v2950
        %v2991 = vpack.c.b16 %v2955, %v2951
        %v2992 = vpack.c.b16 %v2960, %v2956
        %v2993 = vpack.c.b16 %v2961, %v2957
        %v2994 = vpack.c.b16 %v2962, %v2958
        %v2995 = vpack.c.b16 %v2963, %v2959
        %3028 = vmatpush.bf16.msra.mxu0 %v2992
        %3029 = vmatpush.bf16.msra.mxu0 %v2988
        %3030 = vmatpush.bf16.msra.mxu0 %v2984
        %3031 = vmatpush.bf16.msra.mxu0 %v2980
        %3032 = vmatpush.bf16.msra.mxu0 %v2976
        %3033 = vmatpush.bf16.msra.mxu0 %v2972
        %3034 = vmatpush.bf16.msra.mxu0 %v2968
        %3035 = vmatpush.bf16.msra.mxu0 %v2964
        %3036 = vmatmul.bf16.gmra.mxu0 %v2853
        %v3037 = vpop.f32.mrf.mxu0
        %v3038 = vadd.f32 0.0, %v3037
        %v3039 = vpop.f32.mrf.mxu0
        %v3040 = vadd.f32 0.0, %v3039
        %3041 = vmatmul.bf16.gmra.mxu0 %v2861
        %v3042 = vpop.f32.mrf.mxu0
        %v3043 = vpop.f32.mrf.mxu0
        %v3044 = vadd.f32 0.0, %v3043
        %3045 = vmatmul.bf16.gmra.mxu0 %v2864
        %v3046 = vpop.f32.mrf.mxu0
        %v3047 = vadd.f32 0.0, %v3046
        %v3048 = vpop.f32.mrf.mxu0
        %3049 = vdwg.mxu0
        %3050 = vmatpush.bf16.msra.mxu0 %v2993
        %3051 = vmatpush.bf16.msra.mxu0 %v2989
        %3052 = vmatpush.bf16.msra.mxu0 %v2985
        %3053 = vmatpush.bf16.msra.mxu0 %v2981
        %3054 = vmatpush.bf16.msra.mxu0 %v2977
        %3055 = vmatpush.bf16.msra.mxu0 %v2973
        %3056 = vmatpush.bf16.msra.mxu0 %v2969
        %3057 = vmatpush.bf16.msra.mxu0 %v2965
        %3058 = vmatmul.bf16.gmra.mxu0 %v2853
        %v3059 = vpop.f32.mrf.mxu0
        %v3060 = vadd.f32 0.0, %v3059
        %v3061 = vpop.f32.mrf.mxu0
        %v3062 = vadd.f32 0.0, %v3061
        %3063 = vmatmul.bf16.gmra.mxu0 %v2861
        %v3064 = vpop.f32.mrf.mxu0
        %v3065 = vpop.f32.mrf.mxu0
        %v3066 = vadd.f32 0.0, %v3065
        %3067 = vmatmul.bf16.gmra.mxu0 %v2864
        %v3068 = vpop.f32.mrf.mxu0
        %v3069 = vadd.f32 0.0, %v3068
        %v3070 = vpop.f32.mrf.mxu0
        %3071 = vdwg.mxu0
        %3072 = vmatpush.bf16.msra.mxu0 %v2994
        %3073 = vmatpush.bf16.msra.mxu0 %v2990
        %3074 = vmatpush.bf16.msra.mxu0 %v2986
        %3075 = vmatpush.bf16.msra.mxu0 %v2982
        %3076 = vmatpush.bf16.msra.mxu0 %v2978
        %3077 = vmatpush.bf16.msra.mxu0 %v2974
        %3078 = vmatpush.bf16.msra.mxu0 %v2970
        %3079 = vmatpush.bf16.msra.mxu0 %v2966
        %3080 = vmatmul.bf16.gmra.mxu0 %v2853
        %v3081 = vpop.f32.mrf.mxu0
        %v3082 = vadd.f32 0.0, %v3081
        %v3083 = vpop.f32.mrf.mxu0
        %v3084 = vadd.f32 0.0, %v3083
        %3085 = vmatmul.bf16.gmra.mxu0 %v2861
        %v3086 = vpop.f32.mrf.mxu0
        %v3087 = vpop.f32.mrf.mxu0
        %v3088 = vadd.f32 0.0, %v3087
        %3089 = vmatmul.bf16.gmra.mxu0 %v2864
        %v3090 = vpop.f32.mrf.mxu0
        %v3091 = vadd.f32 0.0, %v3090
        %v3092 = vpop.f32.mrf.mxu0
        %3093 = vdwg.mxu0
        %3094 = vmatpush.bf16.msra.mxu0 %v2995
        %3095 = vmatpush.bf16.msra.mxu0 %v2991
        %3096 = vmatpush.bf16.msra.mxu0 %v2987
        %3097 = vmatpush.bf16.msra.mxu0 %v2983
        %3098 = vmatpush.bf16.msra.mxu0 %v2979
        %3099 = vmatpush.bf16.msra.mxu0 %v2975
        %3100 = vmatpush.bf16.msra.mxu0 %v2971
        %3101 = vmatpush.bf16.msra.mxu0 %v2967
        %3102 = vmatmul.bf16.gmra.mxu0 %v2853
        %v3103 = vpop.f32.mrf.mxu0
        %v3104 = vadd.f32 0.0, %v3103
        %v3105 = vpop.f32.mrf.mxu0
        %v3106 = vadd.f32 0.0, %v3105
        %3107 = vmatmul.bf16.gmra.mxu0 %v2861
        %v3108 = vpop.f32.mrf.mxu0
        %v3109 = vpop.f32.mrf.mxu0
        %v3110 = vadd.f32 0.0, %v3109
        %3111 = vmatmul.bf16.gmra.mxu0 %v2864
        %v3112 = vpop.f32.mrf.mxu0
        %v3113 = vadd.f32 0.0, %v3112
        %v3114 = vpop.f32.mrf.mxu0
        %3115 = vdwg.mxu0
        %v3116 = vadd.f32 %v2710, %v3038
        %v3117 = vadd.f32 %v2732, %v3060
        %v3118 = vadd.f32 %v2754, %v3082
        %v3119 = vadd.f32 %v2776, %v3104
        %v3120 = vadd.f32 %v2712, %v3040
        %v3121 = vadd.f32 %v2734, %v3062
        %v3122 = vadd.f32 %v2756, %v3084
        %v3123 = vadd.f32 %v2778, %v3106
        %v3124 = vadd.f32 %v2716, %v3044
        %v3125 = vadd.f32 %v2738, %v3066
        %v3126 = vadd.f32 %v2760, %v3088
        %v3127 = vadd.f32 %v2782, %v3110
        %v3128 = vadd.f32 %v2719, %v3047
        %v3129 = vadd.f32 %v2741, %v3069
        %v3130 = vadd.f32 %v2763, %v3091
        %v3131 = vadd.f32 %v2785, %v3113
        %v3132 = vadd.f32 %v2155, %v3116
        %v3133 = vadd.f32 %v2156, %v3117
        %v3134 = vadd.f32 %v2157, %v3118
        %v3135 = vadd.f32 %v2158, %v3119
        %v3136 = vadd.f32 %v2159, %v3120
        %v3137 = vadd.f32 %v2160, %v3121
        %v3138 = vadd.f32 %v2161, %v3122
        %v3139 = vadd.f32 %v2162, %v3123
        %v3140 = vadd.f32 %v2163, %v3124
        %v3141 = vadd.f32 %v2164, %v3125
        %v3142 = vadd.f32 %v2165, %v3126
        %v3143 = vadd.f32 %v2166, %v3127
        %v3144 = vadd.f32 %v2167, %v3128
        %v3145 = vadd.f32 %v2168, %v3129
        %v3146 = vadd.f32 %v2169, %v3130
        %v3147 = vadd.f32 %v2170, %v3131
        %v3148 = vld [vmem:[#allocation6] sm:$0xff]
        %v3149 = vld [vmem:[#allocation6 + $0x8] sm:$0xff]
        %v3150 = vmul.f32 %v3133, 0.5
        %v3151 = vmul.f32 %v3137, 0.5
        %v3152 = vtanh.pop %v3150
        %v3153 = vtanh.pop %v3151
        %v3154 = vmul.f32 %v3152, 0.5
        %v3155 = vmul.f32 %v3153, 0.5
        %v3156 = vadd.f32 %v3154, 0.5
        %v3157 = vadd.f32 %v3155, 0.5
        %v3158 = vmul.f32 %v3156, %v3148
        %v3159 = vmul.f32 %v3157, %v3149
        %v3160 = vmul.f32 %v3132, 0.5
        %v3161 = vmul.f32 %v3136, 0.5
        %v3162 = vtanh.pop %v3160
        %v3163 = vtanh.pop %v3161
        %v3164 = vmul.f32 %v3162, 0.5
        %v3165 = vmul.f32 %v3163, 0.5
        %v3166 = vadd.f32 %v3164, 0.5
        %v3167 = vadd.f32 %v3165, 0.5
        %v3168 = vtanh.pop %v3134
        %v3169 = vtanh.pop %v3138
        %v3170 = vmul.f32 %v3166, %v3168
        %v3171 = vmul.f32 %v3167, %v3169
        %v3172 = vadd.f32 %v3158, %v3170
        %v3173 = vadd.f32 %v3159, %v3171
        %v3174 = vmul.f32 %v3135, 0.5
        %v3175 = vmul.f32 %v3139, 0.5
        %v3176 = vtanh.pop %v3174
        %v3177 = vtanh.pop %v3175
        %v3178 = vmul.f32 %v3176, 0.5
        %v3179 = vmul.f32 %v3177, 0.5
        %v3180 = vadd.f32 %v3178, 0.5
        %v3181 = vadd.f32 %v3179, 0.5
        %v3182 = vtanh.pop %v3172
        %v3183 = vtanh.pop %v3173
        %v3184 = vmul.f32 %v3180, %v3182
        %v3185 = vmul.f32 %v3181, %v3183
        %3186 = vst [vmem:[#allocation6] sm:$0xff] %v3172
        %3187 = vst [vmem:[#allocation6 + $0x8] sm:$0xff] %v3173
        %v3188 = vpack.c.bf16 %v3184, %v3184
        %v3189 = vpack.c.bf16 %v3185, %v3185
        %3190 = vst [vmem:[#allocation4 + $0x4] sm:$0xf] %v3188
        %3191 = vst [vmem:[#allocation4 + $0x8] sm:$0xf] %v3189
        %v3192 = vld [vmem:[#allocation6 + $0x10] sm:$0xff]
        %v3193 = vld [vmem:[#allocation6 + $0x18] sm:$0xff]
        %v3194 = vmul.f32 %v3141, 0.5
        %v3195 = vmul.f32 %v3145, 0.5
        %v3196 = vtanh.pop %v3194
        %v3197 = vtanh.pop %v3195
        %v3198 = vmul.f32 %v3196, 0.5
        %v3199 = vmul.f32 %v3197, 0.5
        %v3200 = vadd.f32 %v3198, 0.5
        %v3201 = vadd.f32 %v3199, 0.5
        %v3202 = vmul.f32 %v3200, %v3192
        %v3203 = vmul.f32 %v3201, %v3193
        %v3204 = vmul.f32 %v3140, 0.5
        %v3205 = vmul.f32 %v3144, 0.5
        %v3206 = vtanh.pop %v3204
        %v3207 = vtanh.pop %v3205
        %v3208 = vmul.f32 %v3206, 0.5
        %v3209 = vmul.f32 %v3207, 0.5
        %v3210 = vadd.f32 %v3208, 0.5
        %v3211 = vadd.f32 %v3209, 0.5
        %v3212 = vtanh.pop %v3142
        %v3213 = vtanh.pop %v3146
        %v3214 = vmul.f32 %v3210, %v3212
        %v3215 = vmul.f32 %v3211, %v3213
        %v3216 = vadd.f32 %v3202, %v3214
        %v3217 = vadd.f32 %v3203, %v3215
        %v3218 = vmul.f32 %v3143, 0.5
        %v3219 = vmul.f32 %v3147, 0.5
        %v3220 = vtanh.pop %v3218
        %v3221 = vtanh.pop %v3219
        %v3222 = vmul.f32 %v3220, 0.5
        %v3223 = vmul.f32 %v3221, 0.5
        %v3224 = vadd.f32 %v3222, 0.5
        %v3225 = vadd.f32 %v3223, 0.5
        %v3226 = vtanh.pop %v3216
        %v3227 = vtanh.pop %v3217
        %v3228 = vmul.f32 %v3224, %v3226
        %v3229 = vmul.f32 %v3225, %v3227
        %3230 = vst [vmem:[#allocation6 + $0x10] sm:$0xff] %v3216
        %3231 = vst [vmem:[#allocation6 + $0x18] sm:$0xff] %v3217
        %v3232 = vpack.c.bf16 %v3228, %v3228
        %v3233 = vpack.c.bf16 %v3229, %v3229
        %3234 = vst [vmem:[#allocation4 + $0x10] sm:$0xf] %v3232
        %3235 = vst [vmem:[#allocation4 + $0x14] sm:$0xf] %v3233
        %v3236 = vld [vmem:[#allocation4] sm:$0x8]
        %v3237 = vld [vmem:[#allocation4 + $0x4] sm:$0xf]
        %v3238 = vld [vmem:[#allocation4 + $0x8] sm:$0xf]
        %v3239 = vld [vmem:[#allocation4 + $0xc] sm:$0xf]
        %v3240 = vld [vmem:[#allocation4 + $0x10] sm:$0xf]
        %v3241 = vld [vmem:[#allocation4 + $0x14] sm:$0xf]
        %v3242 = vld [vmem:[#allocation12] sm:$0xff]
        %v3243 = vld [vmem:[#allocation12 + $0x8] sm:$0xff]
        %v3244 = vld [vmem:[#allocation12 + $0x10] sm:$0xff]
        %v3245 = vld [vmem:[#allocation12 + $0x18] sm:$0xff]
        %v3246 = vld [vmem:[#allocation12 + $0x20] sm:$0xff]
        %v3247 = vld [vmem:[#allocation12 + $0x28] sm:$0xff]
        %v3248 = vld [vmem:[#allocation12 + $0x30] sm:$0xff]
        %v3249 = vld [vmem:[#allocation12 + $0x38] sm:$0xff]
        %v3250 = vld [vmem:[#allocation12 + $0x40] sm:$0xff]
        %v3251 = vld [vmem:[#allocation12 + $0x48] sm:$0xff]
        %v3252 = vld [vmem:[#allocation12 + $0x50] sm:$0xff]
        %v3253 = vld [vmem:[#allocation12 + $0x58] sm:$0xff]
        %v3254 = vld [vmem:[#allocation12 + $0x60] sm:$0xff]
        %v3255 = vld [vmem:[#allocation12 + $0x68] sm:$0xff]
        %v3256 = vld [vmem:[#allocation12 + $0x70] sm:$0xff]
        %v3257 = vld [vmem:[#allocation12 + $0x78] sm:$0xff]
        %v3258 = vld [vmem:[#allocation12 + $0x80] sm:$0xff]
        %v3259 = vld [vmem:[#allocation12 + $0x88] sm:$0xff]
        %v3260 = vld [vmem:[#allocation12 + $0x90] sm:$0xff]
        %v3261 = vld [vmem:[#allocation12 + $0x98] sm:$0xff]
        %v3262 = vld [vmem:[#allocation12 + $0xa0] sm:$0xff]
        %v3263 = vld [vmem:[#allocation12 + $0xa8] sm:$0xff]
        %v3264 = vld [vmem:[#allocation12 + $0xb0] sm:$0xff]
        %v3265 = vld [vmem:[#allocation12 + $0xb8] sm:$0xff]
        %v3266 = vld [vmem:[#allocation12 + $0xc0] sm:$0xff]
        %v3267 = vld [vmem:[#allocation12 + $0xc8] sm:$0xff]
        %v3268 = vld [vmem:[#allocation12 + $0xd0] sm:$0xff]
        %v3269 = vld [vmem:[#allocation12 + $0xd8] sm:$0xff]
        %v3270 = vld [vmem:[#allocation12 + $0xe0] sm:$0xff]
        %v3271 = vld [vmem:[#allocation12 + $0xe8] sm:$0xff]
        %v3272 = vld [vmem:[#allocation12 + $0xf0] sm:$0xff]
        %v3273 = vld [vmem:[#allocation12 + $0xf8] sm:$0xff]
        %v3274 = vld [vmem:[%s1317] sm:$0xff]
        %v3275 = vld [vmem:[%s1317 + $0x8] sm:$0xff]
        %v3276 = vld [vmem:[%s1317 + $0x10] sm:$0xff]
        %v3277 = vld [vmem:[%s1317 + $0x18] sm:$0xff]
        %v3278 = vld [vmem:[%s1317 + $0x20] sm:$0xff]
        %v3279 = vld [vmem:[%s1317 + $0x28] sm:$0xff]
        %v3280 = vld [vmem:[%s1317 + $0x30] sm:$0xff]
        %v3281 = vld [vmem:[%s1317 + $0x38] sm:$0xff]
        %v3282 = vld [vmem:[%s1317 + $0x40] sm:$0xff]
        %v3283 = vld [vmem:[%s1317 + $0x48] sm:$0xff]
        %v3284 = vld [vmem:[%s1317 + $0x50] sm:$0xff]
        %v3285 = vld [vmem:[%s1317 + $0x58] sm:$0xff]
        %v3286 = vld [vmem:[%s1317 + $0x60] sm:$0xff]
        %v3287 = vld [vmem:[%s1317 + $0x68] sm:$0xff]
        %v3288 = vld [vmem:[%s1317 + $0x70] sm:$0xff]
        %v3289 = vld [vmem:[%s1317 + $0x78] sm:$0xff]
        %v3290 = vld [vmem:[%s1317 + $0x80] sm:$0xff]
        %v3291 = vld [vmem:[%s1317 + $0x88] sm:$0xff]
        %v3292 = vld [vmem:[%s1317 + $0x90] sm:$0xff]
        %v3293 = vld [vmem:[%s1317 + $0x98] sm:$0xff]
        %v3294 = vld [vmem:[%s1317 + $0xa0] sm:$0xff]
        %v3295 = vld [vmem:[%s1317 + $0xa8] sm:$0xff]
        %v3296 = vld [vmem:[%s1317 + $0xb0] sm:$0xff]
        %v3297 = vld [vmem:[%s1317 + $0xb8] sm:$0xff]
        %v3298 = vld [vmem:[%s1317 + $0xc0] sm:$0xff]
        %v3299 = vld [vmem:[%s1317 + $0xc8] sm:$0xff]
        %v3300 = vld [vmem:[%s1317 + $0xd0] sm:$0xff]
        %v3301 = vld [vmem:[%s1317 + $0xd8] sm:$0xff]
        %v3302 = vld [vmem:[%s1317 + $0xe0] sm:$0xff]
        %v3303 = vld [vmem:[%s1317 + $0xe8] sm:$0xff]
        %v3304 = vld [vmem:[%s1317 + $0xf0] sm:$0xff]
        %v3305 = vld [vmem:[%s1317 + $0xf8] sm:$0xff]
        %v3311 = vunpack.c.l.b16 %v3237
        %v3312 = vunpack.c.l.b16 %v3238
        %v3313 = vunpack.c.l.b16 %v3239
        %v3314 = vunpack.c.l.b16 %v3240
        %v3315 = vunpack.c.l.b16 %v3241
        %v3316 = vpack.c.b16 %v3312, %v3311
        %v3317 = vpack.c.b16 %v3314, %v3313
        %v3318 = vpack.c.b16 %v3315, %v3315
        %v3354 = vunpack.c.l.b16 %v3274
        %v3355 = vunpack.c.h.b16 %v3274
        %v3356 = vunpack.c.l.b16 %v3275
        %v3357 = vunpack.c.h.b16 %v3275
        %v3358 = vunpack.c.l.b16 %v3276
        %v3359 = vunpack.c.h.b16 %v3276
        %v3360 = vunpack.c.l.b16 %v3277
        %v3361 = vunpack.c.h.b16 %v3277
        %v3362 = vunpack.c.l.b16 %v3278
        %v3363 = vunpack.c.h.b16 %v3278
        %v3364 = vunpack.c.l.b16 %v3279
        %v3365 = vunpack.c.h.b16 %v3279
        %v3366 = vunpack.c.l.b16 %v3280
        %v3367 = vunpack.c.h.b16 %v3280
        %v3368 = vunpack.c.l.b16 %v3281
        %v3369 = vunpack.c.h.b16 %v3281
        %v3370 = vunpack.c.l.b16 %v3282
        %v3371 = vunpack.c.h.b16 %v3282
        %v3372 = vunpack.c.l.b16 %v3283
        %v3373 = vunpack.c.h.b16 %v3283
        %v3374 = vunpack.c.l.b16 %v3284
        %v3375 = vunpack.c.h.b16 %v3284
        %v3376 = vunpack.c.l.b16 %v3285
        %v3377 = vunpack.c.h.b16 %v3285
        %v3378 = vunpack.c.l.b16 %v3286
        %v3379 = vunpack.c.h.b16 %v3286
        %v3380 = vunpack.c.l.b16 %v3287
        %v3381 = vunpack.c.h.b16 %v3287
        %v3382 = vunpack.c.l.b16 %v3288
        %v3383 = vunpack.c.h.b16 %v3288
        %v3384 = vunpack.c.l.b16 %v3289
        %v3385 = vunpack.c.h.b16 %v3289
        %v3386 = vunpack.c.l.b16 %v3290
        %v3387 = vunpack.c.h.b16 %v3290
        %v3388 = vunpack.c.l.b16 %v3291
        %v3389 = vunpack.c.h.b16 %v3291
        %v3390 = vunpack.c.l.b16 %v3292
        %v3391 = vunpack.c.h.b16 %v3292
        %v3392 = vunpack.c.l.b16 %v3293
        %v3393 = vunpack.c.h.b16 %v3293
        %v3394 = vunpack.c.l.b16 %v3294
        %v3395 = vunpack.c.h.b16 %v3294
        %v3396 = vunpack.c.l.b16 %v3295
        %v3397 = vunpack.c.h.b16 %v3295
        %v3398 = vunpack.c.l.b16 %v3296
        %v3399 = vunpack.c.h.b16 %v3296
        %v3400 = vunpack.c.l.b16 %v3297
        %v3401 = vunpack.c.h.b16 %v3297
        %v3402 = vunpack.c.l.b16 %v3298
        %v3403 = vunpack.c.h.b16 %v3298
        %v3404 = vunpack.c.l.b16 %v3299
        %v3405 = vunpack.c.h.b16 %v3299
        %v3406 = vunpack.c.l.b16 %v3300
        %v3407 = vunpack.c.h.b16 %v3300
        %v3408 = vunpack.c.l.b16 %v3301
        %v3409 = vunpack.c.h.b16 %v3301
        %v3410 = vunpack.c.l.b16 %v3302
        %v3411 = vunpack.c.h.b16 %v3302
        %v3412 = vunpack.c.l.b16 %v3303
        %v3413 = vunpack.c.h.b16 %v3303
        %v3414 = vunpack.c.l.b16 %v3304
        %v3415 = vunpack.c.h.b16 %v3304
        %v3416 = vunpack.c.l.b16 %v3305
        %v3417 = vunpack.c.h.b16 %v3305
        %v3418 = vpack.c.b16 %v3358, %v3354
        %v3419 = vpack.c.b16 %v3359, %v3355
        %v3420 = vpack.c.b16 %v3360, %v3356
        %v3421 = vpack.c.b16 %v3361, %v3357
        %v3422 = vpack.c.b16 %v3366, %v3362
        %v3423 = vpack.c.b16 %v3367, %v3363
        %v3424 = vpack.c.b16 %v3368, %v3364
        %v3425 = vpack.c.b16 %v3369, %v3365
        %v3426 = vpack.c.b16 %v3374, %v3370
        %v3427 = vpack.c.b16 %v3375, %v3371
        %v3428 = vpack.c.b16 %v3376, %v3372
        %v3429 = vpack.c.b16 %v3377, %v3373
        %v3430 = vpack.c.b16 %v3382, %v3378
        %v3431 = vpack.c.b16 %v3383, %v3379
        %v3432 = vpack.c.b16 %v3384, %v3380
        %v3433 = vpack.c.b16 %v3385, %v3381
        %v3434 = vpack.c.b16 %v3390, %v3386
        %v3435 = vpack.c.b16 %v3391, %v3387
        %v3436 = vpack.c.b16 %v3392, %v3388
        %v3437 = vpack.c.b16 %v3393, %v3389
        %v3438 = vpack.c.b16 %v3398, %v3394
        %v3439 = vpack.c.b16 %v3399, %v3395
        %v3440 = vpack.c.b16 %v3400, %v3396
        %v3441 = vpack.c.b16 %v3401, %v3397
        %v3442 = vpack.c.b16 %v3406, %v3402
        %v3443 = vpack.c.b16 %v3407, %v3403
        %v3444 = vpack.c.b16 %v3408, %v3404
        %v3445 = vpack.c.b16 %v3409, %v3405
        %v3446 = vpack.c.b16 %v3414, %v3410
        %v3447 = vpack.c.b16 %v3415, %v3411
        %v3448 = vpack.c.b16 %v3416, %v3412
        %v3449 = vpack.c.b16 %v3417, %v3413
        %3482 = vmatpush.bf16.msra.mxu0 %v3446
        %3483 = vmatpush.bf16.msra.mxu0 %v3442
        %3484 = vmatpush.bf16.msra.mxu0 %v3438
        %3485 = vmatpush.bf16.msra.mxu0 %v3434
        %3486 = vmatpush.bf16.msra.mxu0 %v3430
        %3487 = vmatpush.bf16.msra.mxu0 %v3426
        %3488 = vmatpush.bf16.msra.mxu0 %v3422
        %3489 = vmatpush.bf16.msra.mxu0 %v3418
        %3490 = vmatmul.bf16.gmra.mxu0 %v3316
        %v3491 = vpop.f32.mrf.mxu0
        %v3492 = vadd.f32 0.0, %v3491
        %v3493 = vpop.f32.mrf.mxu0
        %v3494 = vadd.f32 0.0, %v3493
        %3495 = vmatmul.bf16.gmra.mxu0 %v3317
        %v3496 = vpop.f32.mrf.mxu0
        %v3497 = vpop.f32.mrf.mxu0
        %v3498 = vadd.f32 0.0, %v3497
        %3499 = vmatmul.bf16.gmra.mxu0 %v3318
        %v3500 = vpop.f32.mrf.mxu0
        %v3501 = vadd.f32 0.0, %v3500
        %v3502 = vpop.f32.mrf.mxu0
        %3503 = vdwg.mxu0
        %3504 = vmatpush.bf16.msra.mxu0 %v3447
        %3505 = vmatpush.bf16.msra.mxu0 %v3443
        %3506 = vmatpush.bf16.msra.mxu0 %v3439
        %3507 = vmatpush.bf16.msra.mxu0 %v3435
        %3508 = vmatpush.bf16.msra.mxu0 %v3431
        %3509 = vmatpush.bf16.msra.mxu0 %v3427
        %3510 = vmatpush.bf16.msra.mxu0 %v3423
        %3511 = vmatpush.bf16.msra.mxu0 %v3419
        %3512 = vmatmul.bf16.gmra.mxu0 %v3316
        %v3513 = vpop.f32.mrf.mxu0
        %v3514 = vadd.f32 0.0, %v3513
        %v3515 = vpop.f32.mrf.mxu0
        %v3516 = vadd.f32 0.0, %v3515
        %3517 = vmatmul.bf16.gmra.mxu0 %v3317
        %v3518 = vpop.f32.mrf.mxu0
        %v3519 = vpop.f32.mrf.mxu0
        %v3520 = vadd.f32 0.0, %v3519
        %3521 = vmatmul.bf16.gmra.mxu0 %v3318
        %v3522 = vpop.f32.mrf.mxu0
        %v3523 = vadd.f32 0.0, %v3522
        %v3524 = vpop.f32.mrf.mxu0
        %3525 = vdwg.mxu0
        %3526 = vmatpush.bf16.msra.mxu0 %v3448
        %3527 = vmatpush.bf16.msra.mxu0 %v3444
        %3528 = vmatpush.bf16.msra.mxu0 %v3440
        %3529 = vmatpush.bf16.msra.mxu0 %v3436
        %3530 = vmatpush.bf16.msra.mxu0 %v3432
        %3531 = vmatpush.bf16.msra.mxu0 %v3428
        %3532 = vmatpush.bf16.msra.mxu0 %v3424
        %3533 = vmatpush.bf16.msra.mxu0 %v3420
        %3534 = vmatmul.bf16.gmra.mxu0 %v3316
        %v3535 = vpop.f32.mrf.mxu0
        %v3536 = vadd.f32 0.0, %v3535
        %v3537 = vpop.f32.mrf.mxu0
        %v3538 = vadd.f32 0.0, %v3537
        %3539 = vmatmul.bf16.gmra.mxu0 %v3317
        %v3540 = vpop.f32.mrf.mxu0
        %v3541 = vpop.f32.mrf.mxu0
        %v3542 = vadd.f32 0.0, %v3541
        %3543 = vmatmul.bf16.gmra.mxu0 %v3318
        %v3544 = vpop.f32.mrf.mxu0
        %v3545 = vadd.f32 0.0, %v3544
        %v3546 = vpop.f32.mrf.mxu0
        %3547 = vdwg.mxu0
        %3548 = vmatpush.bf16.msra.mxu0 %v3449
        %3549 = vmatpush.bf16.msra.mxu0 %v3445
        %3550 = vmatpush.bf16.msra.mxu0 %v3441
        %3551 = vmatpush.bf16.msra.mxu0 %v3437
        %3552 = vmatpush.bf16.msra.mxu0 %v3433
        %3553 = vmatpush.bf16.msra.mxu0 %v3429
        %3554 = vmatpush.bf16.msra.mxu0 %v3425
        %3555 = vmatpush.bf16.msra.mxu0 %v3421
        %3556 = vmatmul.bf16.gmra.mxu0 %v3316
        %v3557 = vpop.f32.mrf.mxu0
        %v3558 = vadd.f32 0.0, %v3557
        %v3559 = vpop.f32.mrf.mxu0
        %v3560 = vadd.f32 0.0, %v3559
        %3561 = vmatmul.bf16.gmra.mxu0 %v3317
        %v3562 = vpop.f32.mrf.mxu0
        %v3563 = vpop.f32.mrf.mxu0
        %v3564 = vadd.f32 0.0, %v3563
        %3565 = vmatmul.bf16.gmra.mxu0 %v3318
        %v3566 = vpop.f32.mrf.mxu0
        %v3567 = vadd.f32 0.0, %v3566
        %v3568 = vpop.f32.mrf.mxu0
        %3569 = vdwg.mxu0
        %v3571 = vunpack.c.l.b16 %v3236
        %v3572 = vpack.c.b16 %v3311, %v3571
        %v3573 = vpack.c.b16 %v3313, %v3312
        %v3574 = vpack.c.b16 %v3315, %v3314
        %v3576 = vshrl.u32 %v3572, 16
        %v3578 = vrot.slane %v3576, 3
        %v3579 = vshll.u32 %v3572, 16
        %v3581 = vrot.slane %v3579, 4
        %v3582 = vor.u32 %v3578, %v3581
        %v3584 = vshrl.u32 %v3573, 16
        %v3586 = vrot.slane %v3584, 3
        %v3587 = vshll.u32 %v3573, 16
        %v3589 = vrot.slane %v3587, 4
        %v3590 = vor.u32 %v3586, %v3589
        %v3591 = vsel %vm685, %v3582, %v3590
        %v3593 = vshrl.u32 %v3574, 16
        %v3595 = vrot.slane %v3593, 3
        %v3596 = vshll.u32 %v3574, 16
        %v3598 = vrot.slane %v3596, 4
        %v3599 = vor.u32 %v3595, %v3598
        %v3600 = vsel %vm685, %v3590, %v3599
        %v3636 = vunpack.c.l.b16 %v3242
        %v3637 = vunpack.c.h.b16 %v3242
        %v3638 = vunpack.c.l.b16 %v3243
        %v3639 = vunpack.c.h.b16 %v3243
        %v3640 = vunpack.c.l.b16 %v3244
        %v3641 = vunpack.c.h.b16 %v3244
        %v3642 = vunpack.c.l.b16 %v3245
        %v3643 = vunpack.c.h.b16 %v3245
        %v3644 = vunpack.c.l.b16 %v3246
        %v3645 = vunpack.c.h.b16 %v3246
        %v3646 = vunpack.c.l.b16 %v3247
        %v3647 = vunpack.c.h.b16 %v3247
        %v3648 = vunpack.c.l.b16 %v3248
        %v3649 = vunpack.c.h.b16 %v3248
        %v3650 = vunpack.c.l.b16 %v3249
        %v3651 = vunpack.c.h.b16 %v3249
        %v3652 = vunpack.c.l.b16 %v3250
        %v3653 = vunpack.c.h.b16 %v3250
        %v3654 = vunpack.c.l.b16 %v3251
        %v3655 = vunpack.c.h.b16 %v3251
        %v3656 = vunpack.c.l.b16 %v3252
        %v3657 = vunpack.c.h.b16 %v3252
        %v3658 = vunpack.c.l.b16 %v3253
        %v3659 = vunpack.c.h.b16 %v3253
        %v3660 = vunpack.c.l.b16 %v3254
        %v3661 = vunpack.c.h.b16 %v3254
        %v3662 = vunpack.c.l.b16 %v3255
        %v3663 = vunpack.c.h.b16 %v3255
        %v3664 = vunpack.c.l.b16 %v3256
        %v3665 = vunpack.c.h.b16 %v3256
        %v3666 = vunpack.c.l.b16 %v3257
        %v3667 = vunpack.c.h.b16 %v3257
        %v3668 = vunpack.c.l.b16 %v3258
        %v3669 = vunpack.c.h.b16 %v3258
        %v3670 = vunpack.c.l.b16 %v3259
        %v3671 = vunpack.c.h.b16 %v3259
        %v3672 = vunpack.c.l.b16 %v3260
        %v3673 = vunpack.c.h.b16 %v3260
        %v3674 = vunpack.c.l.b16 %v3261
        %v3675 = vunpack.c.h.b16 %v3261
        %v3676 = vunpack.c.l.b16 %v3262
        %v3677 = vunpack.c.h.b16 %v3262
        %v3678 = vunpack.c.l.b16 %v3263
        %v3679 = vunpack.c.h.b16 %v3263
        %v3680 = vunpack.c.l.b16 %v3264
        %v3681 = vunpack.c.h.b16 %v3264
        %v3682 = vunpack.c.l.b16 %v3265
        %v3683 = vunpack.c.h.b16 %v3265
        %v3684 = vunpack.c.l.b16 %v3266
        %v3685 = vunpack.c.h.b16 %v3266
        %v3686 = vunpack.c.l.b16 %v3267
        %v3687 = vunpack.c.h.b16 %v3267
        %v3688 = vunpack.c.l.b16 %v3268
        %v3689 = vunpack.c.h.b16 %v3268
        %v3690 = vunpack.c.l.b16 %v3269
        %v3691 = vunpack.c.h.b16 %v3269
        %v3692 = vunpack.c.l.b16 %v3270
        %v3693 = vunpack.c.h.b16 %v3270
        %v3694 = vunpack.c.l.b16 %v3271
        %v3695 = vunpack.c.h.b16 %v3271
        %v3696 = vunpack.c.l.b16 %v3272
        %v3697 = vunpack.c.h.b16 %v3272
        %v3698 = vunpack.c.l.b16 %v3273
        %v3699 = vunpack.c.h.b16 %v3273
        %v3700 = vpack.c.b16 %v3640, %v3636
        %v3701 = vpack.c.b16 %v3641, %v3637
        %v3702 = vpack.c.b16 %v3642, %v3638
        %v3703 = vpack.c.b16 %v3643, %v3639
        %v3704 = vpack.c.b16 %v3648, %v3644
        %v3705 = vpack.c.b16 %v3649, %v3645
        %v3706 = vpack.c.b16 %v3650, %v3646
        %v3707 = vpack.c.b16 %v3651, %v3647
        %v3708 = vpack.c.b16 %v3656, %v3652
        %v3709 = vpack.c.b16 %v3657, %v3653
        %v3710 = vpack.c.b16 %v3658, %v3654
        %v3711 = vpack.c.b16 %v3659, %v3655
        %v3712 = vpack.c.b16 %v3664, %v3660
        %v3713 = vpack.c.b16 %v3665, %v3661
        %v3714 = vpack.c.b16 %v3666, %v3662
        %v3715 = vpack.c.b16 %v3667, %v3663
        %v3716 = vpack.c.b16 %v3672, %v3668
        %v3717 = vpack.c.b16 %v3673, %v3669
        %v3718 = vpack.c.b16 %v3674, %v3670
        %v3719 = vpack.c.b16 %v3675, %v3671
        %v3720 = vpack.c.b16 %v3680, %v3676
        %v3721 = vpack.c.b16 %v3681, %v3677
        %v3722 = vpack.c.b16 %v3682, %v3678
        %v3723 = vpack.c.b16 %v3683, %v3679
        %v3724 = vpack.c.b16 %v3688, %v3684
        %v3725 = vpack.c.b16 %v3689, %v3685
        %v3726 = vpack.c.b16 %v3690, %v3686
        %v3727 = vpack.c.b16 %v3691, %v3687
        %v3728 = vpack.c.b16 %v3696, %v3692
        %v3729 = vpack.c.b16 %v3697, %v3693
        %v3730 = vpack.c.b16 %v3698, %v3694
        %v3731 = vpack.c.b16 %v3699, %v3695
        %3764 = vmatpush.bf16.msra.mxu0 %v3728
        %3765 = vmatpush.bf16.msra.mxu0 %v3724
        %3766 = vmatpush.bf16.msra.mxu0 %v3720
        %3767 = vmatpush.bf16.msra.mxu0 %v3716
        %3768 = vmatpush.bf16.msra.mxu0 %v3712
        %3769 = vmatpush.bf16.msra.mxu0 %v3708
        %3770 = vmatpush.bf16.msra.mxu0 %v3704
        %3771 = vmatpush.bf16.msra.mxu0 %v3700
        %3772 = vmatmul.bf16.gmra.mxu0 %v3591
        %v3773 = vpop.f32.mrf.mxu0
        %v3774 = vadd.f32 %v3492, %v3773
        %v3775 = vpop.f32.mrf.mxu0
        %v3776 = vadd.f32 %v3494, %v3775
        %3777 = vmatmul.bf16.gmra.mxu0 %v3600
        %v3778 = vpop.f32.mrf.mxu0
        %v3779 = vpop.f32.mrf.mxu0
        %v3780 = vadd.f32 %v3498, %v3779
        %3781 = vmatmul.bf16.gmra.mxu0 %v3599
        %v3782 = vpop.f32.mrf.mxu0
        %v3783 = vadd.f32 %v3501, %v3782
        %v3784 = vpop.f32.mrf.mxu0
        %3785 = vdwg.mxu0
        %3786 = vmatpush.bf16.msra.mxu0 %v3729
        %3787 = vmatpush.bf16.msra.mxu0 %v3725
        %3788 = vmatpush.bf16.msra.mxu0 %v3721
        %3789 = vmatpush.bf16.msra.mxu0 %v3717
        %3790 = vmatpush.bf16.msra.mxu0 %v3713
        %3791 = vmatpush.bf16.msra.mxu0 %v3709
        %3792 = vmatpush.bf16.msra.mxu0 %v3705
        %3793 = vmatpush.bf16.msra.mxu0 %v3701
        %3794 = vmatmul.bf16.gmra.mxu0 %v3591
        %v3795 = vpop.f32.mrf.mxu0
        %v3796 = vadd.f32 %v3514, %v3795
        %v3797 = vpop.f32.mrf.mxu0
        %v3798 = vadd.f32 %v3516, %v3797
        %3799 = vmatmul.bf16.gmra.mxu0 %v3600
        %v3800 = vpop.f32.mrf.mxu0
        %v3801 = vpop.f32.mrf.mxu0
        %v3802 = vadd.f32 %v3520, %v3801
        %3803 = vmatmul.bf16.gmra.mxu0 %v3599
        %v3804 = vpop.f32.mrf.mxu0
        %v3805 = vadd.f32 %v3523, %v3804
        %v3806 = vpop.f32.mrf.mxu0
        %3807 = vdwg.mxu0
        %3808 = vmatpush.bf16.msra.mxu0 %v3730
        %3809 = vmatpush.bf16.msra.mxu0 %v3726
        %3810 = vmatpush.bf16.msra.mxu0 %v3722
        %3811 = vmatpush.bf16.msra.mxu0 %v3718
        %3812 = vmatpush.bf16.msra.mxu0 %v3714
        %3813 = vmatpush.bf16.msra.mxu0 %v3710
        %3814 = vmatpush.bf16.msra.mxu0 %v3706
        %3815 = vmatpush.bf16.msra.mxu0 %v3702
        %3816 = vmatmul.bf16.gmra.mxu0 %v3591
        %v3817 = vpop.f32.mrf.mxu0
        %v3818 = vadd.f32 %v3536, %v3817
        %v3819 = vpop.f32.mrf.mxu0
        %v3820 = vadd.f32 %v3538, %v3819
        %3821 = vmatmul.bf16.gmra.mxu0 %v3600
        %v3822 = vpop.f32.mrf.mxu0
        %v3823 = vpop.f32.mrf.mxu0
        %v3824 = vadd.f32 %v3542, %v3823
        %3825 = vmatmul.bf16.gmra.mxu0 %v3599
        %v3826 = vpop.f32.mrf.mxu0
        %v3827 = vadd.f32 %v3545, %v3826
        %v3828 = vpop.f32.mrf.mxu0
        %3829 = vdwg.mxu0
        %3830 = vmatpush.bf16.msra.mxu0 %v3731
        %3831 = vmatpush.bf16.msra.mxu0 %v3727
        %3832 = vmatpush.bf16.msra.mxu0 %v3723
        %3833 = vmatpush.bf16.msra.mxu0 %v3719
        %3834 = vmatpush.bf16.msra.mxu0 %v3715
        %3835 = vmatpush.bf16.msra.mxu0 %v3711
        %3836 = vmatpush.bf16.msra.mxu0 %v3707
        %3837 = vmatpush.bf16.msra.mxu0 %v3703
        %3838 = vmatmul.bf16.gmra.mxu0 %v3591
        %v3839 = vpop.f32.mrf.mxu0
        %v3840 = vadd.f32 %v3558, %v3839
        %v3841 = vpop.f32.mrf.mxu0
        %v3842 = vadd.f32 %v3560, %v3841
        %3843 = vmatmul.bf16.gmra.mxu0 %v3600
        %v3844 = vpop.f32.mrf.mxu0
        %v3845 = vpop.f32.mrf.mxu0
        %v3846 = vadd.f32 %v3564, %v3845
        %3847 = vmatmul.bf16.gmra.mxu0 %v3599
        %v3848 = vpop.f32.mrf.mxu0
        %v3849 = vadd.f32 %v3567, %v3848
        %v3850 = vpop.f32.mrf.mxu0
        %3851 = vdwg.mxu0
        %v3852 = vld [vmem:[#allocation4 + $0x4] sm:$0xf]
        %v3853 = vld [vmem:[#allocation4 + $0x8] sm:$0xf]
        %v3854 = vld [vmem:[#allocation4 + $0xc] sm:$0xf]
        %v3855 = vld [vmem:[#allocation4 + $0x10] sm:$0xf]
        %v3856 = vld [vmem:[#allocation4 + $0x14] sm:$0xf]
        %v3857 = vld [vmem:[#allocation4 + $0x18] sm:$0x1]
        %v3858 = vld [vmem:[%s1794] sm:$0xff]
        %v3859 = vld [vmem:[%s1794 + $0x8] sm:$0xff]
        %v3860 = vld [vmem:[%s1794 + $0x10] sm:$0xff]
        %v3861 = vld [vmem:[%s1794 + $0x18] sm:$0xff]
        %v3862 = vld [vmem:[%s1794 + $0x20] sm:$0xff]
        %v3863 = vld [vmem:[%s1794 + $0x28] sm:$0xff]
        %v3864 = vld [vmem:[%s1794 + $0x30] sm:$0xff]
        %v3865 = vld [vmem:[%s1794 + $0x38] sm:$0xff]
        %v3866 = vld [vmem:[%s1794 + $0x40] sm:$0xff]
        %v3867 = vld [vmem:[%s1794 + $0x48] sm:$0xff]
        %v3868 = vld [vmem:[%s1794 + $0x50] sm:$0xff]
        %v3869 = vld [vmem:[%s1794 + $0x58] sm:$0xff]
        %v3870 = vld [vmem:[%s1794 + $0x60] sm:$0xff]
        %v3871 = vld [vmem:[%s1794 + $0x68] sm:$0xff]
        %v3872 = vld [vmem:[%s1794 + $0x70] sm:$0xff]
        %v3873 = vld [vmem:[%s1794 + $0x78] sm:$0xff]
        %v3874 = vld [vmem:[%s1794 + $0x80] sm:$0xff]
        %v3875 = vld [vmem:[%s1794 + $0x88] sm:$0xff]
        %v3876 = vld [vmem:[%s1794 + $0x90] sm:$0xff]
        %v3877 = vld [vmem:[%s1794 + $0x98] sm:$0xff]
        %v3878 = vld [vmem:[%s1794 + $0xa0] sm:$0xff]
        %v3879 = vld [vmem:[%s1794 + $0xa8] sm:$0xff]
        %v3880 = vld [vmem:[%s1794 + $0xb0] sm:$0xff]
        %v3881 = vld [vmem:[%s1794 + $0xb8] sm:$0xff]
        %v3882 = vld [vmem:[%s1794 + $0xc0] sm:$0xff]
        %v3883 = vld [vmem:[%s1794 + $0xc8] sm:$0xff]
        %v3884 = vld [vmem:[%s1794 + $0xd0] sm:$0xff]
        %v3885 = vld [vmem:[%s1794 + $0xd8] sm:$0xff]
        %v3886 = vld [vmem:[%s1794 + $0xe0] sm:$0xff]
        %v3887 = vld [vmem:[%s1794 + $0xe8] sm:$0xff]
        %v3888 = vld [vmem:[%s1794 + $0xf0] sm:$0xff]
        %v3889 = vld [vmem:[%s1794 + $0xf8] sm:$0xff]
        %v3896 = vunpack.c.l.b16 %v3852
        %v3897 = vunpack.c.l.b16 %v3853
        %v3898 = vunpack.c.l.b16 %v3854
        %v3899 = vunpack.c.l.b16 %v3855
        %v3900 = vunpack.c.l.b16 %v3856
        %v3901 = vunpack.c.l.b16 %v3857
        %v3902 = vpack.c.b16 %v3897, %v3896
        %v3903 = vpack.c.b16 %v3899, %v3898
        %v3904 = vpack.c.b16 %v3901, %v3900
        %v3906 = vshrl.u32 %v3902, 16
        %v3908 = vshll.u32 %v3902, 16
        %v3910 = vrot.slane %v3908, 1
        %v3911 = vor.u32 %v3906, %v3910
        %v3913 = vshll.u32 %v3903, 16
        %v3915 = vrot.slane %v3913, 1
        %v3916 = vsel %vm931, %v3911, %v3915
        %v3917 = vshrl.u32 %v3903, 16
        %v3919 = vor.u32 %v3917, %v3915
        %v3921 = vshll.u32 %v3904, 16
        %v3923 = vrot.slane %v3921, 1
        %v3924 = vsel %vm931, %v3919, %v3923
        %v3925 = vshrl.u32 %v3904, 16
        %v3927 = vor.u32 %v3925, %v3923
        %v3963 = vunpack.c.l.b16 %v3858
        %v3964 = vunpack.c.h.b16 %v3858
        %v3965 = vunpack.c.l.b16 %v3859
        %v3966 = vunpack.c.h.b16 %v3859
        %v3967 = vunpack.c.l.b16 %v3860
        %v3968 = vunpack.c.h.b16 %v3860
        %v3969 = vunpack.c.l.b16 %v3861
        %v3970 = vunpack.c.h.b16 %v3861
        %v3971 = vunpack.c.l.b16 %v3862
        %v3972 = vunpack.c.h.b16 %v3862
        %v3973 = vunpack.c.l.b16 %v3863
        %v3974 = vunpack.c.h.b16 %v3863
        %v3975 = vunpack.c.l.b16 %v3864
        %v3976 = vunpack.c.h.b16 %v3864
        %v3977 = vunpack.c.l.b16 %v3865
        %v3978 = vunpack.c.h.b16 %v3865
        %v3979 = vunpack.c.l.b16 %v3866
        %v3980 = vunpack.c.h.b16 %v3866
        %v3981 = vunpack.c.l.b16 %v3867
        %v3982 = vunpack.c.h.b16 %v3867
        %v3983 = vunpack.c.l.b16 %v3868
        %v3984 = vunpack.c.h.b16 %v3868
        %v3985 = vunpack.c.l.b16 %v3869
        %v3986 = vunpack.c.h.b16 %v3869
        %v3987 = vunpack.c.l.b16 %v3870
        %v3988 = vunpack.c.h.b16 %v3870
        %v3989 = vunpack.c.l.b16 %v3871
        %v3990 = vunpack.c.h.b16 %v3871
        %v3991 = vunpack.c.l.b16 %v3872
        %v3992 = vunpack.c.h.b16 %v3872
        %v3993 = vunpack.c.l.b16 %v3873
        %v3994 = vunpack.c.h.b16 %v3873
        %v3995 = vunpack.c.l.b16 %v3874
        %v3996 = vunpack.c.h.b16 %v3874
        %v3997 = vunpack.c.l.b16 %v3875
        %v3998 = vunpack.c.h.b16 %v3875
        %v3999 = vunpack.c.l.b16 %v3876
        %v4000 = vunpack.c.h.b16 %v3876
        %v4001 = vunpack.c.l.b16 %v3877
        %v4002 = vunpack.c.h.b16 %v3877
        %v4003 = vunpack.c.l.b16 %v3878
        %v4004 = vunpack.c.h.b16 %v3878
        %v4005 = vunpack.c.l.b16 %v3879
        %v4006 = vunpack.c.h.b16 %v3879
        %v4007 = vunpack.c.l.b16 %v3880
        %v4008 = vunpack.c.h.b16 %v3880
        %v4009 = vunpack.c.l.b16 %v3881
        %v4010 = vunpack.c.h.b16 %v3881
        %v4011 = vunpack.c.l.b16 %v3882
        %v4012 = vunpack.c.h.b16 %v3882
        %v4013 = vunpack.c.l.b16 %v3883
        %v4014 = vunpack.c.h.b16 %v3883
        %v4015 = vunpack.c.l.b16 %v3884
        %v4016 = vunpack.c.h.b16 %v3884
        %v4017 = vunpack.c.l.b16 %v3885
        %v4018 = vunpack.c.h.b16 %v3885
        %v4019 = vunpack.c.l.b16 %v3886
        %v4020 = vunpack.c.h.b16 %v3886
        %v4021 = vunpack.c.l.b16 %v3887
        %v4022 = vunpack.c.h.b16 %v3887
        %v4023 = vunpack.c.l.b16 %v3888
        %v4024 = vunpack.c.h.b16 %v3888
        %v4025 = vunpack.c.l.b16 %v3889
        %v4026 = vunpack.c.h.b16 %v3889
        %v4027 = vpack.c.b16 %v3967, %v3963
        %v4028 = vpack.c.b16 %v3968, %v3964
        %v4029 = vpack.c.b16 %v3969, %v3965
        %v4030 = vpack.c.b16 %v3970, %v3966
        %v4031 = vpack.c.b16 %v3975, %v3971
        %v4032 = vpack.c.b16 %v3976, %v3972
        %v4033 = vpack.c.b16 %v3977, %v3973
        %v4034 = vpack.c.b16 %v3978, %v3974
        %v4035 = vpack.c.b16 %v3983, %v3979
        %v4036 = vpack.c.b16 %v3984, %v3980
        %v4037 = vpack.c.b16 %v3985, %v3981
        %v4038 = vpack.c.b16 %v3986, %v3982
        %v4039 = vpack.c.b16 %v3991, %v3987
        %v4040 = vpack.c.b16 %v3992, %v3988
        %v4041 = vpack.c.b16 %v3993, %v3989
        %v4042 = vpack.c.b16 %v3994, %v3990
        %v4043 = vpack.c.b16 %v3999, %v3995
        %v4044 = vpack.c.b16 %v4000, %v3996
        %v4045 = vpack.c.b16 %v4001, %v3997
        %v4046 = vpack.c.b16 %v4002, %v3998
        %v4047 = vpack.c.b16 %v4007, %v4003
        %v4048 = vpack.c.b16 %v4008, %v4004
        %v4049 = vpack.c.b16 %v4009, %v4005
        %v4050 = vpack.c.b16 %v4010, %v4006
        %v4051 = vpack.c.b16 %v4015, %v4011
        %v4052 = vpack.c.b16 %v4016, %v4012
        %v4053 = vpack.c.b16 %v4017, %v4013
        %v4054 = vpack.c.b16 %v4018, %v4014
        %v4055 = vpack.c.b16 %v4023, %v4019
        %v4056 = vpack.c.b16 %v4024, %v4020
        %v4057 = vpack.c.b16 %v4025, %v4021
        %v4058 = vpack.c.b16 %v4026, %v4022
        %4091 = vmatpush.bf16.msra.mxu0 %v4055
        %4092 = vmatpush.bf16.msra.mxu0 %v4051
        %4093 = vmatpush.bf16.msra.mxu0 %v4047
        %4094 = vmatpush.bf16.msra.mxu0 %v4043
        %4095 = vmatpush.bf16.msra.mxu0 %v4039
        %4096 = vmatpush.bf16.msra.mxu0 %v4035
        %4097 = vmatpush.bf16.msra.mxu0 %v4031
        %4098 = vmatpush.bf16.msra.mxu0 %v4027
        %4099 = vmatmul.bf16.gmra.mxu0 %v3916
        %v4100 = vpop.f32.mrf.mxu0
        %v4101 = vadd.f32 0.0, %v4100
        %v4102 = vpop.f32.mrf.mxu0
        %v4103 = vadd.f32 0.0, %v4102
        %4104 = vmatmul.bf16.gmra.mxu0 %v3924
        %v4105 = vpop.f32.mrf.mxu0
        %v4106 = vpop.f32.mrf.mxu0
        %v4107 = vadd.f32 0.0, %v4106
        %4108 = vmatmul.bf16.gmra.mxu0 %v3927
        %v4109 = vpop.f32.mrf.mxu0
        %v4110 = vadd.f32 0.0, %v4109
        %v4111 = vpop.f32.mrf.mxu0
        %4112 = vdwg.mxu0
        %4113 = vmatpush.bf16.msra.mxu0 %v4056
        %4114 = vmatpush.bf16.msra.mxu0 %v4052
        %4115 = vmatpush.bf16.msra.mxu0 %v4048
        %4116 = vmatpush.bf16.msra.mxu0 %v4044
        %4117 = vmatpush.bf16.msra.mxu0 %v4040
        %4118 = vmatpush.bf16.msra.mxu0 %v4036
        %4119 = vmatpush.bf16.msra.mxu0 %v4032
        %4120 = vmatpush.bf16.msra.mxu0 %v4028
        %4121 = vmatmul.bf16.gmra.mxu0 %v3916
        %v4122 = vpop.f32.mrf.mxu0
        %v4123 = vadd.f32 0.0, %v4122
        %v4124 = vpop.f32.mrf.mxu0
        %v4125 = vadd.f32 0.0, %v4124
        %4126 = vmatmul.bf16.gmra.mxu0 %v3924
        %v4127 = vpop.f32.mrf.mxu0
        %v4128 = vpop.f32.mrf.mxu0
        %v4129 = vadd.f32 0.0, %v4128
        %4130 = vmatmul.bf16.gmra.mxu0 %v3927
        %v4131 = vpop.f32.mrf.mxu0
        %v4132 = vadd.f32 0.0, %v4131
        %v4133 = vpop.f32.mrf.mxu0
        %4134 = vdwg.mxu0
        %4135 = vmatpush.bf16.msra.mxu0 %v4057
        %4136 = vmatpush.bf16.msra.mxu0 %v4053
        %4137 = vmatpush.bf16.msra.mxu0 %v4049
        %4138 = vmatpush.bf16.msra.mxu0 %v4045
        %4139 = vmatpush.bf16.msra.mxu0 %v4041
        %4140 = vmatpush.bf16.msra.mxu0 %v4037
        %4141 = vmatpush.bf16.msra.mxu0 %v4033
        %4142 = vmatpush.bf16.msra.mxu0 %v4029
        %4143 = vmatmul.bf16.gmra.mxu0 %v3916
        %v4144 = vpop.f32.mrf.mxu0
        %v4145 = vadd.f32 0.0, %v4144
        %v4146 = vpop.f32.mrf.mxu0
        %v4147 = vadd.f32 0.0, %v4146
        %4148 = vmatmul.bf16.gmra.mxu0 %v3924
        %v4149 = vpop.f32.mrf.mxu0
        %v4150 = vpop.f32.mrf.mxu0
        %v4151 = vadd.f32 0.0, %v4150
        %4152 = vmatmul.bf16.gmra.mxu0 %v3927
        %v4153 = vpop.f32.mrf.mxu0
        %v4154 = vadd.f32 0.0, %v4153
        %v4155 = vpop.f32.mrf.mxu0
        %4156 = vdwg.mxu0
        %4157 = vmatpush.bf16.msra.mxu0 %v4058
        %4158 = vmatpush.bf16.msra.mxu0 %v4054
        %4159 = vmatpush.bf16.msra.mxu0 %v4050
        %4160 = vmatpush.bf16.msra.mxu0 %v4046
        %4161 = vmatpush.bf16.msra.mxu0 %v4042
        %4162 = vmatpush.bf16.msra.mxu0 %v4038
        %4163 = vmatpush.bf16.msra.mxu0 %v4034
        %4164 = vmatpush.bf16.msra.mxu0 %v4030
        %4165 = vmatmul.bf16.gmra.mxu0 %v3916
        %v4166 = vpop.f32.mrf.mxu0
        %v4167 = vadd.f32 0.0, %v4166
        %v4168 = vpop.f32.mrf.mxu0
        %v4169 = vadd.f32 0.0, %v4168
        %4170 = vmatmul.bf16.gmra.mxu0 %v3924
        %v4171 = vpop.f32.mrf.mxu0
        %v4172 = vpop.f32.mrf.mxu0
        %v4173 = vadd.f32 0.0, %v4172
        %4174 = vmatmul.bf16.gmra.mxu0 %v3927
        %v4175 = vpop.f32.mrf.mxu0
        %v4176 = vadd.f32 0.0, %v4175
        %v4177 = vpop.f32.mrf.mxu0
        %4178 = vdwg.mxu0
        %v4179 = vadd.f32 %v3774, %v4101
        %v4180 = vadd.f32 %v3796, %v4123
        %v4181 = vadd.f32 %v3818, %v4145
        %v4182 = vadd.f32 %v3840, %v4167
        %v4183 = vadd.f32 %v3776, %v4103
        %v4184 = vadd.f32 %v3798, %v4125
        %v4185 = vadd.f32 %v3820, %v4147
        %v4186 = vadd.f32 %v3842, %v4169
        %v4187 = vadd.f32 %v3780, %v4107
        %v4188 = vadd.f32 %v3802, %v4129
        %v4189 = vadd.f32 %v3824, %v4151
        %v4190 = vadd.f32 %v3846, %v4173
        %v4191 = vadd.f32 %v3783, %v4110
        %v4192 = vadd.f32 %v3805, %v4132
        %v4193 = vadd.f32 %v3827, %v4154
        %v4194 = vadd.f32 %v3849, %v4176
        %v4195 = vadd.f32 %v4179, %v2075
        %v4196 = vadd.f32 %v4180, %v2076
        %v4197 = vadd.f32 %v4181, %v2077
        %v4198 = vadd.f32 %v4182, %v2078
        %v4199 = vadd.f32 %v4183, %v2075
        %v4200 = vadd.f32 %v4184, %v2076
        %v4201 = vadd.f32 %v4185, %v2077
        %v4202 = vadd.f32 %v4186, %v2078
        %v4203 = vadd.f32 %v4187, %v2075
        %v4204 = vadd.f32 %v4188, %v2076
        %v4205 = vadd.f32 %v4189, %v2077
        %v4206 = vadd.f32 %v4190, %v2078
        %v4207 = vadd.f32 %v4191, %v2075
        %v4208 = vadd.f32 %v4192, %v2076
        %v4209 = vadd.f32 %v4193, %v2077
        %v4210 = vadd.f32 %v4194, %v2078
        %v4211 = vld [vmem:[#allocation5] sm:$0x8]
        %v4212 = vld [vmem:[#allocation5 + $0x4] sm:$0xf]
        %v4213 = vld [vmem:[#allocation5 + $0x8] sm:$0xf]
        %v4214 = vld [vmem:[#allocation5 + $0xc] sm:$0xf]
        %v4215 = vld [vmem:[#allocation5 + $0x10] sm:$0xf]
        %v4216 = vld [vmem:[#allocation5 + $0x14] sm:$0xf]
        %v4217 = vld [vmem:[%s5] sm:$0xff]
        %v4218 = vld [vmem:[%s5 + $0x8] sm:$0xff]
        %v4219 = vld [vmem:[%s5 + $0x10] sm:$0xff]
        %v4220 = vld [vmem:[%s5 + $0x18] sm:$0xff]
        %v4221 = vld [vmem:[%s5 + $0x20] sm:$0xff]
        %v4222 = vld [vmem:[%s5 + $0x28] sm:$0xff]
        %v4223 = vld [vmem:[%s5 + $0x30] sm:$0xff]
        %v4224 = vld [vmem:[%s5 + $0x38] sm:$0xff]
        %v4225 = vld [vmem:[%s5 + $0x40] sm:$0xff]
        %v4226 = vld [vmem:[%s5 + $0x48] sm:$0xff]
        %v4227 = vld [vmem:[%s5 + $0x50] sm:$0xff]
        %v4228 = vld [vmem:[%s5 + $0x58] sm:$0xff]
        %v4229 = vld [vmem:[%s5 + $0x60] sm:$0xff]
        %v4230 = vld [vmem:[%s5 + $0x68] sm:$0xff]
        %v4231 = vld [vmem:[%s5 + $0x70] sm:$0xff]
        %v4232 = vld [vmem:[%s5 + $0x78] sm:$0xff]
        %v4233 = vld [vmem:[%s5 + $0x80] sm:$0xff]
        %v4234 = vld [vmem:[%s5 + $0x88] sm:$0xff]
        %v4235 = vld [vmem:[%s5 + $0x90] sm:$0xff]
        %v4236 = vld [vmem:[%s5 + $0x98] sm:$0xff]
        %v4237 = vld [vmem:[%s5 + $0xa0] sm:$0xff]
        %v4238 = vld [vmem:[%s5 + $0xa8] sm:$0xff]
        %v4239 = vld [vmem:[%s5 + $0xb0] sm:$0xff]
        %v4240 = vld [vmem:[%s5 + $0xb8] sm:$0xff]
        %v4241 = vld [vmem:[%s5 + $0xc0] sm:$0xff]
        %v4242 = vld [vmem:[%s5 + $0xc8] sm:$0xff]
        %v4243 = vld [vmem:[%s5 + $0xd0] sm:$0xff]
        %v4244 = vld [vmem:[%s5 + $0xd8] sm:$0xff]
        %v4245 = vld [vmem:[%s5 + $0xe0] sm:$0xff]
        %v4246 = vld [vmem:[%s5 + $0xe8] sm:$0xff]
        %v4247 = vld [vmem:[%s5 + $0xf0] sm:$0xff]
        %v4248 = vld [vmem:[%s5 + $0xf8] sm:$0xff]
        %s4249 = scalar_lea.vmem %s5, 256
        %v4250 = vld [vmem:[%s4249] sm:$0xff]
        %v4251 = vld [vmem:[%s4249 + $0x8] sm:$0xff]
        %v4252 = vld [vmem:[%s4249 + $0x10] sm:$0xff]
        %v4253 = vld [vmem:[%s4249 + $0x18] sm:$0xff]
        %v4254 = vld [vmem:[%s4249 + $0x20] sm:$0xff]
        %v4255 = vld [vmem:[%s4249 + $0x28] sm:$0xff]
        %v4256 = vld [vmem:[%s4249 + $0x30] sm:$0xff]
        %v4257 = vld [vmem:[%s4249 + $0x38] sm:$0xff]
        %v4258 = vld [vmem:[%s4249 + $0x40] sm:$0xff]
        %v4259 = vld [vmem:[%s4249 + $0x48] sm:$0xff]
        %v4260 = vld [vmem:[%s4249 + $0x50] sm:$0xff]
        %v4261 = vld [vmem:[%s4249 + $0x58] sm:$0xff]
        %v4262 = vld [vmem:[%s4249 + $0x60] sm:$0xff]
        %v4263 = vld [vmem:[%s4249 + $0x68] sm:$0xff]
        %v4264 = vld [vmem:[%s4249 + $0x70] sm:$0xff]
        %v4265 = vld [vmem:[%s4249 + $0x78] sm:$0xff]
        %v4266 = vld [vmem:[%s4249 + $0x80] sm:$0xff]
        %v4267 = vld [vmem:[%s4249 + $0x88] sm:$0xff]
        %v4268 = vld [vmem:[%s4249 + $0x90] sm:$0xff]
        %v4269 = vld [vmem:[%s4249 + $0x98] sm:$0xff]
        %v4270 = vld [vmem:[%s4249 + $0xa0] sm:$0xff]
        %v4271 = vld [vmem:[%s4249 + $0xa8] sm:$0xff]
        %v4272 = vld [vmem:[%s4249 + $0xb0] sm:$0xff]
        %v4273 = vld [vmem:[%s4249 + $0xb8] sm:$0xff]
        %v4274 = vld [vmem:[%s4249 + $0xc0] sm:$0xff]
        %v4275 = vld [vmem:[%s4249 + $0xc8] sm:$0xff]
        %v4276 = vld [vmem:[%s4249 + $0xd0] sm:$0xff]
        %v4277 = vld [vmem:[%s4249 + $0xd8] sm:$0xff]
        %v4278 = vld [vmem:[%s4249 + $0xe0] sm:$0xff]
        %v4279 = vld [vmem:[%s4249 + $0xe8] sm:$0xff]
        %v4280 = vld [vmem:[%s4249 + $0xf0] sm:$0xff]
        %v4281 = vld [vmem:[%s4249 + $0xf8] sm:$0xff]
        %v4287 = vunpack.c.l.b16 %v4212
        %v4288 = vunpack.c.l.b16 %v4213
        %v4289 = vunpack.c.l.b16 %v4214
        %v4290 = vunpack.c.l.b16 %v4215
        %v4291 = vunpack.c.l.b16 %v4216
        %v4292 = vpack.c.b16 %v4288, %v4287
        %v4293 = vpack.c.b16 %v4290, %v4289
        %v4294 = vpack.c.b16 %v4291, %v4291
        %v4330 = vunpack.c.l.b16 %v4250
        %v4331 = vunpack.c.h.b16 %v4250
        %v4332 = vunpack.c.l.b16 %v4251
        %v4333 = vunpack.c.h.b16 %v4251
        %v4334 = vunpack.c.l.b16 %v4252
        %v4335 = vunpack.c.h.b16 %v4252
        %v4336 = vunpack.c.l.b16 %v4253
        %v4337 = vunpack.c.h.b16 %v4253
        %v4338 = vunpack.c.l.b16 %v4254
        %v4339 = vunpack.c.h.b16 %v4254
        %v4340 = vunpack.c.l.b16 %v4255
        %v4341 = vunpack.c.h.b16 %v4255
        %v4342 = vunpack.c.l.b16 %v4256
        %v4343 = vunpack.c.h.b16 %v4256
        %v4344 = vunpack.c.l.b16 %v4257
        %v4345 = vunpack.c.h.b16 %v4257
        %v4346 = vunpack.c.l.b16 %v4258
        %v4347 = vunpack.c.h.b16 %v4258
        %v4348 = vunpack.c.l.b16 %v4259
        %v4349 = vunpack.c.h.b16 %v4259
        %v4350 = vunpack.c.l.b16 %v4260
        %v4351 = vunpack.c.h.b16 %v4260
        %v4352 = vunpack.c.l.b16 %v4261
        %v4353 = vunpack.c.h.b16 %v4261
        %v4354 = vunpack.c.l.b16 %v4262
        %v4355 = vunpack.c.h.b16 %v4262
        %v4356 = vunpack.c.l.b16 %v4263
        %v4357 = vunpack.c.h.b16 %v4263
        %v4358 = vunpack.c.l.b16 %v4264
        %v4359 = vunpack.c.h.b16 %v4264
        %v4360 = vunpack.c.l.b16 %v4265
        %v4361 = vunpack.c.h.b16 %v4265
        %v4362 = vunpack.c.l.b16 %v4266
        %v4363 = vunpack.c.h.b16 %v4266
        %v4364 = vunpack.c.l.b16 %v4267
        %v4365 = vunpack.c.h.b16 %v4267
        %v4366 = vunpack.c.l.b16 %v4268
        %v4367 = vunpack.c.h.b16 %v4268
        %v4368 = vunpack.c.l.b16 %v4269
        %v4369 = vunpack.c.h.b16 %v4269
        %v4370 = vunpack.c.l.b16 %v4270
        %v4371 = vunpack.c.h.b16 %v4270
        %v4372 = vunpack.c.l.b16 %v4271
        %v4373 = vunpack.c.h.b16 %v4271
        %v4374 = vunpack.c.l.b16 %v4272
        %v4375 = vunpack.c.h.b16 %v4272
        %v4376 = vunpack.c.l.b16 %v4273
        %v4377 = vunpack.c.h.b16 %v4273
        %v4378 = vunpack.c.l.b16 %v4274
        %v4379 = vunpack.c.h.b16 %v4274
        %v4380 = vunpack.c.l.b16 %v4275
        %v4381 = vunpack.c.h.b16 %v4275
        %v4382 = vunpack.c.l.b16 %v4276
        %v4383 = vunpack.c.h.b16 %v4276
        %v4384 = vunpack.c.l.b16 %v4277
        %v4385 = vunpack.c.h.b16 %v4277
        %v4386 = vunpack.c.l.b16 %v4278
        %v4387 = vunpack.c.h.b16 %v4278
        %v4388 = vunpack.c.l.b16 %v4279
        %v4389 = vunpack.c.h.b16 %v4279
        %v4390 = vunpack.c.l.b16 %v4280
        %v4391 = vunpack.c.h.b16 %v4280
        %v4392 = vunpack.c.l.b16 %v4281
        %v4393 = vunpack.c.h.b16 %v4281
        %v4394 = vpack.c.b16 %v4334, %v4330
        %v4395 = vpack.c.b16 %v4335, %v4331
        %v4396 = vpack.c.b16 %v4336, %v4332
        %v4397 = vpack.c.b16 %v4337, %v4333
        %v4398 = vpack.c.b16 %v4342, %v4338
        %v4399 = vpack.c.b16 %v4343, %v4339
        %v4400 = vpack.c.b16 %v4344, %v4340
        %v4401 = vpack.c.b16 %v4345, %v4341
        %v4402 = vpack.c.b16 %v4350, %v4346
        %v4403 = vpack.c.b16 %v4351, %v4347
        %v4404 = vpack.c.b16 %v4352, %v4348
        %v4405 = vpack.c.b16 %v4353, %v4349
        %v4406 = vpack.c.b16 %v4358, %v4354
        %v4407 = vpack.c.b16 %v4359, %v4355
        %v4408 = vpack.c.b16 %v4360, %v4356
        %v4409 = vpack.c.b16 %v4361, %v4357
        %v4410 = vpack.c.b16 %v4366, %v4362
        %v4411 = vpack.c.b16 %v4367, %v4363
        %v4412 = vpack.c.b16 %v4368, %v4364
        %v4413 = vpack.c.b16 %v4369, %v4365
        %v4414 = vpack.c.b16 %v4374, %v4370
        %v4415 = vpack.c.b16 %v4375, %v4371
        %v4416 = vpack.c.b16 %v4376, %v4372
        %v4417 = vpack.c.b16 %v4377, %v4373
        %v4418 = vpack.c.b16 %v4382, %v4378
        %v4419 = vpack.c.b16 %v4383, %v4379
        %v4420 = vpack.c.b16 %v4384, %v4380
        %v4421 = vpack.c.b16 %v4385, %v4381
        %v4422 = vpack.c.b16 %v4390, %v4386
        %v4423 = vpack.c.b16 %v4391, %v4387
        %v4424 = vpack.c.b16 %v4392, %v4388
        %v4425 = vpack.c.b16 %v4393, %v4389
        %4458 = vmatpush.bf16.msra.mxu0 %v4422
        %4459 = vmatpush.bf16.msra.mxu0 %v4418
        %4460 = vmatpush.bf16.msra.mxu0 %v4414
        %4461 = vmatpush.bf16.msra.mxu0 %v4410
        %4462 = vmatpush.bf16.msra.mxu0 %v4406
        %4463 = vmatpush.bf16.msra.mxu0 %v4402
        %4464 = vmatpush.bf16.msra.mxu0 %v4398
        %4465 = vmatpush.bf16.msra.mxu0 %v4394
        %4466 = vmatmul.bf16.gmra.mxu0 %v4292
        %v4467 = vpop.f32.mrf.mxu0
        %v4468 = vadd.f32 0.0, %v4467
        %v4469 = vpop.f32.mrf.mxu0
        %v4470 = vadd.f32 0.0, %v4469
        %4471 = vmatmul.bf16.gmra.mxu0 %v4293
        %v4472 = vpop.f32.mrf.mxu0
        %v4473 = vpop.f32.mrf.mxu0
        %v4474 = vadd.f32 0.0, %v4473
        %4475 = vmatmul.bf16.gmra.mxu0 %v4294
        %v4476 = vpop.f32.mrf.mxu0
        %v4477 = vadd.f32 0.0, %v4476
        %v4478 = vpop.f32.mrf.mxu0
        %4479 = vdwg.mxu0
        %4480 = vmatpush.bf16.msra.mxu0 %v4423
        %4481 = vmatpush.bf16.msra.mxu0 %v4419
        %4482 = vmatpush.bf16.msra.mxu0 %v4415
        %4483 = vmatpush.bf16.msra.mxu0 %v4411
        %4484 = vmatpush.bf16.msra.mxu0 %v4407
        %4485 = vmatpush.bf16.msra.mxu0 %v4403
        %4486 = vmatpush.bf16.msra.mxu0 %v4399
        %4487 = vmatpush.bf16.msra.mxu0 %v4395
        %4488 = vmatmul.bf16.gmra.mxu0 %v4292
        %v4489 = vpop.f32.mrf.mxu0
        %v4490 = vadd.f32 0.0, %v4489
        %v4491 = vpop.f32.mrf.mxu0
        %v4492 = vadd.f32 0.0, %v4491
        %4493 = vmatmul.bf16.gmra.mxu0 %v4293
        %v4494 = vpop.f32.mrf.mxu0
        %v4495 = vpop.f32.mrf.mxu0
        %v4496 = vadd.f32 0.0, %v4495
        %4497 = vmatmul.bf16.gmra.mxu0 %v4294
        %v4498 = vpop.f32.mrf.mxu0
        %v4499 = vadd.f32 0.0, %v4498
        %v4500 = vpop.f32.mrf.mxu0
        %4501 = vdwg.mxu0
        %4502 = vmatpush.bf16.msra.mxu0 %v4424
        %4503 = vmatpush.bf16.msra.mxu0 %v4420
        %4504 = vmatpush.bf16.msra.mxu0 %v4416
        %4505 = vmatpush.bf16.msra.mxu0 %v4412
        %4506 = vmatpush.bf16.msra.mxu0 %v4408
        %4507 = vmatpush.bf16.msra.mxu0 %v4404
        %4508 = vmatpush.bf16.msra.mxu0 %v4400
        %4509 = vmatpush.bf16.msra.mxu0 %v4396
        %4510 = vmatmul.bf16.gmra.mxu0 %v4292
        %v4511 = vpop.f32.mrf.mxu0
        %v4512 = vadd.f32 0.0, %v4511
        %v4513 = vpop.f32.mrf.mxu0
        %v4514 = vadd.f32 0.0, %v4513
        %4515 = vmatmul.bf16.gmra.mxu0 %v4293
        %v4516 = vpop.f32.mrf.mxu0
        %v4517 = vpop.f32.mrf.mxu0
        %v4518 = vadd.f32 0.0, %v4517
        %4519 = vmatmul.bf16.gmra.mxu0 %v4294
        %v4520 = vpop.f32.mrf.mxu0
        %v4521 = vadd.f32 0.0, %v4520
        %v4522 = vpop.f32.mrf.mxu0
        %4523 = vdwg.mxu0
        %4524 = vmatpush.bf16.msra.mxu0 %v4425
        %4525 = vmatpush.bf16.msra.mxu0 %v4421
        %4526 = vmatpush.bf16.msra.mxu0 %v4417
        %4527 = vmatpush.bf16.msra.mxu0 %v4413
        %4528 = vmatpush.bf16.msra.mxu0 %v4409
        %4529 = vmatpush.bf16.msra.mxu0 %v4405
        %4530 = vmatpush.bf16.msra.mxu0 %v4401
        %4531 = vmatpush.bf16.msra.mxu0 %v4397
        %4532 = vmatmul.bf16.gmra.mxu0 %v4292
        %v4533 = vpop.f32.mrf.mxu0
        %v4534 = vadd.f32 0.0, %v4533
        %v4535 = vpop.f32.mrf.mxu0
        %v4536 = vadd.f32 0.0, %v4535
        %4537 = vmatmul.bf16.gmra.mxu0 %v4293
        %v4538 = vpop.f32.mrf.mxu0
        %v4539 = vpop.f32.mrf.mxu0
        %v4540 = vadd.f32 0.0, %v4539
        %4541 = vmatmul.bf16.gmra.mxu0 %v4294
        %v4542 = vpop.f32.mrf.mxu0
        %v4543 = vadd.f32 0.0, %v4542
        %v4544 = vpop.f32.mrf.mxu0
        %4545 = vdwg.mxu0
        %v4547 = vunpack.c.l.b16 %v4211
        %v4548 = vpack.c.b16 %v4287, %v4547
        %v4549 = vpack.c.b16 %v4289, %v4288
        %v4550 = vpack.c.b16 %v4291, %v4290
        %v4552 = vshrl.u32 %v4548, 16
        %v4554 = vrot.slane %v4552, 3
        %v4555 = vshll.u32 %v4548, 16
        %v4557 = vrot.slane %v4555, 4
        %v4558 = vor.u32 %v4554, %v4557
        %v4560 = vshrl.u32 %v4549, 16
        %v4562 = vrot.slane %v4560, 3
        %v4563 = vshll.u32 %v4549, 16
        %v4565 = vrot.slane %v4563, 4
        %v4566 = vor.u32 %v4562, %v4565
        %v4567 = vsel %vm685, %v4558, %v4566
        %v4569 = vshrl.u32 %v4550, 16
        %v4571 = vrot.slane %v4569, 3
        %v4572 = vshll.u32 %v4550, 16
        %v4574 = vrot.slane %v4572, 4
        %v4575 = vor.u32 %v4571, %v4574
        %v4576 = vsel %vm685, %v4566, %v4575
        %v4612 = vunpack.c.l.b16 %v4217
        %v4613 = vunpack.c.h.b16 %v4217
        %v4614 = vunpack.c.l.b16 %v4218
        %v4615 = vunpack.c.h.b16 %v4218
        %v4616 = vunpack.c.l.b16 %v4219
        %v4617 = vunpack.c.h.b16 %v4219
        %v4618 = vunpack.c.l.b16 %v4220
        %v4619 = vunpack.c.h.b16 %v4220
        %v4620 = vunpack.c.l.b16 %v4221
        %v4621 = vunpack.c.h.b16 %v4221
        %v4622 = vunpack.c.l.b16 %v4222
        %v4623 = vunpack.c.h.b16 %v4222
        %v4624 = vunpack.c.l.b16 %v4223
        %v4625 = vunpack.c.h.b16 %v4223
        %v4626 = vunpack.c.l.b16 %v4224
        %v4627 = vunpack.c.h.b16 %v4224
        %v4628 = vunpack.c.l.b16 %v4225
        %v4629 = vunpack.c.h.b16 %v4225
        %v4630 = vunpack.c.l.b16 %v4226
        %v4631 = vunpack.c.h.b16 %v4226
        %v4632 = vunpack.c.l.b16 %v4227
        %v4633 = vunpack.c.h.b16 %v4227
        %v4634 = vunpack.c.l.b16 %v4228
        %v4635 = vunpack.c.h.b16 %v4228
        %v4636 = vunpack.c.l.b16 %v4229
        %v4637 = vunpack.c.h.b16 %v4229
        %v4638 = vunpack.c.l.b16 %v4230
        %v4639 = vunpack.c.h.b16 %v4230
        %v4640 = vunpack.c.l.b16 %v4231
        %v4641 = vunpack.c.h.b16 %v4231
        %v4642 = vunpack.c.l.b16 %v4232
        %v4643 = vunpack.c.h.b16 %v4232
        %v4644 = vunpack.c.l.b16 %v4233
        %v4645 = vunpack.c.h.b16 %v4233
        %v4646 = vunpack.c.l.b16 %v4234
        %v4647 = vunpack.c.h.b16 %v4234
        %v4648 = vunpack.c.l.b16 %v4235
        %v4649 = vunpack.c.h.b16 %v4235
        %v4650 = vunpack.c.l.b16 %v4236
        %v4651 = vunpack.c.h.b16 %v4236
        %v4652 = vunpack.c.l.b16 %v4237
        %v4653 = vunpack.c.h.b16 %v4237
        %v4654 = vunpack.c.l.b16 %v4238
        %v4655 = vunpack.c.h.b16 %v4238
        %v4656 = vunpack.c.l.b16 %v4239
        %v4657 = vunpack.c.h.b16 %v4239
        %v4658 = vunpack.c.l.b16 %v4240
        %v4659 = vunpack.c.h.b16 %v4240
        %v4660 = vunpack.c.l.b16 %v4241
        %v4661 = vunpack.c.h.b16 %v4241
        %v4662 = vunpack.c.l.b16 %v4242
        %v4663 = vunpack.c.h.b16 %v4242
        %v4664 = vunpack.c.l.b16 %v4243
        %v4665 = vunpack.c.h.b16 %v4243
        %v4666 = vunpack.c.l.b16 %v4244
        %v4667 = vunpack.c.h.b16 %v4244
        %v4668 = vunpack.c.l.b16 %v4245
        %v4669 = vunpack.c.h.b16 %v4245
        %v4670 = vunpack.c.l.b16 %v4246
        %v4671 = vunpack.c.h.b16 %v4246
        %v4672 = vunpack.c.l.b16 %v4247
        %v4673 = vunpack.c.h.b16 %v4247
        %v4674 = vunpack.c.l.b16 %v4248
        %v4675 = vunpack.c.h.b16 %v4248
        %v4676 = vpack.c.b16 %v4616, %v4612
        %v4677 = vpack.c.b16 %v4617, %v4613
        %v4678 = vpack.c.b16 %v4618, %v4614
        %v4679 = vpack.c.b16 %v4619, %v4615
        %v4680 = vpack.c.b16 %v4624, %v4620
        %v4681 = vpack.c.b16 %v4625, %v4621
        %v4682 = vpack.c.b16 %v4626, %v4622
        %v4683 = vpack.c.b16 %v4627, %v4623
        %v4684 = vpack.c.b16 %v4632, %v4628
        %v4685 = vpack.c.b16 %v4633, %v4629
        %v4686 = vpack.c.b16 %v4634, %v4630
        %v4687 = vpack.c.b16 %v4635, %v4631
        %v4688 = vpack.c.b16 %v4640, %v4636
        %v4689 = vpack.c.b16 %v4641, %v4637
        %v4690 = vpack.c.b16 %v4642, %v4638
        %v4691 = vpack.c.b16 %v4643, %v4639
        %v4692 = vpack.c.b16 %v4648, %v4644
        %v4693 = vpack.c.b16 %v4649, %v4645
        %v4694 = vpack.c.b16 %v4650, %v4646
        %v4695 = vpack.c.b16 %v4651, %v4647
        %v4696 = vpack.c.b16 %v4656, %v4652
        %v4697 = vpack.c.b16 %v4657, %v4653
        %v4698 = vpack.c.b16 %v4658, %v4654
        %v4699 = vpack.c.b16 %v4659, %v4655
        %v4700 = vpack.c.b16 %v4664, %v4660
        %v4701 = vpack.c.b16 %v4665, %v4661
        %v4702 = vpack.c.b16 %v4666, %v4662
        %v4703 = vpack.c.b16 %v4667, %v4663
        %v4704 = vpack.c.b16 %v4672, %v4668
        %v4705 = vpack.c.b16 %v4673, %v4669
        %v4706 = vpack.c.b16 %v4674, %v4670
        %v4707 = vpack.c.b16 %v4675, %v4671
        %4740 = vmatpush.bf16.msra.mxu0 %v4704
        %4741 = vmatpush.bf16.msra.mxu0 %v4700
        %4742 = vmatpush.bf16.msra.mxu0 %v4696
        %4743 = vmatpush.bf16.msra.mxu0 %v4692
        %4744 = vmatpush.bf16.msra.mxu0 %v4688
        %4745 = vmatpush.bf16.msra.mxu0 %v4684
        %4746 = vmatpush.bf16.msra.mxu0 %v4680
        %4747 = vmatpush.bf16.msra.mxu0 %v4676
        %4748 = vmatmul.bf16.gmra.mxu0 %v4567
        %v4749 = vpop.f32.mrf.mxu0
        %v4750 = vadd.f32 %v4468, %v4749
        %v4751 = vpop.f32.mrf.mxu0
        %v4752 = vadd.f32 %v4470, %v4751
        %4753 = vmatmul.bf16.gmra.mxu0 %v4576
        %v4754 = vpop.f32.mrf.mxu0
        %v4755 = vpop.f32.mrf.mxu0
        %v4756 = vadd.f32 %v4474, %v4755
        %4757 = vmatmul.bf16.gmra.mxu0 %v4575
        %v4758 = vpop.f32.mrf.mxu0
        %v4759 = vadd.f32 %v4477, %v4758
        %v4760 = vpop.f32.mrf.mxu0
        %4761 = vdwg.mxu0
        %4762 = vmatpush.bf16.msra.mxu0 %v4705
        %4763 = vmatpush.bf16.msra.mxu0 %v4701
        %4764 = vmatpush.bf16.msra.mxu0 %v4697
        %4765 = vmatpush.bf16.msra.mxu0 %v4693
        %4766 = vmatpush.bf16.msra.mxu0 %v4689
        %4767 = vmatpush.bf16.msra.mxu0 %v4685
        %4768 = vmatpush.bf16.msra.mxu0 %v4681
        %4769 = vmatpush.bf16.msra.mxu0 %v4677
        %4770 = vmatmul.bf16.gmra.mxu0 %v4567
        %v4771 = vpop.f32.mrf.mxu0
        %v4772 = vadd.f32 %v4490, %v4771
        %v4773 = vpop.f32.mrf.mxu0
        %v4774 = vadd.f32 %v4492, %v4773
        %4775 = vmatmul.bf16.gmra.mxu0 %v4576
        %v4776 = vpop.f32.mrf.mxu0
        %v4777 = vpop.f32.mrf.mxu0
        %v4778 = vadd.f32 %v4496, %v4777
        %4779 = vmatmul.bf16.gmra.mxu0 %v4575
        %v4780 = vpop.f32.mrf.mxu0
        %v4781 = vadd.f32 %v4499, %v4780
        %v4782 = vpop.f32.mrf.mxu0
        %4783 = vdwg.mxu0
        %4784 = vmatpush.bf16.msra.mxu0 %v4706
        %4785 = vmatpush.bf16.msra.mxu0 %v4702
        %4786 = vmatpush.bf16.msra.mxu0 %v4698
        %4787 = vmatpush.bf16.msra.mxu0 %v4694
        %4788 = vmatpush.bf16.msra.mxu0 %v4690
        %4789 = vmatpush.bf16.msra.mxu0 %v4686
        %4790 = vmatpush.bf16.msra.mxu0 %v4682
        %4791 = vmatpush.bf16.msra.mxu0 %v4678
        %4792 = vmatmul.bf16.gmra.mxu0 %v4567
        %v4793 = vpop.f32.mrf.mxu0
        %v4794 = vadd.f32 %v4512, %v4793
        %v4795 = vpop.f32.mrf.mxu0
        %v4796 = vadd.f32 %v4514, %v4795
        %4797 = vmatmul.bf16.gmra.mxu0 %v4576
        %v4798 = vpop.f32.mrf.mxu0
        %v4799 = vpop.f32.mrf.mxu0
        %v4800 = vadd.f32 %v4518, %v4799
        %4801 = vmatmul.bf16.gmra.mxu0 %v4575
        %v4802 = vpop.f32.mrf.mxu0
        %v4803 = vadd.f32 %v4521, %v4802
        %v4804 = vpop.f32.mrf.mxu0
        %4805 = vdwg.mxu0
        %4806 = vmatpush.bf16.msra.mxu0 %v4707
        %4807 = vmatpush.bf16.msra.mxu0 %v4703
        %4808 = vmatpush.bf16.msra.mxu0 %v4699
        %4809 = vmatpush.bf16.msra.mxu0 %v4695
        %4810 = vmatpush.bf16.msra.mxu0 %v4691
        %4811 = vmatpush.bf16.msra.mxu0 %v4687
        %4812 = vmatpush.bf16.msra.mxu0 %v4683
        %4813 = vmatpush.bf16.msra.mxu0 %v4679
        %4814 = vmatmul.bf16.gmra.mxu0 %v4567
        %v4815 = vpop.f32.mrf.mxu0
        %v4816 = vadd.f32 %v4534, %v4815
        %v4817 = vpop.f32.mrf.mxu0
        %v4818 = vadd.f32 %v4536, %v4817
        %4819 = vmatmul.bf16.gmra.mxu0 %v4576
        %v4820 = vpop.f32.mrf.mxu0
        %v4821 = vpop.f32.mrf.mxu0
        %v4822 = vadd.f32 %v4540, %v4821
        %4823 = vmatmul.bf16.gmra.mxu0 %v4575
        %v4824 = vpop.f32.mrf.mxu0
        %v4825 = vadd.f32 %v4543, %v4824
        %v4826 = vpop.f32.mrf.mxu0
        %4827 = vdwg.mxu0
        %v4828 = vld [vmem:[#allocation5 + $0x4] sm:$0xf]
        %v4829 = vld [vmem:[#allocation5 + $0x8] sm:$0xf]
        %v4830 = vld [vmem:[#allocation5 + $0xc] sm:$0xf]
        %v4831 = vld [vmem:[#allocation5 + $0x10] sm:$0xf]
        %v4832 = vld [vmem:[#allocation5 + $0x14] sm:$0xf]
        %v4833 = vld [vmem:[#allocation5 + $0x18] sm:$0x1]
        %s4834 = scalar_lea.vmem %s5, 512
        %v4835 = vld [vmem:[%s4834] sm:$0xff]
        %v4836 = vld [vmem:[%s4834 + $0x8] sm:$0xff]
        %v4837 = vld [vmem:[%s4834 + $0x10] sm:$0xff]
        %v4838 = vld [vmem:[%s4834 + $0x18] sm:$0xff]
        %v4839 = vld [vmem:[%s4834 + $0x20] sm:$0xff]
        %v4840 = vld [vmem:[%s4834 + $0x28] sm:$0xff]
        %v4841 = vld [vmem:[%s4834 + $0x30] sm:$0xff]
        %v4842 = vld [vmem:[%s4834 + $0x38] sm:$0xff]
        %v4843 = vld [vmem:[%s4834 + $0x40] sm:$0xff]
        %v4844 = vld [vmem:[%s4834 + $0x48] sm:$0xff]
        %v4845 = vld [vmem:[%s4834 + $0x50] sm:$0xff]
        %v4846 = vld [vmem:[%s4834 + $0x58] sm:$0xff]
        %v4847 = vld [vmem:[%s4834 + $0x60] sm:$0xff]
        %v4848 = vld [vmem:[%s4834 + $0x68] sm:$0xff]
        %v4849 = vld [vmem:[%s4834 + $0x70] sm:$0xff]
        %v4850 = vld [vmem:[%s4834 + $0x78] sm:$0xff]
        %v4851 = vld [vmem:[%s4834 + $0x80] sm:$0xff]
        %v4852 = vld [vmem:[%s4834 + $0x88] sm:$0xff]
        %v4853 = vld [vmem:[%s4834 + $0x90] sm:$0xff]
        %v4854 = vld [vmem:[%s4834 + $0x98] sm:$0xff]
        %v4855 = vld [vmem:[%s4834 + $0xa0] sm:$0xff]
        %v4856 = vld [vmem:[%s4834 + $0xa8] sm:$0xff]
        %v4857 = vld [vmem:[%s4834 + $0xb0] sm:$0xff]
        %v4858 = vld [vmem:[%s4834 + $0xb8] sm:$0xff]
        %v4859 = vld [vmem:[%s4834 + $0xc0] sm:$0xff]
        %v4860 = vld [vmem:[%s4834 + $0xc8] sm:$0xff]
        %v4861 = vld [vmem:[%s4834 + $0xd0] sm:$0xff]
        %v4862 = vld [vmem:[%s4834 + $0xd8] sm:$0xff]
        %v4863 = vld [vmem:[%s4834 + $0xe0] sm:$0xff]
        %v4864 = vld [vmem:[%s4834 + $0xe8] sm:$0xff]
        %v4865 = vld [vmem:[%s4834 + $0xf0] sm:$0xff]
        %v4866 = vld [vmem:[%s4834 + $0xf8] sm:$0xff]
        %v4873 = vunpack.c.l.b16 %v4828
        %v4874 = vunpack.c.l.b16 %v4829
        %v4875 = vunpack.c.l.b16 %v4830
        %v4876 = vunpack.c.l.b16 %v4831
        %v4877 = vunpack.c.l.b16 %v4832
        %v4878 = vunpack.c.l.b16 %v4833
        %v4879 = vpack.c.b16 %v4874, %v4873
        %v4880 = vpack.c.b16 %v4876, %v4875
        %v4881 = vpack.c.b16 %v4878, %v4877
        %v4883 = vshrl.u32 %v4879, 16
        %v4885 = vshll.u32 %v4879, 16
        %v4887 = vrot.slane %v4885, 1
        %v4888 = vor.u32 %v4883, %v4887
        %v4890 = vshll.u32 %v4880, 16
        %v4892 = vrot.slane %v4890, 1
        %v4893 = vsel %vm931, %v4888, %v4892
        %v4894 = vshrl.u32 %v4880, 16
        %v4896 = vor.u32 %v4894, %v4892
        %v4898 = vshll.u32 %v4881, 16
        %v4900 = vrot.slane %v4898, 1
        %v4901 = vsel %vm931, %v4896, %v4900
        %v4902 = vshrl.u32 %v4881, 16
        %v4904 = vor.u32 %v4902, %v4900
        %v4940 = vunpack.c.l.b16 %v4835
        %v4941 = vunpack.c.h.b16 %v4835
        %v4942 = vunpack.c.l.b16 %v4836
        %v4943 = vunpack.c.h.b16 %v4836
        %v4944 = vunpack.c.l.b16 %v4837
        %v4945 = vunpack.c.h.b16 %v4837
        %v4946 = vunpack.c.l.b16 %v4838
        %v4947 = vunpack.c.h.b16 %v4838
        %v4948 = vunpack.c.l.b16 %v4839
        %v4949 = vunpack.c.h.b16 %v4839
        %v4950 = vunpack.c.l.b16 %v4840
        %v4951 = vunpack.c.h.b16 %v4840
        %v4952 = vunpack.c.l.b16 %v4841
        %v4953 = vunpack.c.h.b16 %v4841
        %v4954 = vunpack.c.l.b16 %v4842
        %v4955 = vunpack.c.h.b16 %v4842
        %v4956 = vunpack.c.l.b16 %v4843
        %v4957 = vunpack.c.h.b16 %v4843
        %v4958 = vunpack.c.l.b16 %v4844
        %v4959 = vunpack.c.h.b16 %v4844
        %v4960 = vunpack.c.l.b16 %v4845
        %v4961 = vunpack.c.h.b16 %v4845
        %v4962 = vunpack.c.l.b16 %v4846
        %v4963 = vunpack.c.h.b16 %v4846
        %v4964 = vunpack.c.l.b16 %v4847
        %v4965 = vunpack.c.h.b16 %v4847
        %v4966 = vunpack.c.l.b16 %v4848
        %v4967 = vunpack.c.h.b16 %v4848
        %v4968 = vunpack.c.l.b16 %v4849
        %v4969 = vunpack.c.h.b16 %v4849
        %v4970 = vunpack.c.l.b16 %v4850
        %v4971 = vunpack.c.h.b16 %v4850
        %v4972 = vunpack.c.l.b16 %v4851
        %v4973 = vunpack.c.h.b16 %v4851
        %v4974 = vunpack.c.l.b16 %v4852
        %v4975 = vunpack.c.h.b16 %v4852
        %v4976 = vunpack.c.l.b16 %v4853
        %v4977 = vunpack.c.h.b16 %v4853
        %v4978 = vunpack.c.l.b16 %v4854
        %v4979 = vunpack.c.h.b16 %v4854
        %v4980 = vunpack.c.l.b16 %v4855
        %v4981 = vunpack.c.h.b16 %v4855
        %v4982 = vunpack.c.l.b16 %v4856
        %v4983 = vunpack.c.h.b16 %v4856
        %v4984 = vunpack.c.l.b16 %v4857
        %v4985 = vunpack.c.h.b16 %v4857
        %v4986 = vunpack.c.l.b16 %v4858
        %v4987 = vunpack.c.h.b16 %v4858
        %v4988 = vunpack.c.l.b16 %v4859
        %v4989 = vunpack.c.h.b16 %v4859
        %v4990 = vunpack.c.l.b16 %v4860
        %v4991 = vunpack.c.h.b16 %v4860
        %v4992 = vunpack.c.l.b16 %v4861
        %v4993 = vunpack.c.h.b16 %v4861
        %v4994 = vunpack.c.l.b16 %v4862
        %v4995 = vunpack.c.h.b16 %v4862
        %v4996 = vunpack.c.l.b16 %v4863
        %v4997 = vunpack.c.h.b16 %v4863
        %v4998 = vunpack.c.l.b16 %v4864
        %v4999 = vunpack.c.h.b16 %v4864
        %v5000 = vunpack.c.l.b16 %v4865
        %v5001 = vunpack.c.h.b16 %v4865
        %v5002 = vunpack.c.l.b16 %v4866
        %v5003 = vunpack.c.h.b16 %v4866
        %v5004 = vpack.c.b16 %v4944, %v4940
        %v5005 = vpack.c.b16 %v4945, %v4941
        %v5006 = vpack.c.b16 %v4946, %v4942
        %v5007 = vpack.c.b16 %v4947, %v4943
        %v5008 = vpack.c.b16 %v4952, %v4948
        %v5009 = vpack.c.b16 %v4953, %v4949
        %v5010 = vpack.c.b16 %v4954, %v4950
        %v5011 = vpack.c.b16 %v4955, %v4951
        %v5012 = vpack.c.b16 %v4960, %v4956
        %v5013 = vpack.c.b16 %v4961, %v4957
        %v5014 = vpack.c.b16 %v4962, %v4958
        %v5015 = vpack.c.b16 %v4963, %v4959
        %v5016 = vpack.c.b16 %v4968, %v4964
        %v5017 = vpack.c.b16 %v4969, %v4965
        %v5018 = vpack.c.b16 %v4970, %v4966
        %v5019 = vpack.c.b16 %v4971, %v4967
        %v5020 = vpack.c.b16 %v4976, %v4972
        %v5021 = vpack.c.b16 %v4977, %v4973
        %v5022 = vpack.c.b16 %v4978, %v4974
        %v5023 = vpack.c.b16 %v4979, %v4975
        %v5024 = vpack.c.b16 %v4984, %v4980
        %v5025 = vpack.c.b16 %v4985, %v4981
        %v5026 = vpack.c.b16 %v4986, %v4982
        %v5027 = vpack.c.b16 %v4987, %v4983
        %v5028 = vpack.c.b16 %v4992, %v4988
        %v5029 = vpack.c.b16 %v4993, %v4989
        %v5030 = vpack.c.b16 %v4994, %v4990
        %v5031 = vpack.c.b16 %v4995, %v4991
        %v5032 = vpack.c.b16 %v5000, %v4996
        %v5033 = vpack.c.b16 %v5001, %v4997
        %v5034 = vpack.c.b16 %v5002, %v4998
        %v5035 = vpack.c.b16 %v5003, %v4999
        %5068 = vmatpush.bf16.msra.mxu0 %v5032
        %5069 = vmatpush.bf16.msra.mxu0 %v5028
        %5070 = vmatpush.bf16.msra.mxu0 %v5024
        %5071 = vmatpush.bf16.msra.mxu0 %v5020
        %5072 = vmatpush.bf16.msra.mxu0 %v5016
        %5073 = vmatpush.bf16.msra.mxu0 %v5012
        %5074 = vmatpush.bf16.msra.mxu0 %v5008
        %5075 = vmatpush.bf16.msra.mxu0 %v5004
        %5076 = vmatmul.bf16.gmra.mxu0 %v4893
        %v5077 = vpop.f32.mrf.mxu0
        %v5078 = vadd.f32 0.0, %v5077
        %v5079 = vpop.f32.mrf.mxu0
        %v5080 = vadd.f32 0.0, %v5079
        %5081 = vmatmul.bf16.gmra.mxu0 %v4901
        %v5082 = vpop.f32.mrf.mxu0
        %v5083 = vpop.f32.mrf.mxu0
        %v5084 = vadd.f32 0.0, %v5083
        %5085 = vmatmul.bf16.gmra.mxu0 %v4904
        %v5086 = vpop.f32.mrf.mxu0
        %v5087 = vadd.f32 0.0, %v5086
        %v5088 = vpop.f32.mrf.mxu0
        %5089 = vdwg.mxu0
        %5090 = vmatpush.bf16.msra.mxu0 %v5033
        %5091 = vmatpush.bf16.msra.mxu0 %v5029
        %5092 = vmatpush.bf16.msra.mxu0 %v5025
        %5093 = vmatpush.bf16.msra.mxu0 %v5021
        %5094 = vmatpush.bf16.msra.mxu0 %v5017
        %5095 = vmatpush.bf16.msra.mxu0 %v5013
        %5096 = vmatpush.bf16.msra.mxu0 %v5009
        %5097 = vmatpush.bf16.msra.mxu0 %v5005
        %5098 = vmatmul.bf16.gmra.mxu0 %v4893
        %v5099 = vpop.f32.mrf.mxu0
        %v5100 = vadd.f32 0.0, %v5099
        %v5101 = vpop.f32.mrf.mxu0
        %v5102 = vadd.f32 0.0, %v5101
        %5103 = vmatmul.bf16.gmra.mxu0 %v4901
        %v5104 = vpop.f32.mrf.mxu0
        %v5105 = vpop.f32.mrf.mxu0
        %v5106 = vadd.f32 0.0, %v5105
        %5107 = vmatmul.bf16.gmra.mxu0 %v4904
        %v5108 = vpop.f32.mrf.mxu0
        %v5109 = vadd.f32 0.0, %v5108
        %v5110 = vpop.f32.mrf.mxu0
        %5111 = vdwg.mxu0
        %5112 = vmatpush.bf16.msra.mxu0 %v5034
        %5113 = vmatpush.bf16.msra.mxu0 %v5030
        %5114 = vmatpush.bf16.msra.mxu0 %v5026
        %5115 = vmatpush.bf16.msra.mxu0 %v5022
        %5116 = vmatpush.bf16.msra.mxu0 %v5018
        %5117 = vmatpush.bf16.msra.mxu0 %v5014
        %5118 = vmatpush.bf16.msra.mxu0 %v5010
        %5119 = vmatpush.bf16.msra.mxu0 %v5006
        %5120 = vmatmul.bf16.gmra.mxu0 %v4893
        %v5121 = vpop.f32.mrf.mxu0
        %v5122 = vadd.f32 0.0, %v5121
        %v5123 = vpop.f32.mrf.mxu0
        %v5124 = vadd.f32 0.0, %v5123
        %5125 = vmatmul.bf16.gmra.mxu0 %v4901
        %v5126 = vpop.f32.mrf.mxu0
        %v5127 = vpop.f32.mrf.mxu0
        %v5128 = vadd.f32 0.0, %v5127
        %5129 = vmatmul.bf16.gmra.mxu0 %v4904
        %v5130 = vpop.f32.mrf.mxu0
        %v5131 = vadd.f32 0.0, %v5130
        %v5132 = vpop.f32.mrf.mxu0
        %5133 = vdwg.mxu0
        %5134 = vmatpush.bf16.msra.mxu0 %v5035
        %5135 = vmatpush.bf16.msra.mxu0 %v5031
        %5136 = vmatpush.bf16.msra.mxu0 %v5027
        %5137 = vmatpush.bf16.msra.mxu0 %v5023
        %5138 = vmatpush.bf16.msra.mxu0 %v5019
        %5139 = vmatpush.bf16.msra.mxu0 %v5015
        %5140 = vmatpush.bf16.msra.mxu0 %v5011
        %5141 = vmatpush.bf16.msra.mxu0 %v5007
        %5142 = vmatmul.bf16.gmra.mxu0 %v4893
        %v5143 = vpop.f32.mrf.mxu0
        %v5144 = vadd.f32 0.0, %v5143
        %v5145 = vpop.f32.mrf.mxu0
        %v5146 = vadd.f32 0.0, %v5145
        %5147 = vmatmul.bf16.gmra.mxu0 %v4901
        %v5148 = vpop.f32.mrf.mxu0
        %v5149 = vpop.f32.mrf.mxu0
        %v5150 = vadd.f32 0.0, %v5149
        %5151 = vmatmul.bf16.gmra.mxu0 %v4904
        %v5152 = vpop.f32.mrf.mxu0
        %v5153 = vadd.f32 0.0, %v5152
        %v5154 = vpop.f32.mrf.mxu0
        %5155 = vdwg.mxu0
        %v5156 = vadd.f32 %v4750, %v5078
        %v5157 = vadd.f32 %v4772, %v5100
        %v5158 = vadd.f32 %v4794, %v5122
        %v5159 = vadd.f32 %v4816, %v5144
        %v5160 = vadd.f32 %v4752, %v5080
        %v5161 = vadd.f32 %v4774, %v5102
        %v5162 = vadd.f32 %v4796, %v5124
        %v5163 = vadd.f32 %v4818, %v5146
        %v5164 = vadd.f32 %v4756, %v5084
        %v5165 = vadd.f32 %v4778, %v5106
        %v5166 = vadd.f32 %v4800, %v5128
        %v5167 = vadd.f32 %v4822, %v5150
        %v5168 = vadd.f32 %v4759, %v5087
        %v5169 = vadd.f32 %v4781, %v5109
        %v5170 = vadd.f32 %v4803, %v5131
        %v5171 = vadd.f32 %v4825, %v5153
        %v5172 = vadd.f32 %v4195, %v5156
        %v5173 = vadd.f32 %v4196, %v5157
        %v5174 = vadd.f32 %v4197, %v5158
        %v5175 = vadd.f32 %v4198, %v5159
        %v5176 = vadd.f32 %v4199, %v5160
        %v5177 = vadd.f32 %v4200, %v5161
        %v5178 = vadd.f32 %v4201, %v5162
        %v5179 = vadd.f32 %v4202, %v5163
        %v5180 = vadd.f32 %v4203, %v5164
        %v5181 = vadd.f32 %v4204, %v5165
        %v5182 = vadd.f32 %v4205, %v5166
        %v5183 = vadd.f32 %v4206, %v5167
        %v5184 = vadd.f32 %v4207, %v5168
        %v5185 = vadd.f32 %v4208, %v5169
        %v5186 = vadd.f32 %v4209, %v5170
        %v5187 = vadd.f32 %v4210, %v5171
        %v5188 = vld [vmem:[#allocation7] sm:$0xff]
        %v5189 = vld [vmem:[#allocation7 + $0x8] sm:$0xff]
        %v5190 = vmul.f32 %v5173, 0.5
        %v5191 = vmul.f32 %v5177, 0.5
        %v5192 = vtanh.pop %v5190
        %v5193 = vtanh.pop %v5191
        %v5194 = vmul.f32 %v5192, 0.5
        %v5195 = vmul.f32 %v5193, 0.5
        %v5196 = vadd.f32 %v5194, 0.5
        %v5197 = vadd.f32 %v5195, 0.5
        %v5198 = vmul.f32 %v5196, %v5188
        %v5199 = vmul.f32 %v5197, %v5189
        %v5200 = vmul.f32 %v5172, 0.5
        %v5201 = vmul.f32 %v5176, 0.5
        %v5202 = vtanh.pop %v5200
        %v5203 = vtanh.pop %v5201
        %v5204 = vmul.f32 %v5202, 0.5
        %v5205 = vmul.f32 %v5203, 0.5
        %v5206 = vadd.f32 %v5204, 0.5
        %v5207 = vadd.f32 %v5205, 0.5
        %v5208 = vtanh.pop %v5174
        %v5209 = vtanh.pop %v5178
        %v5210 = vmul.f32 %v5206, %v5208
        %v5211 = vmul.f32 %v5207, %v5209
        %v5212 = vadd.f32 %v5198, %v5210
        %v5213 = vadd.f32 %v5199, %v5211
        %v5214 = vmul.f32 %v5175, 0.5
        %v5215 = vmul.f32 %v5179, 0.5
        %v5216 = vtanh.pop %v5214
        %v5217 = vtanh.pop %v5215
        %v5218 = vmul.f32 %v5216, 0.5
        %v5219 = vmul.f32 %v5217, 0.5
        %v5220 = vadd.f32 %v5218, 0.5
        %v5221 = vadd.f32 %v5219, 0.5
        %v5222 = vtanh.pop %v5212
        %v5223 = vtanh.pop %v5213
        %v5224 = vmul.f32 %v5220, %v5222
        %v5225 = vmul.f32 %v5221, %v5223
        %5226 = vst [vmem:[#allocation7] sm:$0xff] %v5212
        %5227 = vst [vmem:[#allocation7 + $0x8] sm:$0xff] %v5213
        %v5228 = vpack.c.bf16 %v5224, %v5224
        %v5229 = vpack.c.bf16 %v5225, %v5225
        %5230 = vst [vmem:[#allocation5 + $0x4] sm:$0xf] %v5228
        %5231 = vst [vmem:[#allocation5 + $0x8] sm:$0xf] %v5229
        %5232 = vst [vmem:[%s406] sm:$0xff] %v5224
        %5233 = vst [vmem:[%s406 + $0x8] sm:$0xff] %v5225
        %5234 = vst [vmem:[%s413] sm:$0xff] %v5224
        %5235 = vst [vmem:[%s413 + $0x8] sm:$0xff] %v5225
        %5236 = vst [vmem:[%s420] sm:$0xff] %v5212
        %5237 = vst [vmem:[%s420 + $0x8] sm:$0xff] %v5213
        %v5238 = vld [vmem:[#allocation7 + $0x10] sm:$0xff]
        %v5239 = vld [vmem:[#allocation7 + $0x18] sm:$0xff]
        %v5240 = vmul.f32 %v5181, 0.5
        %v5241 = vmul.f32 %v5185, 0.5
        %v5242 = vtanh.pop %v5240
        %v5243 = vtanh.pop %v5241
        %v5244 = vmul.f32 %v5242, 0.5
        %v5245 = vmul.f32 %v5243, 0.5
        %v5246 = vadd.f32 %v5244, 0.5
        %v5247 = vadd.f32 %v5245, 0.5
        %v5248 = vmul.f32 %v5246, %v5238
        %v5249 = vmul.f32 %v5247, %v5239
        %v5250 = vmul.f32 %v5180, 0.5
        %v5251 = vmul.f32 %v5184, 0.5
        %v5252 = vtanh.pop %v5250
        %v5253 = vtanh.pop %v5251
        %v5254 = vmul.f32 %v5252, 0.5
        %v5255 = vmul.f32 %v5253, 0.5
        %v5256 = vadd.f32 %v5254, 0.5
        %v5257 = vadd.f32 %v5255, 0.5
        %v5258 = vtanh.pop %v5182
        %v5259 = vtanh.pop %v5186
        %v5260 = vmul.f32 %v5256, %v5258
        %v5261 = vmul.f32 %v5257, %v5259
        %v5262 = vadd.f32 %v5248, %v5260
        %v5263 = vadd.f32 %v5249, %v5261
        %v5264 = vmul.f32 %v5183, 0.5
        %v5265 = vmul.f32 %v5187, 0.5
        %v5266 = vtanh.pop %v5264
        %v5267 = vtanh.pop %v5265
        %v5268 = vmul.f32 %v5266, 0.5
        %v5269 = vmul.f32 %v5267, 0.5
        %v5270 = vadd.f32 %v5268, 0.5
        %v5271 = vadd.f32 %v5269, 0.5
        %v5272 = vtanh.pop %v5262
        %v5273 = vtanh.pop %v5263
        %v5274 = vmul.f32 %v5270, %v5272
        %v5275 = vmul.f32 %v5271, %v5273
        %5276 = vst [vmem:[#allocation7 + $0x10] sm:$0xff] %v5262
        %5277 = vst [vmem:[#allocation7 + $0x18] sm:$0xff] %v5263
        %v5278 = vpack.c.bf16 %v5274, %v5274
        %v5279 = vpack.c.bf16 %v5275, %v5275
        %5280 = vst [vmem:[#allocation5 + $0x10] sm:$0xf] %v5278
        %5281 = vst [vmem:[#allocation5 + $0x14] sm:$0xf] %v5279
        %s5282 = scalar_lea.vmem %s406, 16
        %5283 = vst [vmem:[%s5282] sm:$0xff] %v5274
        %5284 = vst [vmem:[%s5282 + $0x8] sm:$0xff] %v5275
        %s5285 = scalar_lea.vmem %s413, 16
        %5286 = vst [vmem:[%s5285] sm:$0xff] %v5274
        %5287 = vst [vmem:[%s5285 + $0x8] sm:$0xff] %v5275
        %s5288 = scalar_lea.vmem %s420, 16
        %5289 = vst [vmem:[%s5288] sm:$0xff] %v5262
        %5290 = vst [vmem:[%s5288 + $0x8] sm:$0xff] %v5263
        %s5291 = smul.u32 2, %s23
        %p5292 = scmp.lt.s32.totalorder %s5291, 3
        %s5293 = scalar_select %p5292, %s5291, 3
        %s5294 = smul.addr %s5293, 2
        %s5295 = smul.addr %s5294, 8
        %s5296 = scalar_lea.vmem %s7, %s5295
        %s5297 = smul.u32 2, %s23
        %p5298 = scmp.lt.s32.totalorder %s5297, 3
        %s5299 = scalar_select %p5298, %s5297, 3
        %s5300 = smul.addr %s5299, 2
        %s5301 = smul.addr %s5300, 8
        %s5302 = scalar_lea.vmem %s8, %s5301
        %s5303 = smul.u32 2, %s23
        %p5304 = scmp.lt.s32.totalorder %s5303, 3
        %s5305 = scalar_select %p5304, %s5303, 3
        %s5306 = smul.addr %s5305, 2
        %s5307 = smul.addr %s5306, 8
        %s5308 = scalar_lea.vmem %s9, %s5307
        // Predicated region
        $region61: #{forward.1} parent=47 // pred_check
          %p5309 = pneg %p193
        $region62: #{forward.1} parent=47 // pred_check_branch
          %5311 = sbr.rel (%p5309) target = $region64
        $region63: #{forward.1} parent=47 // pred_region
          %s5312 = smul.u32 2, %s23
        $region64: #{forward.1} parent=47 // pred_fallthru
          _
        // Predicated region
        $region65: #{forward.1} parent=47 // pred_check
          %p5313 = pneg %p219
        $region66: #{forward.1} parent=47 // pred_check_branch
          %5315 = sbr.rel (%p5313) target = $region68
        $region67: #{forward.1} parent=47 // pred_region
          %s5316 = smul.u32 2, %s23
        $region68: #{forward.1} parent=47 // pred_fallthru
          _
        // Predicated region
        $region69: #{forward.1} parent=47 // pred_check
          %p5317 = pneg %p245
        $region70: #{forward.1} parent=47 // pred_check_branch
          %5319 = sbr.rel (%p5317) target = $region72
        $region71: #{forward.1} parent=47 // pred_region
          %s5320 = smul.u32 2, %s23
        $region72: #{forward.1} parent=47 // pred_fallthru
          _
      $region48: #{forward.1} parent=5 // pred_fallthru
        _
      %p5321 = scmp.le.s32.totalorder 2, %s18
      // Predicated region
      $region73: #{forward.1} parent=5 // pred_check
        %p5322 = pneg %p5321
      $region74: #{forward.1} parent=5 // pred_check_branch
        %5324 = sbr.rel (%p5322) target = $region76
      $region75: #{forward.1} parent=5 // pred_region
        %s5325 = ssub.s32 %s18, 2
        // Predicated region
        $region77: #{forward.1} parent=75 // pred_check
          %p5326 = pneg %p199
        $region78: #{forward.1} parent=75 // pred_check_branch
          %5328 = sbr.rel (%p5326) target = $region80
        $region79: #{forward.1} parent=75 // pred_region
          %s5329 = smul.u32 2, %s24
          %p5330 = scmp.lt.s32.totalorder %s5329, 3
          %s5331 = scalar_select %p5330, %s5329, 3
          %s5332 = smul.addr %s5331, 2
          %s5333 = smul.addr %s5332, 8
          %s5334 = scalar_lea.vmem %s7, %s5333
        $region80: #{forward.1} parent=75 // pred_fallthru
          _
        // Predicated region
        $region81: #{forward.1} parent=75 // pred_check
          %p5335 = pneg %p225
        $region82: #{forward.1} parent=75 // pred_check_branch
          %5337 = sbr.rel (%p5335) target = $region84
        $region83: #{forward.1} parent=75 // pred_region
          %s5338 = smul.u32 2, %s24
          %p5339 = scmp.lt.s32.totalorder %s5338, 3
          %s5340 = scalar_select %p5339, %s5338, 3
          %s5341 = smul.addr %s5340, 2
          %s5342 = smul.addr %s5341, 8
          %s5343 = scalar_lea.vmem %s8, %s5342
        $region84: #{forward.1} parent=75 // pred_fallthru
          _
        // Predicated region
        $region85: #{forward.1} parent=75 // pred_check
          %p5344 = pneg %p251
        $region86: #{forward.1} parent=75 // pred_check_branch
          %5346 = sbr.rel (%p5344) target = $region88
        $region87: #{forward.1} parent=75 // pred_region
          %s5347 = smul.u32 2, %s24
          %p5348 = scmp.lt.s32.totalorder %s5347, 3
          %s5349 = scalar_select %p5348, %s5347, 3
          %s5350 = smul.addr %s5349, 2
          %s5351 = smul.addr %s5350, 8
          %s5352 = scalar_lea.vmem %s9, %s5351
        $region88: #{forward.1} parent=75 // pred_fallthru
          _
      $region76: #{forward.1} parent=5 // pred_fallthru
        _
    $region6: #{forward.1} parent=1 // loop_footer
      %s22 = sadd.s32 1, %s18
    $region7: #{forward.1} parent=1 // loop_footer_branch
      %17 = sbr.rel target = $region3
    $region8: #{forward.1} parent=1 // loop_exit
      _
    %5353 = vsyncpa [#allocation9], 1
    %s5354 = scalar_lea.sflag [#allocation9], 1
    %5355 = vsyncpa %s5354, 1
    %5356 = vsyncpa [#allocation11], 1

</llo_original>
